<compile_context>
chip_gen: v7x
topology: tpu7x:2x2x1
jax: 0.10.0
libtpu: 0.0.40
codegen_flags: <defaults>
</compile_context>

<pallas_src>
import functools
import math

import jax
import jax.numpy as jnp
from jax.experimental import pallas as pl
from jax.experimental.pallas import tpu as pltpu


def _mha_kernel(q_ref, k_ref, v_ref,
                wq_ref, bq_ref, wk_ref, wv_ref, bv_ref, wo_ref, bo_ref,
                o_ref,
                qp_sc, m_sc, l_sc, acc_sc, ctx_sc,
                *, num_heads, d_k):
    """Grid: (batch, q_tile, kv_tile).  Heads are an unrolled in-kernel loop."""
    kv = pl.program_id(2)
    last_kv = pl.num_programs(2) - 1

    # --- once per (b, q): full-width Q projection + online-softmax reset ----
    @pl.when(kv == 0)
    def _():
        qp = (jnp.dot(q_ref[0], wq_ref[...], preferred_element_type=jnp.float32)
              + bq_ref[...])                                   # (tq, D) f32
        for h in range(num_heads):
            qp_sc[h] = qp[:, h * d_k:(h + 1) * d_k].astype(qp_sc.dtype)
        m_sc[...] = jnp.full_like(m_sc, -jnp.inf)
        l_sc[...] = jnp.zeros_like(l_sc)
        acc_sc[...] = jnp.zeros_like(acc_sc)

    # --- full-width K / V projections for this kv tile (one D-deep, D-wide
    #     MXU matmul each; b_k dropped: per-row constant cancels in softmax) --
    kp = jnp.dot(k_ref[0], wk_ref[...],
                 preferred_element_type=jnp.float32).astype(jnp.bfloat16)
    vp = (jnp.dot(v_ref[0], wv_ref[...], preferred_element_type=jnp.float32)
          + bv_ref[...]).astype(jnp.bfloat16)

    # --- per-head flash-style online softmax (static unrolled loop) ---------
    for h in range(num_heads):
        lo = h * d_k
        kh = kp[:, lo:lo + d_k]                                # (tkv, d_k) bf16
        vh = vp[:, lo:lo + d_k]

        # scores = Qp_h @ Kp_h^T as a last-dim contraction (no XLU transpose).
        s = jax.lax.dot_general(qp_sc[h], kh,
                                dimension_numbers=(((1,), (1,)), ((), ())),
                                preferred_element_type=jnp.float32)  # (tq, tkv)

        m_prev = m_sc[h]
        m_new = jnp.maximum(m_prev, jnp.max(s, axis=-1, keepdims=True))
        alpha = jnp.exp(m_prev - m_new)
        p = jnp.exp(s - m_new)
        l_sc[h] = alpha * l_sc[h] + jnp.sum(p, axis=-1, keepdims=True)
        acc_sc[h] = alpha * acc_sc[h] + jnp.dot(
            p.astype(jnp.bfloat16), vh, preferred_element_type=jnp.float32)
        m_sc[h] = m_new

    # --- last kv tile: normalize, assemble lane-dense (tq, D) context slab,
    #     then ONE D-wide output projection + bias ---------------------------
    @pl.when(kv == last_kv)
    def _():
        for h in range(num_heads):
            inv_l = pl.reciprocal(l_sc[h], approx=True)        # (tq, 1)
            ctx_sc[:, h * d_k:(h + 1) * d_k] = (
                acc_sc[h] * inv_l).astype(ctx_sc.dtype)
        o_ref[0] = (jnp.dot(ctx_sc[...], wo_ref[...],
                            preferred_element_type=jnp.float32)
                    + bo_ref[...]).astype(o_ref.dtype)


def _tpu_vmem_capacity_bytes():
    try:
        return int(pltpu.get_tpu_info().vmem_capacity_bytes)
    except Exception:
        # Conservative fallback (v7x has the smallest VMEM at 64 MiB).
        return 64 * 1024 * 1024


def _pick_seq_tile(s, max_tile):
    if s <= max_tile:
        return s                      # block dim == full array dim -> always legal
    for t in (512, 256, 128):
        if t <= max_tile and s % t == 0:
            return t
    # TODO(synk): pad ragged sequence lengths to a multiple of 128.
    return s


def multi_head_attention(Q, K, V, params, *, num_heads):
    """Q, K, V: (B, S, d_model) float32.  params: dict of nn.Linear (W*, b*)."""
    B, S, D = Q.shape
    assert D % num_heads == 0, "d_model must be divisible by num_heads"
    d_k = D // num_heads
    scale = 1.0 / math.sqrt(d_k)

    # nn.Linear weight is (out, in); y = x @ W.T + b  ->  kernel uses W.T (D, D).
    # Head h occupies output columns [h*d_k, (h+1)*d_k), matching split_heads.
    wq = (params["W_q"].T * scale).astype(jnp.bfloat16)   # 1/sqrt(d_k) folded in
    wk = params["W_k"].T.astype(jnp.bfloat16)
    wv = params["W_v"].T.astype(jnp.bfloat16)
    wo = params["W_o"].T.astype(jnp.bfloat16)
    bq = (params["b_q"] * scale).reshape(1, D).astype(jnp.float32)
    bv = params["b_v"].reshape(1, D).astype(jnp.float32)
    bo = params["b_o"].reshape(1, D).astype(jnp.float32)
    # b_k is dropped on purpose (no effect on softmax output for mask=None).

    # bf16 MXU operands for activations (halves activation DMA bytes);
    # all accumulation inside the kernel is f32.
    Qb = Q.astype(jnp.bfloat16)
    Kb = K.astype(jnp.bfloat16)
    Vb = V.astype(jnp.bfloat16)

    # Generation-aware tiling / VMEM limit.
    vmem_cap = _tpu_vmem_capacity_bytes()
    max_tile = 512 if vmem_cap >= 96 * 1024 * 1024 else 256   # v5e/v6e vs v7x
    tq = _pick_seq_tile(S, max_tile)
    tkv = tq
    nq, nkv = S // tq, S // tkv
    vmem_limit = int(max(min(int(0.75 * vmem_cap), 100 * 1024 * 1024),
                         32 * 1024 * 1024))

    kernel = functools.partial(_mha_kernel, num_heads=num_heads, d_k=d_k)

    q_spec = pl.BlockSpec((1, tq, D), lambda b, q, kv: (b, q, 0))
    kv_spec = pl.BlockSpec((1, tkv, D), lambda b, q, kv: (b, kv, 0))
    w_spec = pl.BlockSpec((D, D), lambda b, q, kv: (0, 0))    # constant index ->
    bias_spec = pl.BlockSpec((1, D), lambda b, q, kv: (0, 0))  # fetched once
    o_spec = pl.BlockSpec((1, tq, D), lambda b, q, kv: (b, q, 0))

    return pl.pallas_call(
        kernel,
        out_shape=jax.ShapeDtypeStruct((B, S, D), Q.dtype),
        grid_spec=pltpu.PrefetchScalarGridSpec(
            num_scalar_prefetch=0,
            grid=(B, nq, nkv),
            in_specs=[q_spec, kv_spec, kv_spec,
                      w_spec, bias_spec,        # W_q, b_q
                      w_spec,                   # W_k (no bias)
                      w_spec, bias_spec,        # W_v, b_v
                      w_spec, bias_spec],       # W_o, b_o
            out_specs=o_spec,
            scratch_shapes=[
                pltpu.VMEM((num_heads, tq, d_k), jnp.bfloat16),  # Qp per head
                pltpu.VMEM((num_heads, tq, 1), jnp.float32),     # running max m
                pltpu.VMEM((num_heads, tq, 1), jnp.float32),     # running denom l
                pltpu.VMEM((num_heads, tq, d_k), jnp.float32),   # per-head ctx acc
                pltpu.VMEM((tq, D), jnp.bfloat16),               # lane-dense ctx slab
            ],
        ),
        compiler_params=pltpu.CompilerParams(
            dimension_semantics=("parallel", "parallel", "arbitrary"),
            vmem_limit_bytes=vmem_limit,
        ),
    )(Qb, Kb, Vb, wq, bq, wk, wv, bv, wo, bo)


def _reference_mha(Q, K, V, params, *, num_heads):
    """Plain-JAX f32 reference mirroring the PyTorch forward (mask=None)."""
    B, S, D = Q.shape
    d_k = D // num_heads

    def lin(x, W, b):
        return x @ W.T + b

    def split(x):
        return x.reshape(B, S, num_heads, d_k).transpose(0, 2, 1, 3)

    q = split(lin(Q, params["W_q"], params["b_q"]))
    k = split(lin(K, params["W_k"], params["b_k"]))
    v = split(lin(V, params["W_v"], params["b_v"]))
    scores = jnp.einsum("bhqd,bhkd->bhqk", q, k) / math.sqrt(d_k)
    probs = jax.nn.softmax(scores, axis=-1)
    out = jnp.einsum("bhqk,bhkd->bhqd", probs, v)
    out = out.transpose(0, 2, 1, 3).reshape(B, S, D)
    return lin(out, params["W_o"], params["b_o"])


def _init_params(key, d_model):
    # Deterministic init mimicking nn.Linear default U(-1/sqrt(in), 1/sqrt(in)).
    bound = 1.0 / math.sqrt(d_model)
    keys = jax.random.split(key, 8)
    names = ["W_q", "b_q", "W_k", "b_k", "W_v", "b_v", "W_o", "b_o"]
    shapes = [(d_model, d_model), (d_model,)] * 4
    return {n: jax.random.uniform(k, s, jnp.float32, -bound, bound)
            for n, k, s in zip(names, keys, shapes)}


if __name__ == "__main__":
    # Small shapes consistent with the module (d_model slider min is 128).
    B, S, d_model, num_heads = 2, 8, 128, 8

    key = jax.random.PRNGKey(0)
    k_q, k_k, k_v, k_p = jax.random.split(key, 4)
    Q = jax.random.normal(k_q, (B, S, d_model), jnp.float32)
    K = jax.random.normal(k_k, (B, S, d_model), jnp.float32)
    V = jax.random.normal(k_v, (B, S, d_model), jnp.float32)
    params = _init_params(k_p, d_model)

    out = multi_head_attention(Q, K, V, params, num_heads=num_heads)
    out = jax.block_until_ready(out)

    ref = _reference_mha(Q, K, V, params, num_heads=num_heads)
    assert out.shape == (B, S, d_model)
    # Tolerance reflects bf16 MXU operands + approx reciprocal (f32 accum).
    assert jnp.allclose(out, ref, atol=2e-2, rtol=2e-2), "mismatch vs reference"

    print("KERNEL_OK")
</pallas_src>

<mosaic_0001>
module attributes {stable_mosaic.version = 11 : i64} {
  func.func @_mha_kernel(%arg0: i32, %arg1: i32, %arg2: i32, %arg3: memref<1x8x128xbf16, #tpu.memory_space<vmem>>, %arg4: memref<1x8x128xbf16, #tpu.memory_space<vmem>>, %arg5: memref<1x8x128xbf16, #tpu.memory_space<vmem>>, %arg6: memref<128x128xbf16, #tpu.memory_space<vmem>>, %arg7: memref<1x128xf32, #tpu.memory_space<vmem>>, %arg8: memref<128x128xbf16, #tpu.memory_space<vmem>>, %arg9: memref<128x128xbf16, #tpu.memory_space<vmem>>, %arg10: memref<1x128xf32, #tpu.memory_space<vmem>>, %arg11: memref<128x128xbf16, #tpu.memory_space<vmem>>, %arg12: memref<1x128xf32, #tpu.memory_space<vmem>>, %arg13: memref<1x8x128xf32, #tpu.memory_space<vmem>>, %arg14: memref<8x8x16xbf16, #tpu.memory_space<vmem>>, %arg15: memref<8x8x1xf32, #tpu.memory_space<vmem>>, %arg16: memref<8x8x1xf32, #tpu.memory_space<vmem>>, %arg17: memref<8x8x16xf32, #tpu.memory_space<vmem>>, %arg18: memref<8x128xbf16, #tpu.memory_space<vmem>>) attributes {dimension_semantics = [#tpu.dimension_semantics<parallel>, #tpu.dimension_semantics<parallel>, #tpu.dimension_semantics<arbitrary>], iteration_bounds = array<i64: 2, 1, 1>, scalar_prefetch = 0 : i64, scratch_operands = 5 : i64, tpu.core_type = #tpu.core_type<tc>, window_params = [{transform_indices = @transform_0, window_bounds = array<i64: 1, 8, 128>}, {transform_indices = @transform_1, window_bounds = array<i64: 1, 8, 128>}, {transform_indices = @transform_2, window_bounds = array<i64: 1, 8, 128>}, {pipeline_mode = #tpu.pipeline_mode<synchronous>, transform_indices = @transform_3, window_bounds = array<i64: 128, 128>}, {pipeline_mode = #tpu.pipeline_mode<synchronous>, transform_indices = @transform_4, window_bounds = array<i64: 1, 128>}, {pipeline_mode = #tpu.pipeline_mode<synchronous>, transform_indices = @transform_5, window_bounds = array<i64: 128, 128>}, {pipeline_mode = #tpu.pipeline_mode<synchronous>, transform_indices = @transform_6, window_bounds = array<i64: 128, 128>}, {pipeline_mode = #tpu.pipeline_mode<synchronous>, transform_indices = @transform_7, window_bounds = array<i64: 1, 128>}, {pipeline_mode = #tpu.pipeline_mode<synchronous>, transform_indices = @transform_8, window_bounds = array<i64: 128, 128>}, {pipeline_mode = #tpu.pipeline_mode<synchronous>, transform_indices = @transform_9, window_bounds = array<i64: 1, 128>}, {transform_indices = @transform_10, window_bounds = array<i64: 1, 8, 128>}]} {
    %c0_i32 = arith.constant 0 : i32
    %0 = arith.cmpi eq, %arg2, %c0_i32 : i32
    %1 = arith.extui %0 : i1 to i32
    %c0_i32_0 = arith.constant 0 : i32
    %2 = arith.cmpi ne, %1, %c0_i32_0 : i32
    scf.if %2 {
      %c0_208 = arith.constant 0 : index
      %c0_209 = arith.constant 0 : index
      %c0_210 = arith.constant 0 : index
      %315 = vector.load %arg3[%c0_208, %c0_209, %c0_210] : memref<1x8x128xbf16, #tpu.memory_space<vmem>>, vector<1x8x128xbf16>
      %316 = vector.shape_cast %315 : vector<1x8x128xbf16> to vector<8x128xbf16>
      %c0_211 = arith.constant 0 : index
      %c0_212 = arith.constant 0 : index
      %317 = vector.load %arg6[%c0_211, %c0_212] : memref<128x128xbf16, #tpu.memory_space<vmem>>, vector<128x128xbf16>
      %cst_213 = arith.constant dense<0.000000e+00> : vector<8x128xf32>
      %318 = tpu.matmul %316, %317, %cst_213 {dimension_numbers = #tpu.dot_dimension_numbers<[1], [0], [0], [1], [0, 0, 1, 1], [], []>} : vector<8x128xbf16>, vector<128x128xbf16>, vector<8x128xf32> -> vector<8x128xf32>
      %c0_214 = arith.constant 0 : index
      %c0_215 = arith.constant 0 : index
      %319 = vector.load %arg7[%c0_214, %c0_215] : memref<1x128xf32, #tpu.memory_space<vmem>>, vector<1x128xf32>
      %320 = vector.broadcast %319 : vector<1x128xf32> to vector<8x128xf32>
      %321 = arith.addf %318, %320 : vector<8x128xf32>
      %322 = vector.extract_strided_slice %321 {offsets = [0, 0], sizes = [8, 16], strides = [1, 1]} : vector<8x128xf32> to vector<8x16xf32>
      %323 = arith.truncf %322 : vector<8x16xf32> to vector<8x16xbf16>
      %c0_216 = arith.constant 0 : index
      %c0_217 = arith.constant 0 : index
      %c0_218 = arith.constant 0 : index
      %324 = vector.load %arg14[%c0_216, %c0_217, %c0_218] : memref<8x8x16xbf16, #tpu.memory_space<vmem>>, vector<1x8x16xbf16>
      %325 = vector.shape_cast %324 : vector<1x8x16xbf16> to vector<8x16xbf16>
      %326 = vector.shape_cast %323 : vector<8x16xbf16> to vector<1x8x16xbf16>
      tpu.vector_store %arg14[%c0_216, %c0_217, %c0_218], %326 {strides = array<i32>} : memref<8x8x16xbf16, #tpu.memory_space<vmem>>, vector<1x8x16xbf16>,
      %327 = vector.extract_strided_slice %321 {offsets = [0, 16], sizes = [8, 16], strides = [1, 1]} : vector<8x128xf32> to vector<8x16xf32>
      %328 = arith.truncf %327 : vector<8x16xf32> to vector<8x16xbf16>
      %c1_219 = arith.constant 1 : index
      %c0_220 = arith.constant 0 : index
      %c0_221 = arith.constant 0 : index
      %329 = vector.load %arg14[%c1_219, %c0_220, %c0_221] : memref<8x8x16xbf16, #tpu.memory_space<vmem>>, vector<1x8x16xbf16>
      %330 = vector.shape_cast %329 : vector<1x8x16xbf16> to vector<8x16xbf16>
      %331 = vector.shape_cast %328 : vector<8x16xbf16> to vector<1x8x16xbf16>
      tpu.vector_store %arg14[%c1_219, %c0_220, %c0_221], %331 {strides = array<i32>} : memref<8x8x16xbf16, #tpu.memory_space<vmem>>, vector<1x8x16xbf16>,
      %332 = vector.extract_strided_slice %321 {offsets = [0, 32], sizes = [8, 16], strides = [1, 1]} : vector<8x128xf32> to vector<8x16xf32>
      %333 = arith.truncf %332 : vector<8x16xf32> to vector<8x16xbf16>
      %c2_222 = arith.constant 2 : index
      %c0_223 = arith.constant 0 : index
      %c0_224 = arith.constant 0 : index
      %334 = vector.load %arg14[%c2_222, %c0_223, %c0_224] : memref<8x8x16xbf16, #tpu.memory_space<vmem>>, vector<1x8x16xbf16>
      %335 = vector.shape_cast %334 : vector<1x8x16xbf16> to vector<8x16xbf16>
      %336 = vector.shape_cast %333 : vector<8x16xbf16> to vector<1x8x16xbf16>
      tpu.vector_store %arg14[%c2_222, %c0_223, %c0_224], %336 {strides = array<i32>} : memref<8x8x16xbf16, #tpu.memory_space<vmem>>, vector<1x8x16xbf16>,
      %337 = vector.extract_strided_slice %321 {offsets = [0, 48], sizes = [8, 16], strides = [1, 1]} : vector<8x128xf32> to vector<8x16xf32>
      %338 = arith.truncf %337 : vector<8x16xf32> to vector<8x16xbf16>
      %c3_225 = arith.constant 3 : index
      %c0_226 = arith.constant 0 : index
      %c0_227 = arith.constant 0 : index
      %339 = vector.load %arg14[%c3_225, %c0_226, %c0_227] : memref<8x8x16xbf16, #tpu.memory_space<vmem>>, vector<1x8x16xbf16>
      %340 = vector.shape_cast %339 : vector<1x8x16xbf16> to vector<8x16xbf16>
      %341 = vector.shape_cast %338 : vector<8x16xbf16> to vector<1x8x16xbf16>
      tpu.vector_store %arg14[%c3_225, %c0_226, %c0_227], %341 {strides = array<i32>} : memref<8x8x16xbf16, #tpu.memory_space<vmem>>, vector<1x8x16xbf16>,
      %342 = vector.extract_strided_slice %321 {offsets = [0, 64], sizes = [8, 16], strides = [1, 1]} : vector<8x128xf32> to vector<8x16xf32>
      %343 = arith.truncf %342 : vector<8x16xf32> to vector<8x16xbf16>
      %c4_228 = arith.constant 4 : index
      %c0_229 = arith.constant 0 : index
      %c0_230 = arith.constant 0 : index
      %344 = vector.load %arg14[%c4_228, %c0_229, %c0_230] : memref<8x8x16xbf16, #tpu.memory_space<vmem>>, vector<1x8x16xbf16>
      %345 = vector.shape_cast %344 : vector<1x8x16xbf16> to vector<8x16xbf16>
      %346 = vector.shape_cast %343 : vector<8x16xbf16> to vector<1x8x16xbf16>
      tpu.vector_store %arg14[%c4_228, %c0_229, %c0_230], %346 {strides = array<i32>} : memref<8x8x16xbf16, #tpu.memory_space<vmem>>, vector<1x8x16xbf16>,
      %347 = vector.extract_strided_slice %321 {offsets = [0, 80], sizes = [8, 16], strides = [1, 1]} : vector<8x128xf32> to vector<8x16xf32>
      %348 = arith.truncf %347 : vector<8x16xf32> to vector<8x16xbf16>
      %c5_231 = arith.constant 5 : index
      %c0_232 = arith.constant 0 : index
      %c0_233 = arith.constant 0 : index
      %349 = vector.load %arg14[%c5_231, %c0_232, %c0_233] : memref<8x8x16xbf16, #tpu.memory_space<vmem>>, vector<1x8x16xbf16>
      %350 = vector.shape_cast %349 : vector<1x8x16xbf16> to vector<8x16xbf16>
      %351 = vector.shape_cast %348 : vector<8x16xbf16> to vector<1x8x16xbf16>
      tpu.vector_store %arg14[%c5_231, %c0_232, %c0_233], %351 {strides = array<i32>} : memref<8x8x16xbf16, #tpu.memory_space<vmem>>, vector<1x8x16xbf16>,
      %352 = vector.extract_strided_slice %321 {offsets = [0, 96], sizes = [8, 16], strides = [1, 1]} : vector<8x128xf32> to vector<8x16xf32>
      %353 = arith.truncf %352 : vector<8x16xf32> to vector<8x16xbf16>
      %c6_234 = arith.constant 6 : index
      %c0_235 = arith.constant 0 : index
      %c0_236 = arith.constant 0 : index
      %354 = vector.load %arg14[%c6_234, %c0_235, %c0_236] : memref<8x8x16xbf16, #tpu.memory_space<vmem>>, vector<1x8x16xbf16>
      %355 = vector.shape_cast %354 : vector<1x8x16xbf16> to vector<8x16xbf16>
      %356 = vector.shape_cast %353 : vector<8x16xbf16> to vector<1x8x16xbf16>
      tpu.vector_store %arg14[%c6_234, %c0_235, %c0_236], %356 {strides = array<i32>} : memref<8x8x16xbf16, #tpu.memory_space<vmem>>, vector<1x8x16xbf16>,
      %357 = vector.extract_strided_slice %321 {offsets = [0, 112], sizes = [8, 16], strides = [1, 1]} : vector<8x128xf32> to vector<8x16xf32>
      %358 = arith.truncf %357 : vector<8x16xf32> to vector<8x16xbf16>
      %c7_237 = arith.constant 7 : index
      %c0_238 = arith.constant 0 : index
      %c0_239 = arith.constant 0 : index
      %359 = vector.load %arg14[%c7_237, %c0_238, %c0_239] : memref<8x8x16xbf16, #tpu.memory_space<vmem>>, vector<1x8x16xbf16>
      %360 = vector.shape_cast %359 : vector<1x8x16xbf16> to vector<8x16xbf16>
      %361 = vector.shape_cast %358 : vector<8x16xbf16> to vector<1x8x16xbf16>
      tpu.vector_store %arg14[%c7_237, %c0_238, %c0_239], %361 {strides = array<i32>} : memref<8x8x16xbf16, #tpu.memory_space<vmem>>, vector<1x8x16xbf16>,
      %cst_240 = arith.constant 0xFF800000 : f32
      %362 = vector.broadcast %cst_240 : f32 to vector<8x8x1xf32>
      %c0_241 = arith.constant 0 : index
      %c0_242 = arith.constant 0 : index
      %c0_243 = arith.constant 0 : index
      %363 = vector.load %arg15[%c0_241, %c0_242, %c0_243] : memref<8x8x1xf32, #tpu.memory_space<vmem>>, vector<8x8x1xf32>
      tpu.vector_store %arg15[%c0_241, %c0_242, %c0_243], %362 {strides = array<i32>} : memref<8x8x1xf32, #tpu.memory_space<vmem>>, vector<8x8x1xf32>,
      %cst_244 = arith.constant 0.000000e+00 : f32
      %364 = vector.broadcast %cst_244 : f32 to vector<8x8x1xf32>
      %c0_245 = arith.constant 0 : index
      %c0_246 = arith.constant 0 : index
      %c0_247 = arith.constant 0 : index
      %365 = vector.load %arg16[%c0_245, %c0_246, %c0_247] : memref<8x8x1xf32, #tpu.memory_space<vmem>>, vector<8x8x1xf32>
      tpu.vector_store %arg16[%c0_245, %c0_246, %c0_247], %364 {strides = array<i32>} : memref<8x8x1xf32, #tpu.memory_space<vmem>>, vector<8x8x1xf32>,
      %cst_248 = arith.constant 0.000000e+00 : f32
      %366 = vector.broadcast %cst_248 : f32 to vector<8x8x16xf32>
      %c0_249 = arith.constant 0 : index
      %c0_250 = arith.constant 0 : index
      %c0_251 = arith.constant 0 : index
      %367 = vector.load %arg17[%c0_249, %c0_250, %c0_251] : memref<8x8x16xf32, #tpu.memory_space<vmem>>, vector<8x8x16xf32>
      tpu.vector_store %arg17[%c0_249, %c0_250, %c0_251], %366 {strides = array<i32>} : memref<8x8x16xf32, #tpu.memory_space<vmem>>, vector<8x8x16xf32>,
    } else {
    }
    %c0 = arith.constant 0 : index
    %c0_1 = arith.constant 0 : index
    %c0_2 = arith.constant 0 : index
    %3 = vector.load %arg4[%c0, %c0_1, %c0_2] : memref<1x8x128xbf16, #tpu.memory_space<vmem>>, vector<1x8x128xbf16>
    %4 = vector.shape_cast %3 : vector<1x8x128xbf16> to vector<8x128xbf16>
    %c0_3 = arith.constant 0 : index
    %c0_4 = arith.constant 0 : index
    %5 = vector.load %arg8[%c0_3, %c0_4] : memref<128x128xbf16, #tpu.memory_space<vmem>>, vector<128x128xbf16>
    %cst = arith.constant dense<0.000000e+00> : vector<8x128xf32>
    %6 = tpu.matmul %4, %5, %cst {dimension_numbers = #tpu.dot_dimension_numbers<[1], [0], [0], [1], [0, 0, 1, 1], [], []>} : vector<8x128xbf16>, vector<128x128xbf16>, vector<8x128xf32> -> vector<8x128xf32>
    %7 = arith.truncf %6 : vector<8x128xf32> to vector<8x128xbf16>
    %c0_5 = arith.constant 0 : index
    %c0_6 = arith.constant 0 : index
    %c0_7 = arith.constant 0 : index
    %8 = vector.load %arg5[%c0_5, %c0_6, %c0_7] : memref<1x8x128xbf16, #tpu.memory_space<vmem>>, vector<1x8x128xbf16>
    %9 = vector.shape_cast %8 : vector<1x8x128xbf16> to vector<8x128xbf16>
    %c0_8 = arith.constant 0 : index
    %c0_9 = arith.constant 0 : index
    %10 = vector.load %arg9[%c0_8, %c0_9] : memref<128x128xbf16, #tpu.memory_space<vmem>>, vector<128x128xbf16>
    %cst_10 = arith.constant dense<0.000000e+00> : vector<8x128xf32>
    %11 = tpu.matmul %9, %10, %cst_10 {dimension_numbers = #tpu.dot_dimension_numbers<[1], [0], [0], [1], [0, 0, 1, 1], [], []>} : vector<8x128xbf16>, vector<128x128xbf16>, vector<8x128xf32> -> vector<8x128xf32>
    %c0_11 = arith.constant 0 : index
    %c0_12 = arith.constant 0 : index
    %12 = vector.load %arg10[%c0_11, %c0_12] : memref<1x128xf32, #tpu.memory_space<vmem>>, vector<1x128xf32>
    %13 = vector.broadcast %12 : vector<1x128xf32> to vector<8x128xf32>
    %14 = arith.addf %11, %13 : vector<8x128xf32>
    %15 = arith.truncf %14 : vector<8x128xf32> to vector<8x128xbf16>
    %16 = vector.extract_strided_slice %7 {offsets = [0, 0], sizes = [8, 16], strides = [1, 1]} : vector<8x128xbf16> to vector<8x16xbf16>
    %17 = vector.extract_strided_slice %15 {offsets = [0, 0], sizes = [8, 16], strides = [1, 1]} : vector<8x128xbf16> to vector<8x16xbf16>
    %c0_13 = arith.constant 0 : index
    %c0_14 = arith.constant 0 : index
    %c0_15 = arith.constant 0 : index
    %18 = vector.load %arg14[%c0_13, %c0_14, %c0_15] : memref<8x8x16xbf16, #tpu.memory_space<vmem>>, vector<1x8x16xbf16>
    %19 = vector.shape_cast %18 : vector<1x8x16xbf16> to vector<8x16xbf16>
    %cst_16 = arith.constant dense<0.000000e+00> : vector<8x8xf32>
    %20 = tpu.matmul %19, %16, %cst_16 {dimension_numbers = #tpu.dot_dimension_numbers<[1], [1], [0], [0], [0, 0, 1, 0], [], []>} : vector<8x16xbf16>, vector<8x16xbf16>, vector<8x8xf32> -> vector<8x8xf32>
    %c0_17 = arith.constant 0 : index
    %c0_18 = arith.constant 0 : index
    %c0_19 = arith.constant 0 : index
    %21 = vector.load %arg15[%c0_17, %c0_18, %c0_19] : memref<8x8x1xf32, #tpu.memory_space<vmem>>, vector<1x8x1xf32>
    %22 = vector.shape_cast %21 : vector<1x8x1xf32> to vector<8x1xf32>
    %cst_20 = arith.constant dense<0xFF800000> : vector<8xf32>
    %23 = vector.multi_reduction <maximumf>, %20, %cst_20 [1] : vector<8x8xf32> to vector<8xf32>
    %24 = vector.shape_cast %23 : vector<8xf32> to vector<8x1xf32>
    %25 = arith.maximumf %22, %24 : vector<8x1xf32>
    %26 = arith.subf %22, %25 : vector<8x1xf32>
    %27 = math.exp %26 : vector<8x1xf32>
    %28 = vector.broadcast %25 : vector<8x1xf32> to vector<8x8xf32>
    %29 = arith.subf %20, %28 : vector<8x8xf32>
    %30 = math.exp %29 : vector<8x8xf32>
    %c0_21 = arith.constant 0 : index
    %c0_22 = arith.constant 0 : index
    %c0_23 = arith.constant 0 : index
    %31 = vector.load %arg16[%c0_21, %c0_22, %c0_23] : memref<8x8x1xf32, #tpu.memory_space<vmem>>, vector<1x8x1xf32>
    %32 = vector.shape_cast %31 : vector<1x8x1xf32> to vector<8x1xf32>
    %33 = arith.mulf %27, %32 : vector<8x1xf32>
    %cst_24 = arith.constant dense<0.000000e+00> : vector<8xf32>
    %34 = vector.multi_reduction <add>, %30, %cst_24 [1] : vector<8x8xf32> to vector<8xf32>
    %35 = vector.shape_cast %34 : vector<8xf32> to vector<8x1xf32>
    %36 = arith.addf %33, %35 : vector<8x1xf32>
    %c0_25 = arith.constant 0 : index
    %c0_26 = arith.constant 0 : index
    %c0_27 = arith.constant 0 : index
    %37 = vector.load %arg16[%c0_25, %c0_26, %c0_27] : memref<8x8x1xf32, #tpu.memory_space<vmem>>, vector<1x8x1xf32>
    %38 = vector.shape_cast %37 : vector<1x8x1xf32> to vector<8x1xf32>
    %39 = vector.shape_cast %36 : vector<8x1xf32> to vector<1x8x1xf32>
    tpu.vector_store %arg16[%c0_25, %c0_26, %c0_27], %39 {strides = array<i32>} : memref<8x8x1xf32, #tpu.memory_space<vmem>>, vector<1x8x1xf32>,
    %c0_28 = arith.constant 0 : index
    %c0_29 = arith.constant 0 : index
    %c0_30 = arith.constant 0 : index
    %40 = vector.load %arg17[%c0_28, %c0_29, %c0_30] : memref<8x8x16xf32, #tpu.memory_space<vmem>>, vector<1x8x16xf32>
    %41 = vector.shape_cast %40 : vector<1x8x16xf32> to vector<8x16xf32>
    %42 = vector.broadcast %27 : vector<8x1xf32> to vector<8x16xf32>
    %43 = arith.mulf %42, %41 : vector<8x16xf32>
    %44 = arith.truncf %30 : vector<8x8xf32> to vector<8x8xbf16>
    %cst_31 = arith.constant dense<0.000000e+00> : vector<8x16xf32>
    %45 = tpu.matmul %44, %17, %cst_31 {dimension_numbers = #tpu.dot_dimension_numbers<[1], [0], [0], [1], [0, 0, 1, 1], [], []>} : vector<8x8xbf16>, vector<8x16xbf16>, vector<8x16xf32> -> vector<8x16xf32>
    %46 = arith.addf %43, %45 : vector<8x16xf32>
    %c0_32 = arith.constant 0 : index
    %c0_33 = arith.constant 0 : index
    %c0_34 = arith.constant 0 : index
    %47 = vector.load %arg17[%c0_32, %c0_33, %c0_34] : memref<8x8x16xf32, #tpu.memory_space<vmem>>, vector<1x8x16xf32>
    %48 = vector.shape_cast %47 : vector<1x8x16xf32> to vector<8x16xf32>
    %49 = vector.shape_cast %46 : vector<8x16xf32> to vector<1x8x16xf32>
    tpu.vector_store %arg17[%c0_32, %c0_33, %c0_34], %49 {strides = array<i32>} : memref<8x8x16xf32, #tpu.memory_space<vmem>>, vector<1x8x16xf32>,
    %c0_35 = arith.constant 0 : index
    %c0_36 = arith.constant 0 : index
    %c0_37 = arith.constant 0 : index
    %50 = vector.load %arg15[%c0_35, %c0_36, %c0_37] : memref<8x8x1xf32, #tpu.memory_space<vmem>>, vector<1x8x1xf32>
    %51 = vector.shape_cast %50 : vector<1x8x1xf32> to vector<8x1xf32>
    %52 = vector.shape_cast %25 : vector<8x1xf32> to vector<1x8x1xf32>
    tpu.vector_store %arg15[%c0_35, %c0_36, %c0_37], %52 {strides = array<i32>} : memref<8x8x1xf32, #tpu.memory_space<vmem>>, vector<1x8x1xf32>,
    %53 = vector.extract_strided_slice %7 {offsets = [0, 16], sizes = [8, 16], strides = [1, 1]} : vector<8x128xbf16> to vector<8x16xbf16>
    %54 = vector.extract_strided_slice %15 {offsets = [0, 16], sizes = [8, 16], strides = [1, 1]} : vector<8x128xbf16> to vector<8x16xbf16>
    %c1 = arith.constant 1 : index
    %c0_38 = arith.constant 0 : index
    %c0_39 = arith.constant 0 : index
    %55 = vector.load %arg14[%c1, %c0_38, %c0_39] : memref<8x8x16xbf16, #tpu.memory_space<vmem>>, vector<1x8x16xbf16>
    %56 = vector.shape_cast %55 : vector<1x8x16xbf16> to vector<8x16xbf16>
    %cst_40 = arith.constant dense<0.000000e+00> : vector<8x8xf32>
    %57 = tpu.matmul %56, %53, %cst_40 {dimension_numbers = #tpu.dot_dimension_numbers<[1], [1], [0], [0], [0, 0, 1, 0], [], []>} : vector<8x16xbf16>, vector<8x16xbf16>, vector<8x8xf32> -> vector<8x8xf32>
    %c1_41 = arith.constant 1 : index
    %c0_42 = arith.constant 0 : index
    %c0_43 = arith.constant 0 : index
    %58 = vector.load %arg15[%c1_41, %c0_42, %c0_43] : memref<8x8x1xf32, #tpu.memory_space<vmem>>, vector<1x8x1xf32>
    %59 = vector.shape_cast %58 : vector<1x8x1xf32> to vector<8x1xf32>
    %cst_44 = arith.constant dense<0xFF800000> : vector<8xf32>
    %60 = vector.multi_reduction <maximumf>, %57, %cst_44 [1] : vector<8x8xf32> to vector<8xf32>
    %61 = vector.shape_cast %60 : vector<8xf32> to vector<8x1xf32>
    %62 = arith.maximumf %59, %61 : vector<8x1xf32>
    %63 = arith.subf %59, %62 : vector<8x1xf32>
    %64 = math.exp %63 : vector<8x1xf32>
    %65 = vector.broadcast %62 : vector<8x1xf32> to vector<8x8xf32>
    %66 = arith.subf %57, %65 : vector<8x8xf32>
    %67 = math.exp %66 : vector<8x8xf32>
    %c1_45 = arith.constant 1 : index
    %c0_46 = arith.constant 0 : index
    %c0_47 = arith.constant 0 : index
    %68 = vector.load %arg16[%c1_45, %c0_46, %c0_47] : memref<8x8x1xf32, #tpu.memory_space<vmem>>, vector<1x8x1xf32>
    %69 = vector.shape_cast %68 : vector<1x8x1xf32> to vector<8x1xf32>
    %70 = arith.mulf %64, %69 : vector<8x1xf32>
    %cst_48 = arith.constant dense<0.000000e+00> : vector<8xf32>
    %71 = vector.multi_reduction <add>, %67, %cst_48 [1] : vector<8x8xf32> to vector<8xf32>
    %72 = vector.shape_cast %71 : vector<8xf32> to vector<8x1xf32>
    %73 = arith.addf %70, %72 : vector<8x1xf32>
    %c1_49 = arith.constant 1 : index
    %c0_50 = arith.constant 0 : index
    %c0_51 = arith.constant 0 : index
    %74 = vector.load %arg16[%c1_49, %c0_50, %c0_51] : memref<8x8x1xf32, #tpu.memory_space<vmem>>, vector<1x8x1xf32>
    %75 = vector.shape_cast %74 : vector<1x8x1xf32> to vector<8x1xf32>
    %76 = vector.shape_cast %73 : vector<8x1xf32> to vector<1x8x1xf32>
    tpu.vector_store %arg16[%c1_49, %c0_50, %c0_51], %76 {strides = array<i32>} : memref<8x8x1xf32, #tpu.memory_space<vmem>>, vector<1x8x1xf32>,
    %c1_52 = arith.constant 1 : index
    %c0_53 = arith.constant 0 : index
    %c0_54 = arith.constant 0 : index
    %77 = vector.load %arg17[%c1_52, %c0_53, %c0_54] : memref<8x8x16xf32, #tpu.memory_space<vmem>>, vector<1x8x16xf32>
    %78 = vector.shape_cast %77 : vector<1x8x16xf32> to vector<8x16xf32>
    %79 = vector.broadcast %64 : vector<8x1xf32> to vector<8x16xf32>
    %80 = arith.mulf %79, %78 : vector<8x16xf32>
    %81 = arith.truncf %67 : vector<8x8xf32> to vector<8x8xbf16>
    %cst_55 = arith.constant dense<0.000000e+00> : vector<8x16xf32>
    %82 = tpu.matmul %81, %54, %cst_55 {dimension_numbers = #tpu.dot_dimension_numbers<[1], [0], [0], [1], [0, 0, 1, 1], [], []>} : vector<8x8xbf16>, vector<8x16xbf16>, vector<8x16xf32> -> vector<8x16xf32>
    %83 = arith.addf %80, %82 : vector<8x16xf32>
    %c1_56 = arith.constant 1 : index
    %c0_57 = arith.constant 0 : index
    %c0_58 = arith.constant 0 : index
    %84 = vector.load %arg17[%c1_56, %c0_57, %c0_58] : memref<8x8x16xf32, #tpu.memory_space<vmem>>, vector<1x8x16xf32>
    %85 = vector.shape_cast %84 : vector<1x8x16xf32> to vector<8x16xf32>
    %86 = vector.shape_cast %83 : vector<8x16xf32> to vector<1x8x16xf32>
    tpu.vector_store %arg17[%c1_56, %c0_57, %c0_58], %86 {strides = array<i32>} : memref<8x8x16xf32, #tpu.memory_space<vmem>>, vector<1x8x16xf32>,
    %c1_59 = arith.constant 1 : index
    %c0_60 = arith.constant 0 : index
    %c0_61 = arith.constant 0 : index
    %87 = vector.load %arg15[%c1_59, %c0_60, %c0_61] : memref<8x8x1xf32, #tpu.memory_space<vmem>>, vector<1x8x1xf32>
    %88 = vector.shape_cast %87 : vector<1x8x1xf32> to vector<8x1xf32>
    %89 = vector.shape_cast %62 : vector<8x1xf32> to vector<1x8x1xf32>
    tpu.vector_store %arg15[%c1_59, %c0_60, %c0_61], %89 {strides = array<i32>} : memref<8x8x1xf32, #tpu.memory_space<vmem>>, vector<1x8x1xf32>,
    %90 = vector.extract_strided_slice %7 {offsets = [0, 32], sizes = [8, 16], strides = [1, 1]} : vector<8x128xbf16> to vector<8x16xbf16>
    %91 = vector.extract_strided_slice %15 {offsets = [0, 32], sizes = [8, 16], strides = [1, 1]} : vector<8x128xbf16> to vector<8x16xbf16>
    %c2 = arith.constant 2 : index
    %c0_62 = arith.constant 0 : index
    %c0_63 = arith.constant 0 : index
    %92 = vector.load %arg14[%c2, %c0_62, %c0_63] : memref<8x8x16xbf16, #tpu.memory_space<vmem>>, vector<1x8x16xbf16>
    %93 = vector.shape_cast %92 : vector<1x8x16xbf16> to vector<8x16xbf16>
    %cst_64 = arith.constant dense<0.000000e+00> : vector<8x8xf32>
    %94 = tpu.matmul %93, %90, %cst_64 {dimension_numbers = #tpu.dot_dimension_numbers<[1], [1], [0], [0], [0, 0, 1, 0], [], []>} : vector<8x16xbf16>, vector<8x16xbf16>, vector<8x8xf32> -> vector<8x8xf32>
    %c2_65 = arith.constant 2 : index
    %c0_66 = arith.constant 0 : index
    %c0_67 = arith.constant 0 : index
    %95 = vector.load %arg15[%c2_65, %c0_66, %c0_67] : memref<8x8x1xf32, #tpu.memory_space<vmem>>, vector<1x8x1xf32>
    %96 = vector.shape_cast %95 : vector<1x8x1xf32> to vector<8x1xf32>
    %cst_68 = arith.constant dense<0xFF800000> : vector<8xf32>
    %97 = vector.multi_reduction <maximumf>, %94, %cst_68 [1] : vector<8x8xf32> to vector<8xf32>
    %98 = vector.shape_cast %97 : vector<8xf32> to vector<8x1xf32>
    %99 = arith.maximumf %96, %98 : vector<8x1xf32>
    %100 = arith.subf %96, %99 : vector<8x1xf32>
    %101 = math.exp %100 : vector<8x1xf32>
    %102 = vector.broadcast %99 : vector<8x1xf32> to vector<8x8xf32>
    %103 = arith.subf %94, %102 : vector<8x8xf32>
    %104 = math.exp %103 : vector<8x8xf32>
    %c2_69 = arith.constant 2 : index
    %c0_70 = arith.constant 0 : index
    %c0_71 = arith.constant 0 : index
    %105 = vector.load %arg16[%c2_69, %c0_70, %c0_71] : memref<8x8x1xf32, #tpu.memory_space<vmem>>, vector<1x8x1xf32>
    %106 = vector.shape_cast %105 : vector<1x8x1xf32> to vector<8x1xf32>
    %107 = arith.mulf %101, %106 : vector<8x1xf32>
    %cst_72 = arith.constant dense<0.000000e+00> : vector<8xf32>
    %108 = vector.multi_reduction <add>, %104, %cst_72 [1] : vector<8x8xf32> to vector<8xf32>
    %109 = vector.shape_cast %108 : vector<8xf32> to vector<8x1xf32>
    %110 = arith.addf %107, %109 : vector<8x1xf32>
    %c2_73 = arith.constant 2 : index
    %c0_74 = arith.constant 0 : index
    %c0_75 = arith.constant 0 : index
    %111 = vector.load %arg16[%c2_73, %c0_74, %c0_75] : memref<8x8x1xf32, #tpu.memory_space<vmem>>, vector<1x8x1xf32>
    %112 = vector.shape_cast %111 : vector<1x8x1xf32> to vector<8x1xf32>
    %113 = vector.shape_cast %110 : vector<8x1xf32> to vector<1x8x1xf32>
    tpu.vector_store %arg16[%c2_73, %c0_74, %c0_75], %113 {strides = array<i32>} : memref<8x8x1xf32, #tpu.memory_space<vmem>>, vector<1x8x1xf32>,
    %c2_76 = arith.constant 2 : index
    %c0_77 = arith.constant 0 : index
    %c0_78 = arith.constant 0 : index
    %114 = vector.load %arg17[%c2_76, %c0_77, %c0_78] : memref<8x8x16xf32, #tpu.memory_space<vmem>>, vector<1x8x16xf32>
    %115 = vector.shape_cast %114 : vector<1x8x16xf32> to vector<8x16xf32>
    %116 = vector.broadcast %101 : vector<8x1xf32> to vector<8x16xf32>
    %117 = arith.mulf %116, %115 : vector<8x16xf32>
    %118 = arith.truncf %104 : vector<8x8xf32> to vector<8x8xbf16>
    %cst_79 = arith.constant dense<0.000000e+00> : vector<8x16xf32>
    %119 = tpu.matmul %118, %91, %cst_79 {dimension_numbers = #tpu.dot_dimension_numbers<[1], [0], [0], [1], [0, 0, 1, 1], [], []>} : vector<8x8xbf16>, vector<8x16xbf16>, vector<8x16xf32> -> vector<8x16xf32>
    %120 = arith.addf %117, %119 : vector<8x16xf32>
    %c2_80 = arith.constant 2 : index
    %c0_81 = arith.constant 0 : index
    %c0_82 = arith.constant 0 : index
    %121 = vector.load %arg17[%c2_80, %c0_81, %c0_82] : memref<8x8x16xf32, #tpu.memory_space<vmem>>, vector<1x8x16xf32>
    %122 = vector.shape_cast %121 : vector<1x8x16xf32> to vector<8x16xf32>
    %123 = vector.shape_cast %120 : vector<8x16xf32> to vector<1x8x16xf32>
    tpu.vector_store %arg17[%c2_80, %c0_81, %c0_82], %123 {strides = array<i32>} : memref<8x8x16xf32, #tpu.memory_space<vmem>>, vector<1x8x16xf32>,
    %c2_83 = arith.constant 2 : index
    %c0_84 = arith.constant 0 : index
    %c0_85 = arith.constant 0 : index
    %124 = vector.load %arg15[%c2_83, %c0_84, %c0_85] : memref<8x8x1xf32, #tpu.memory_space<vmem>>, vector<1x8x1xf32>
    %125 = vector.shape_cast %124 : vector<1x8x1xf32> to vector<8x1xf32>
    %126 = vector.shape_cast %99 : vector<8x1xf32> to vector<1x8x1xf32>
    tpu.vector_store %arg15[%c2_83, %c0_84, %c0_85], %126 {strides = array<i32>} : memref<8x8x1xf32, #tpu.memory_space<vmem>>, vector<1x8x1xf32>,
    %127 = vector.extract_strided_slice %7 {offsets = [0, 48], sizes = [8, 16], strides = [1, 1]} : vector<8x128xbf16> to vector<8x16xbf16>
    %128 = vector.extract_strided_slice %15 {offsets = [0, 48], sizes = [8, 16], strides = [1, 1]} : vector<8x128xbf16> to vector<8x16xbf16>
    %c3 = arith.constant 3 : index
    %c0_86 = arith.constant 0 : index
    %c0_87 = arith.constant 0 : index
    %129 = vector.load %arg14[%c3, %c0_86, %c0_87] : memref<8x8x16xbf16, #tpu.memory_space<vmem>>, vector<1x8x16xbf16>
    %130 = vector.shape_cast %129 : vector<1x8x16xbf16> to vector<8x16xbf16>
    %cst_88 = arith.constant dense<0.000000e+00> : vector<8x8xf32>
    %131 = tpu.matmul %130, %127, %cst_88 {dimension_numbers = #tpu.dot_dimension_numbers<[1], [1], [0], [0], [0, 0, 1, 0], [], []>} : vector<8x16xbf16>, vector<8x16xbf16>, vector<8x8xf32> -> vector<8x8xf32>
    %c3_89 = arith.constant 3 : index
    %c0_90 = arith.constant 0 : index
    %c0_91 = arith.constant 0 : index
    %132 = vector.load %arg15[%c3_89, %c0_90, %c0_91] : memref<8x8x1xf32, #tpu.memory_space<vmem>>, vector<1x8x1xf32>
    %133 = vector.shape_cast %132 : vector<1x8x1xf32> to vector<8x1xf32>
    %cst_92 = arith.constant dense<0xFF800000> : vector<8xf32>
    %134 = vector.multi_reduction <maximumf>, %131, %cst_92 [1] : vector<8x8xf32> to vector<8xf32>
    %135 = vector.shape_cast %134 : vector<8xf32> to vector<8x1xf32>
    %136 = arith.maximumf %133, %135 : vector<8x1xf32>
    %137 = arith.subf %133, %136 : vector<8x1xf32>
    %138 = math.exp %137 : vector<8x1xf32>
    %139 = vector.broadcast %136 : vector<8x1xf32> to vector<8x8xf32>
    %140 = arith.subf %131, %139 : vector<8x8xf32>
    %141 = math.exp %140 : vector<8x8xf32>
    %c3_93 = arith.constant 3 : index
    %c0_94 = arith.constant 0 : index
    %c0_95 = arith.constant 0 : index
    %142 = vector.load %arg16[%c3_93, %c0_94, %c0_95] : memref<8x8x1xf32, #tpu.memory_space<vmem>>, vector<1x8x1xf32>
    %143 = vector.shape_cast %142 : vector<1x8x1xf32> to vector<8x1xf32>
    %144 = arith.mulf %138, %143 : vector<8x1xf32>
    %cst_96 = arith.constant dense<0.000000e+00> : vector<8xf32>
    %145 = vector.multi_reduction <add>, %141, %cst_96 [1] : vector<8x8xf32> to vector<8xf32>
    %146 = vector.shape_cast %145 : vector<8xf32> to vector<8x1xf32>
    %147 = arith.addf %144, %146 : vector<8x1xf32>
    %c3_97 = arith.constant 3 : index
    %c0_98 = arith.constant 0 : index
    %c0_99 = arith.constant 0 : index
    %148 = vector.load %arg16[%c3_97, %c0_98, %c0_99] : memref<8x8x1xf32, #tpu.memory_space<vmem>>, vector<1x8x1xf32>
    %149 = vector.shape_cast %148 : vector<1x8x1xf32> to vector<8x1xf32>
    %150 = vector.shape_cast %147 : vector<8x1xf32> to vector<1x8x1xf32>
    tpu.vector_store %arg16[%c3_97, %c0_98, %c0_99], %150 {strides = array<i32>} : memref<8x8x1xf32, #tpu.memory_space<vmem>>, vector<1x8x1xf32>,
    %c3_100 = arith.constant 3 : index
    %c0_101 = arith.constant 0 : index
    %c0_102 = arith.constant 0 : index
    %151 = vector.load %arg17[%c3_100, %c0_101, %c0_102] : memref<8x8x16xf32, #tpu.memory_space<vmem>>, vector<1x8x16xf32>
    %152 = vector.shape_cast %151 : vector<1x8x16xf32> to vector<8x16xf32>
    %153 = vector.broadcast %138 : vector<8x1xf32> to vector<8x16xf32>
    %154 = arith.mulf %153, %152 : vector<8x16xf32>
    %155 = arith.truncf %141 : vector<8x8xf32> to vector<8x8xbf16>
    %cst_103 = arith.constant dense<0.000000e+00> : vector<8x16xf32>
    %156 = tpu.matmul %155, %128, %cst_103 {dimension_numbers = #tpu.dot_dimension_numbers<[1], [0], [0], [1], [0, 0, 1, 1], [], []>} : vector<8x8xbf16>, vector<8x16xbf16>, vector<8x16xf32> -> vector<8x16xf32>
    %157 = arith.addf %154, %156 : vector<8x16xf32>
    %c3_104 = arith.constant 3 : index
    %c0_105 = arith.constant 0 : index
    %c0_106 = arith.constant 0 : index
    %158 = vector.load %arg17[%c3_104, %c0_105, %c0_106] : memref<8x8x16xf32, #tpu.memory_space<vmem>>, vector<1x8x16xf32>
    %159 = vector.shape_cast %158 : vector<1x8x16xf32> to vector<8x16xf32>
    %160 = vector.shape_cast %157 : vector<8x16xf32> to vector<1x8x16xf32>
    tpu.vector_store %arg17[%c3_104, %c0_105, %c0_106], %160 {strides = array<i32>} : memref<8x8x16xf32, #tpu.memory_space<vmem>>, vector<1x8x16xf32>,
    %c3_107 = arith.constant 3 : index
    %c0_108 = arith.constant 0 : index
    %c0_109 = arith.constant 0 : index
    %161 = vector.load %arg15[%c3_107, %c0_108, %c0_109] : memref<8x8x1xf32, #tpu.memory_space<vmem>>, vector<1x8x1xf32>
    %162 = vector.shape_cast %161 : vector<1x8x1xf32> to vector<8x1xf32>
    %163 = vector.shape_cast %136 : vector<8x1xf32> to vector<1x8x1xf32>
    tpu.vector_store %arg15[%c3_107, %c0_108, %c0_109], %163 {strides = array<i32>} : memref<8x8x1xf32, #tpu.memory_space<vmem>>, vector<1x8x1xf32>,
    %164 = vector.extract_strided_slice %7 {offsets = [0, 64], sizes = [8, 16], strides = [1, 1]} : vector<8x128xbf16> to vector<8x16xbf16>
    %165 = vector.extract_strided_slice %15 {offsets = [0, 64], sizes = [8, 16], strides = [1, 1]} : vector<8x128xbf16> to vector<8x16xbf16>
    %c4 = arith.constant 4 : index
    %c0_110 = arith.constant 0 : index
    %c0_111 = arith.constant 0 : index
    %166 = vector.load %arg14[%c4, %c0_110, %c0_111] : memref<8x8x16xbf16, #tpu.memory_space<vmem>>, vector<1x8x16xbf16>
    %167 = vector.shape_cast %166 : vector<1x8x16xbf16> to vector<8x16xbf16>
    %cst_112 = arith.constant dense<0.000000e+00> : vector<8x8xf32>
    %168 = tpu.matmul %167, %164, %cst_112 {dimension_numbers = #tpu.dot_dimension_numbers<[1], [1], [0], [0], [0, 0, 1, 0], [], []>} : vector<8x16xbf16>, vector<8x16xbf16>, vector<8x8xf32> -> vector<8x8xf32>
    %c4_113 = arith.constant 4 : index
    %c0_114 = arith.constant 0 : index
    %c0_115 = arith.constant 0 : index
    %169 = vector.load %arg15[%c4_113, %c0_114, %c0_115] : memref<8x8x1xf32, #tpu.memory_space<vmem>>, vector<1x8x1xf32>
    %170 = vector.shape_cast %169 : vector<1x8x1xf32> to vector<8x1xf32>
    %cst_116 = arith.constant dense<0xFF800000> : vector<8xf32>
    %171 = vector.multi_reduction <maximumf>, %168, %cst_116 [1] : vector<8x8xf32> to vector<8xf32>
    %172 = vector.shape_cast %171 : vector<8xf32> to vector<8x1xf32>
    %173 = arith.maximumf %170, %172 : vector<8x1xf32>
    %174 = arith.subf %170, %173 : vector<8x1xf32>
    %175 = math.exp %174 : vector<8x1xf32>
    %176 = vector.broadcast %173 : vector<8x1xf32> to vector<8x8xf32>
    %177 = arith.subf %168, %176 : vector<8x8xf32>
    %178 = math.exp %177 : vector<8x8xf32>
    %c4_117 = arith.constant 4 : index
    %c0_118 = arith.constant 0 : index
    %c0_119 = arith.constant 0 : index
    %179 = vector.load %arg16[%c4_117, %c0_118, %c0_119] : memref<8x8x1xf32, #tpu.memory_space<vmem>>, vector<1x8x1xf32>
    %180 = vector.shape_cast %179 : vector<1x8x1xf32> to vector<8x1xf32>
    %181 = arith.mulf %175, %180 : vector<8x1xf32>
    %cst_120 = arith.constant dense<0.000000e+00> : vector<8xf32>
    %182 = vector.multi_reduction <add>, %178, %cst_120 [1] : vector<8x8xf32> to vector<8xf32>
    %183 = vector.shape_cast %182 : vector<8xf32> to vector<8x1xf32>
    %184 = arith.addf %181, %183 : vector<8x1xf32>
    %c4_121 = arith.constant 4 : index
    %c0_122 = arith.constant 0 : index
    %c0_123 = arith.constant 0 : index
    %185 = vector.load %arg16[%c4_121, %c0_122, %c0_123] : memref<8x8x1xf32, #tpu.memory_space<vmem>>, vector<1x8x1xf32>
    %186 = vector.shape_cast %185 : vector<1x8x1xf32> to vector<8x1xf32>
    %187 = vector.shape_cast %184 : vector<8x1xf32> to vector<1x8x1xf32>
    tpu.vector_store %arg16[%c4_121, %c0_122, %c0_123], %187 {strides = array<i32>} : memref<8x8x1xf32, #tpu.memory_space<vmem>>, vector<1x8x1xf32>,
    %c4_124 = arith.constant 4 : index
    %c0_125 = arith.constant 0 : index
    %c0_126 = arith.constant 0 : index
    %188 = vector.load %arg17[%c4_124, %c0_125, %c0_126] : memref<8x8x16xf32, #tpu.memory_space<vmem>>, vector<1x8x16xf32>
    %189 = vector.shape_cast %188 : vector<1x8x16xf32> to vector<8x16xf32>
    %190 = vector.broadcast %175 : vector<8x1xf32> to vector<8x16xf32>
    %191 = arith.mulf %190, %189 : vector<8x16xf32>
    %192 = arith.truncf %178 : vector<8x8xf32> to vector<8x8xbf16>
    %cst_127 = arith.constant dense<0.000000e+00> : vector<8x16xf32>
    %193 = tpu.matmul %192, %165, %cst_127 {dimension_numbers = #tpu.dot_dimension_numbers<[1], [0], [0], [1], [0, 0, 1, 1], [], []>} : vector<8x8xbf16>, vector<8x16xbf16>, vector<8x16xf32> -> vector<8x16xf32>
    %194 = arith.addf %191, %193 : vector<8x16xf32>
    %c4_128 = arith.constant 4 : index
    %c0_129 = arith.constant 0 : index
    %c0_130 = arith.constant 0 : index
    %195 = vector.load %arg17[%c4_128, %c0_129, %c0_130] : memref<8x8x16xf32, #tpu.memory_space<vmem>>, vector<1x8x16xf32>
    %196 = vector.shape_cast %195 : vector<1x8x16xf32> to vector<8x16xf32>
    %197 = vector.shape_cast %194 : vector<8x16xf32> to vector<1x8x16xf32>
    tpu.vector_store %arg17[%c4_128, %c0_129, %c0_130], %197 {strides = array<i32>} : memref<8x8x16xf32, #tpu.memory_space<vmem>>, vector<1x8x16xf32>,
    %c4_131 = arith.constant 4 : index
    %c0_132 = arith.constant 0 : index
    %c0_133 = arith.constant 0 : index
    %198 = vector.load %arg15[%c4_131, %c0_132, %c0_133] : memref<8x8x1xf32, #tpu.memory_space<vmem>>, vector<1x8x1xf32>
    %199 = vector.shape_cast %198 : vector<1x8x1xf32> to vector<8x1xf32>
    %200 = vector.shape_cast %173 : vector<8x1xf32> to vector<1x8x1xf32>
    tpu.vector_store %arg15[%c4_131, %c0_132, %c0_133], %200 {strides = array<i32>} : memref<8x8x1xf32, #tpu.memory_space<vmem>>, vector<1x8x1xf32>,
    %201 = vector.extract_strided_slice %7 {offsets = [0, 80], sizes = [8, 16], strides = [1, 1]} : vector<8x128xbf16> to vector<8x16xbf16>
    %202 = vector.extract_strided_slice %15 {offsets = [0, 80], sizes = [8, 16], strides = [1, 1]} : vector<8x128xbf16> to vector<8x16xbf16>
    %c5 = arith.constant 5 : index
    %c0_134 = arith.constant 0 : index
    %c0_135 = arith.constant 0 : index
    %203 = vector.load %arg14[%c5, %c0_134, %c0_135] : memref<8x8x16xbf16, #tpu.memory_space<vmem>>, vector<1x8x16xbf16>
    %204 = vector.shape_cast %203 : vector<1x8x16xbf16> to vector<8x16xbf16>
    %cst_136 = arith.constant dense<0.000000e+00> : vector<8x8xf32>
    %205 = tpu.matmul %204, %201, %cst_136 {dimension_numbers = #tpu.dot_dimension_numbers<[1], [1], [0], [0], [0, 0, 1, 0], [], []>} : vector<8x16xbf16>, vector<8x16xbf16>, vector<8x8xf32> -> vector<8x8xf32>
    %c5_137 = arith.constant 5 : index
    %c0_138 = arith.constant 0 : index
    %c0_139 = arith.constant 0 : index
    %206 = vector.load %arg15[%c5_137, %c0_138, %c0_139] : memref<8x8x1xf32, #tpu.memory_space<vmem>>, vector<1x8x1xf32>
    %207 = vector.shape_cast %206 : vector<1x8x1xf32> to vector<8x1xf32>
    %cst_140 = arith.constant dense<0xFF800000> : vector<8xf32>
    %208 = vector.multi_reduction <maximumf>, %205, %cst_140 [1] : vector<8x8xf32> to vector<8xf32>
    %209 = vector.shape_cast %208 : vector<8xf32> to vector<8x1xf32>
    %210 = arith.maximumf %207, %209 : vector<8x1xf32>
    %211 = arith.subf %207, %210 : vector<8x1xf32>
    %212 = math.exp %211 : vector<8x1xf32>
    %213 = vector.broadcast %210 : vector<8x1xf32> to vector<8x8xf32>
    %214 = arith.subf %205, %213 : vector<8x8xf32>
    %215 = math.exp %214 : vector<8x8xf32>
    %c5_141 = arith.constant 5 : index
    %c0_142 = arith.constant 0 : index
    %c0_143 = arith.constant 0 : index
    %216 = vector.load %arg16[%c5_141, %c0_142, %c0_143] : memref<8x8x1xf32, #tpu.memory_space<vmem>>, vector<1x8x1xf32>
    %217 = vector.shape_cast %216 : vector<1x8x1xf32> to vector<8x1xf32>
    %218 = arith.mulf %212, %217 : vector<8x1xf32>
    %cst_144 = arith.constant dense<0.000000e+00> : vector<8xf32>
    %219 = vector.multi_reduction <add>, %215, %cst_144 [1] : vector<8x8xf32> to vector<8xf32>
    %220 = vector.shape_cast %219 : vector<8xf32> to vector<8x1xf32>
    %221 = arith.addf %218, %220 : vector<8x1xf32>
    %c5_145 = arith.constant 5 : index
    %c0_146 = arith.constant 0 : index
    %c0_147 = arith.constant 0 : index
    %222 = vector.load %arg16[%c5_145, %c0_146, %c0_147] : memref<8x8x1xf32, #tpu.memory_space<vmem>>, vector<1x8x1xf32>
    %223 = vector.shape_cast %222 : vector<1x8x1xf32> to vector<8x1xf32>
    %224 = vector.shape_cast %221 : vector<8x1xf32> to vector<1x8x1xf32>
    tpu.vector_store %arg16[%c5_145, %c0_146, %c0_147], %224 {strides = array<i32>} : memref<8x8x1xf32, #tpu.memory_space<vmem>>, vector<1x8x1xf32>,
    %c5_148 = arith.constant 5 : index
    %c0_149 = arith.constant 0 : index
    %c0_150 = arith.constant 0 : index
    %225 = vector.load %arg17[%c5_148, %c0_149, %c0_150] : memref<8x8x16xf32, #tpu.memory_space<vmem>>, vector<1x8x16xf32>
    %226 = vector.shape_cast %225 : vector<1x8x16xf32> to vector<8x16xf32>
    %227 = vector.broadcast %212 : vector<8x1xf32> to vector<8x16xf32>
    %228 = arith.mulf %227, %226 : vector<8x16xf32>
    %229 = arith.truncf %215 : vector<8x8xf32> to vector<8x8xbf16>
    %cst_151 = arith.constant dense<0.000000e+00> : vector<8x16xf32>
    %230 = tpu.matmul %229, %202, %cst_151 {dimension_numbers = #tpu.dot_dimension_numbers<[1], [0], [0], [1], [0, 0, 1, 1], [], []>} : vector<8x8xbf16>, vector<8x16xbf16>, vector<8x16xf32> -> vector<8x16xf32>
    %231 = arith.addf %228, %230 : vector<8x16xf32>
    %c5_152 = arith.constant 5 : index
    %c0_153 = arith.constant 0 : index
    %c0_154 = arith.constant 0 : index
    %232 = vector.load %arg17[%c5_152, %c0_153, %c0_154] : memref<8x8x16xf32, #tpu.memory_space<vmem>>, vector<1x8x16xf32>
    %233 = vector.shape_cast %232 : vector<1x8x16xf32> to vector<8x16xf32>
    %234 = vector.shape_cast %231 : vector<8x16xf32> to vector<1x8x16xf32>
    tpu.vector_store %arg17[%c5_152, %c0_153, %c0_154], %234 {strides = array<i32>} : memref<8x8x16xf32, #tpu.memory_space<vmem>>, vector<1x8x16xf32>,
    %c5_155 = arith.constant 5 : index
    %c0_156 = arith.constant 0 : index
    %c0_157 = arith.constant 0 : index
    %235 = vector.load %arg15[%c5_155, %c0_156, %c0_157] : memref<8x8x1xf32, #tpu.memory_space<vmem>>, vector<1x8x1xf32>
    %236 = vector.shape_cast %235 : vector<1x8x1xf32> to vector<8x1xf32>
    %237 = vector.shape_cast %210 : vector<8x1xf32> to vector<1x8x1xf32>
    tpu.vector_store %arg15[%c5_155, %c0_156, %c0_157], %237 {strides = array<i32>} : memref<8x8x1xf32, #tpu.memory_space<vmem>>, vector<1x8x1xf32>,
    %238 = vector.extract_strided_slice %7 {offsets = [0, 96], sizes = [8, 16], strides = [1, 1]} : vector<8x128xbf16> to vector<8x16xbf16>
    %239 = vector.extract_strided_slice %15 {offsets = [0, 96], sizes = [8, 16], strides = [1, 1]} : vector<8x128xbf16> to vector<8x16xbf16>
    %c6 = arith.constant 6 : index
    %c0_158 = arith.constant 0 : index
    %c0_159 = arith.constant 0 : index
    %240 = vector.load %arg14[%c6, %c0_158, %c0_159] : memref<8x8x16xbf16, #tpu.memory_space<vmem>>, vector<1x8x16xbf16>
    %241 = vector.shape_cast %240 : vector<1x8x16xbf16> to vector<8x16xbf16>
    %cst_160 = arith.constant dense<0.000000e+00> : vector<8x8xf32>
    %242 = tpu.matmul %241, %238, %cst_160 {dimension_numbers = #tpu.dot_dimension_numbers<[1], [1], [0], [0], [0, 0, 1, 0], [], []>} : vector<8x16xbf16>, vector<8x16xbf16>, vector<8x8xf32> -> vector<8x8xf32>
    %c6_161 = arith.constant 6 : index
    %c0_162 = arith.constant 0 : index
    %c0_163 = arith.constant 0 : index
    %243 = vector.load %arg15[%c6_161, %c0_162, %c0_163] : memref<8x8x1xf32, #tpu.memory_space<vmem>>, vector<1x8x1xf32>
    %244 = vector.shape_cast %243 : vector<1x8x1xf32> to vector<8x1xf32>
    %cst_164 = arith.constant dense<0xFF800000> : vector<8xf32>
    %245 = vector.multi_reduction <maximumf>, %242, %cst_164 [1] : vector<8x8xf32> to vector<8xf32>
    %246 = vector.shape_cast %245 : vector<8xf32> to vector<8x1xf32>
    %247 = arith.maximumf %244, %246 : vector<8x1xf32>
    %248 = arith.subf %244, %247 : vector<8x1xf32>
    %249 = math.exp %248 : vector<8x1xf32>
    %250 = vector.broadcast %247 : vector<8x1xf32> to vector<8x8xf32>
    %251 = arith.subf %242, %250 : vector<8x8xf32>
    %252 = math.exp %251 : vector<8x8xf32>
    %c6_165 = arith.constant 6 : index
    %c0_166 = arith.constant 0 : index
    %c0_167 = arith.constant 0 : index
    %253 = vector.load %arg16[%c6_165, %c0_166, %c0_167] : memref<8x8x1xf32, #tpu.memory_space<vmem>>, vector<1x8x1xf32>
    %254 = vector.shape_cast %253 : vector<1x8x1xf32> to vector<8x1xf32>
    %255 = arith.mulf %249, %254 : vector<8x1xf32>
    %cst_168 = arith.constant dense<0.000000e+00> : vector<8xf32>
    %256 = vector.multi_reduction <add>, %252, %cst_168 [1] : vector<8x8xf32> to vector<8xf32>
    %257 = vector.shape_cast %256 : vector<8xf32> to vector<8x1xf32>
    %258 = arith.addf %255, %257 : vector<8x1xf32>
    %c6_169 = arith.constant 6 : index
    %c0_170 = arith.constant 0 : index
    %c0_171 = arith.constant 0 : index
    %259 = vector.load %arg16[%c6_169, %c0_170, %c0_171] : memref<8x8x1xf32, #tpu.memory_space<vmem>>, vector<1x8x1xf32>
    %260 = vector.shape_cast %259 : vector<1x8x1xf32> to vector<8x1xf32>
    %261 = vector.shape_cast %258 : vector<8x1xf32> to vector<1x8x1xf32>
    tpu.vector_store %arg16[%c6_169, %c0_170, %c0_171], %261 {strides = array<i32>} : memref<8x8x1xf32, #tpu.memory_space<vmem>>, vector<1x8x1xf32>,
    %c6_172 = arith.constant 6 : index
    %c0_173 = arith.constant 0 : index
    %c0_174 = arith.constant 0 : index
    %262 = vector.load %arg17[%c6_172, %c0_173, %c0_174] : memref<8x8x16xf32, #tpu.memory_space<vmem>>, vector<1x8x16xf32>
    %263 = vector.shape_cast %262 : vector<1x8x16xf32> to vector<8x16xf32>
    %264 = vector.broadcast %249 : vector<8x1xf32> to vector<8x16xf32>
    %265 = arith.mulf %264, %263 : vector<8x16xf32>
    %266 = arith.truncf %252 : vector<8x8xf32> to vector<8x8xbf16>
    %cst_175 = arith.constant dense<0.000000e+00> : vector<8x16xf32>
    %267 = tpu.matmul %266, %239, %cst_175 {dimension_numbers = #tpu.dot_dimension_numbers<[1], [0], [0], [1], [0, 0, 1, 1], [], []>} : vector<8x8xbf16>, vector<8x16xbf16>, vector<8x16xf32> -> vector<8x16xf32>
    %268 = arith.addf %265, %267 : vector<8x16xf32>
    %c6_176 = arith.constant 6 : index
    %c0_177 = arith.constant 0 : index
    %c0_178 = arith.constant 0 : index
    %269 = vector.load %arg17[%c6_176, %c0_177, %c0_178] : memref<8x8x16xf32, #tpu.memory_space<vmem>>, vector<1x8x16xf32>
    %270 = vector.shape_cast %269 : vector<1x8x16xf32> to vector<8x16xf32>
    %271 = vector.shape_cast %268 : vector<8x16xf32> to vector<1x8x16xf32>
    tpu.vector_store %arg17[%c6_176, %c0_177, %c0_178], %271 {strides = array<i32>} : memref<8x8x16xf32, #tpu.memory_space<vmem>>, vector<1x8x16xf32>,
    %c6_179 = arith.constant 6 : index
    %c0_180 = arith.constant 0 : index
    %c0_181 = arith.constant 0 : index
    %272 = vector.load %arg15[%c6_179, %c0_180, %c0_181] : memref<8x8x1xf32, #tpu.memory_space<vmem>>, vector<1x8x1xf32>
    %273 = vector.shape_cast %272 : vector<1x8x1xf32> to vector<8x1xf32>
    %274 = vector.shape_cast %247 : vector<8x1xf32> to vector<1x8x1xf32>
    tpu.vector_store %arg15[%c6_179, %c0_180, %c0_181], %274 {strides = array<i32>} : memref<8x8x1xf32, #tpu.memory_space<vmem>>, vector<1x8x1xf32>,
    %275 = vector.extract_strided_slice %7 {offsets = [0, 112], sizes = [8, 16], strides = [1, 1]} : vector<8x128xbf16> to vector<8x16xbf16>
    %276 = vector.extract_strided_slice %15 {offsets = [0, 112], sizes = [8, 16], strides = [1, 1]} : vector<8x128xbf16> to vector<8x16xbf16>
    %c7 = arith.constant 7 : index
    %c0_182 = arith.constant 0 : index
    %c0_183 = arith.constant 0 : index
    %277 = vector.load %arg14[%c7, %c0_182, %c0_183] : memref<8x8x16xbf16, #tpu.memory_space<vmem>>, vector<1x8x16xbf16>
    %278 = vector.shape_cast %277 : vector<1x8x16xbf16> to vector<8x16xbf16>
    %cst_184 = arith.constant dense<0.000000e+00> : vector<8x8xf32>
    %279 = tpu.matmul %278, %275, %cst_184 {dimension_numbers = #tpu.dot_dimension_numbers<[1], [1], [0], [0], [0, 0, 1, 0], [], []>} : vector<8x16xbf16>, vector<8x16xbf16>, vector<8x8xf32> -> vector<8x8xf32>
    %c7_185 = arith.constant 7 : index
    %c0_186 = arith.constant 0 : index
    %c0_187 = arith.constant 0 : index
    %280 = vector.load %arg15[%c7_185, %c0_186, %c0_187] : memref<8x8x1xf32, #tpu.memory_space<vmem>>, vector<1x8x1xf32>
    %281 = vector.shape_cast %280 : vector<1x8x1xf32> to vector<8x1xf32>
    %cst_188 = arith.constant dense<0xFF800000> : vector<8xf32>
    %282 = vector.multi_reduction <maximumf>, %279, %cst_188 [1] : vector<8x8xf32> to vector<8xf32>
    %283 = vector.shape_cast %282 : vector<8xf32> to vector<8x1xf32>
    %284 = arith.maximumf %281, %283 : vector<8x1xf32>
    %285 = arith.subf %281, %284 : vector<8x1xf32>
    %286 = math.exp %285 : vector<8x1xf32>
    %287 = vector.broadcast %284 : vector<8x1xf32> to vector<8x8xf32>
    %288 = arith.subf %279, %287 : vector<8x8xf32>
    %289 = math.exp %288 : vector<8x8xf32>
    %c7_189 = arith.constant 7 : index
    %c0_190 = arith.constant 0 : index
    %c0_191 = arith.constant 0 : index
    %290 = vector.load %arg16[%c7_189, %c0_190, %c0_191] : memref<8x8x1xf32, #tpu.memory_space<vmem>>, vector<1x8x1xf32>
    %291 = vector.shape_cast %290 : vector<1x8x1xf32> to vector<8x1xf32>
    %292 = arith.mulf %286, %291 : vector<8x1xf32>
    %cst_192 = arith.constant dense<0.000000e+00> : vector<8xf32>
    %293 = vector.multi_reduction <add>, %289, %cst_192 [1] : vector<8x8xf32> to vector<8xf32>
    %294 = vector.shape_cast %293 : vector<8xf32> to vector<8x1xf32>
    %295 = arith.addf %292, %294 : vector<8x1xf32>
    %c7_193 = arith.constant 7 : index
    %c0_194 = arith.constant 0 : index
    %c0_195 = arith.constant 0 : index
    %296 = vector.load %arg16[%c7_193, %c0_194, %c0_195] : memref<8x8x1xf32, #tpu.memory_space<vmem>>, vector<1x8x1xf32>
    %297 = vector.shape_cast %296 : vector<1x8x1xf32> to vector<8x1xf32>
    %298 = vector.shape_cast %295 : vector<8x1xf32> to vector<1x8x1xf32>
    tpu.vector_store %arg16[%c7_193, %c0_194, %c0_195], %298 {strides = array<i32>} : memref<8x8x1xf32, #tpu.memory_space<vmem>>, vector<1x8x1xf32>,
    %c7_196 = arith.constant 7 : index
    %c0_197 = arith.constant 0 : index
    %c0_198 = arith.constant 0 : index
    %299 = vector.load %arg17[%c7_196, %c0_197, %c0_198] : memref<8x8x16xf32, #tpu.memory_space<vmem>>, vector<1x8x16xf32>
    %300 = vector.shape_cast %299 : vector<1x8x16xf32> to vector<8x16xf32>
    %301 = vector.broadcast %286 : vector<8x1xf32> to vector<8x16xf32>
    %302 = arith.mulf %301, %300 : vector<8x16xf32>
    %303 = arith.truncf %289 : vector<8x8xf32> to vector<8x8xbf16>
    %cst_199 = arith.constant dense<0.000000e+00> : vector<8x16xf32>
    %304 = tpu.matmul %303, %276, %cst_199 {dimension_numbers = #tpu.dot_dimension_numbers<[1], [0], [0], [1], [0, 0, 1, 1], [], []>} : vector<8x8xbf16>, vector<8x16xbf16>, vector<8x16xf32> -> vector<8x16xf32>
    %305 = arith.addf %302, %304 : vector<8x16xf32>
    %c7_200 = arith.constant 7 : index
    %c0_201 = arith.constant 0 : index
    %c0_202 = arith.constant 0 : index
    %306 = vector.load %arg17[%c7_200, %c0_201, %c0_202] : memref<8x8x16xf32, #tpu.memory_space<vmem>>, vector<1x8x16xf32>
    %307 = vector.shape_cast %306 : vector<1x8x16xf32> to vector<8x16xf32>
    %308 = vector.shape_cast %305 : vector<8x16xf32> to vector<1x8x16xf32>
    tpu.vector_store %arg17[%c7_200, %c0_201, %c0_202], %308 {strides = array<i32>} : memref<8x8x16xf32, #tpu.memory_space<vmem>>, vector<1x8x16xf32>,
    %c7_203 = arith.constant 7 : index
    %c0_204 = arith.constant 0 : index
    %c0_205 = arith.constant 0 : index
    %309 = vector.load %arg15[%c7_203, %c0_204, %c0_205] : memref<8x8x1xf32, #tpu.memory_space<vmem>>, vector<1x8x1xf32>
    %310 = vector.shape_cast %309 : vector<1x8x1xf32> to vector<8x1xf32>
    %311 = vector.shape_cast %284 : vector<8x1xf32> to vector<1x8x1xf32>
    tpu.vector_store %arg15[%c7_203, %c0_204, %c0_205], %311 {strides = array<i32>} : memref<8x8x1xf32, #tpu.memory_space<vmem>>, vector<1x8x1xf32>,
    %c0_i32_206 = arith.constant 0 : i32
    %312 = arith.cmpi eq, %arg2, %c0_i32_206 : i32
    %313 = arith.extui %312 : i1 to i32
    %c0_i32_207 = arith.constant 0 : i32
    %314 = arith.cmpi ne, %313, %c0_i32_207 : i32
    scf.if %314 {
      %c0_208 = arith.constant 0 : index
      %c0_209 = arith.constant 0 : index
      %c0_210 = arith.constant 0 : index
      %315 = vector.load %arg16[%c0_208, %c0_209, %c0_210] : memref<8x8x1xf32, #tpu.memory_space<vmem>>, vector<1x8x1xf32>
      %316 = vector.shape_cast %315 : vector<1x8x1xf32> to vector<8x1xf32>
      %317 = tpu.reciprocal %316 {approx = true} : vector<8x1xf32> -> vector<8x1xf32>
      %c0_211 = arith.constant 0 : index
      %c0_212 = arith.constant 0 : index
      %c0_213 = arith.constant 0 : index
      %318 = vector.load %arg17[%c0_211, %c0_212, %c0_213] : memref<8x8x16xf32, #tpu.memory_space<vmem>>, vector<1x8x16xf32>
      %319 = vector.shape_cast %318 : vector<1x8x16xf32> to vector<8x16xf32>
      %320 = vector.broadcast %317 : vector<8x1xf32> to vector<8x16xf32>
      %321 = arith.mulf %319, %320 : vector<8x16xf32>
      %322 = arith.truncf %321 : vector<8x16xf32> to vector<8x16xbf16>
      %c0_214 = arith.constant 0 : index
      %c0_215 = arith.constant 0 : index
      %323 = vector.load %arg18[%c0_214, %c0_215] : memref<8x128xbf16, #tpu.memory_space<vmem>>, vector<8x16xbf16>
      tpu.vector_store %arg18[%c0_214, %c0_215], %322 {strides = array<i32>} : memref<8x128xbf16, #tpu.memory_space<vmem>>, vector<8x16xbf16>,
      %c1_216 = arith.constant 1 : index
      %c0_217 = arith.constant 0 : index
      %c0_218 = arith.constant 0 : index
      %324 = vector.load %arg16[%c1_216, %c0_217, %c0_218] : memref<8x8x1xf32, #tpu.memory_space<vmem>>, vector<1x8x1xf32>
      %325 = vector.shape_cast %324 : vector<1x8x1xf32> to vector<8x1xf32>
      %326 = tpu.reciprocal %325 {approx = true} : vector<8x1xf32> -> vector<8x1xf32>
      %c1_219 = arith.constant 1 : index
      %c0_220 = arith.constant 0 : index
      %c0_221 = arith.constant 0 : index
      %327 = vector.load %arg17[%c1_219, %c0_220, %c0_221] : memref<8x8x16xf32, #tpu.memory_space<vmem>>, vector<1x8x16xf32>
      %328 = vector.shape_cast %327 : vector<1x8x16xf32> to vector<8x16xf32>
      %329 = vector.broadcast %326 : vector<8x1xf32> to vector<8x16xf32>
      %330 = arith.mulf %328, %329 : vector<8x16xf32>
      %331 = arith.truncf %330 : vector<8x16xf32> to vector<8x16xbf16>
      %c0_222 = arith.constant 0 : index
      %c16 = arith.constant 16 : index
      %332 = vector.load %arg18[%c0_222, %c16] : memref<8x128xbf16, #tpu.memory_space<vmem>>, vector<8x16xbf16>
      tpu.vector_store %arg18[%c0_222, %c16], %331 {strides = array<i32>} : memref<8x128xbf16, #tpu.memory_space<vmem>>, vector<8x16xbf16>,
      %c2_223 = arith.constant 2 : index
      %c0_224 = arith.constant 0 : index
      %c0_225 = arith.constant 0 : index
      %333 = vector.load %arg16[%c2_223, %c0_224, %c0_225] : memref<8x8x1xf32, #tpu.memory_space<vmem>>, vector<1x8x1xf32>
      %334 = vector.shape_cast %333 : vector<1x8x1xf32> to vector<8x1xf32>
      %335 = tpu.reciprocal %334 {approx = true} : vector<8x1xf32> -> vector<8x1xf32>
      %c2_226 = arith.constant 2 : index
      %c0_227 = arith.constant 0 : index
      %c0_228 = arith.constant 0 : index
      %336 = vector.load %arg17[%c2_226, %c0_227, %c0_228] : memref<8x8x16xf32, #tpu.memory_space<vmem>>, vector<1x8x16xf32>
      %337 = vector.shape_cast %336 : vector<1x8x16xf32> to vector<8x16xf32>
      %338 = vector.broadcast %335 : vector<8x1xf32> to vector<8x16xf32>
      %339 = arith.mulf %337, %338 : vector<8x16xf32>
      %340 = arith.truncf %339 : vector<8x16xf32> to vector<8x16xbf16>
      %c0_229 = arith.constant 0 : index
      %c32 = arith.constant 32 : index
      %341 = vector.load %arg18[%c0_229, %c32] : memref<8x128xbf16, #tpu.memory_space<vmem>>, vector<8x16xbf16>
      tpu.vector_store %arg18[%c0_229, %c32], %340 {strides = array<i32>} : memref<8x128xbf16, #tpu.memory_space<vmem>>, vector<8x16xbf16>,
      %c3_230 = arith.constant 3 : index
      %c0_231 = arith.constant 0 : index
      %c0_232 = arith.constant 0 : index
      %342 = vector.load %arg16[%c3_230, %c0_231, %c0_232] : memref<8x8x1xf32, #tpu.memory_space<vmem>>, vector<1x8x1xf32>
      %343 = vector.shape_cast %342 : vector<1x8x1xf32> to vector<8x1xf32>
      %344 = tpu.reciprocal %343 {approx = true} : vector<8x1xf32> -> vector<8x1xf32>
      %c3_233 = arith.constant 3 : index
      %c0_234 = arith.constant 0 : index
      %c0_235 = arith.constant 0 : index
      %345 = vector.load %arg17[%c3_233, %c0_234, %c0_235] : memref<8x8x16xf32, #tpu.memory_space<vmem>>, vector<1x8x16xf32>
      %346 = vector.shape_cast %345 : vector<1x8x16xf32> to vector<8x16xf32>
      %347 = vector.broadcast %344 : vector<8x1xf32> to vector<8x16xf32>
      %348 = arith.mulf %346, %347 : vector<8x16xf32>
      %349 = arith.truncf %348 : vector<8x16xf32> to vector<8x16xbf16>
      %c0_236 = arith.constant 0 : index
      %c48 = arith.constant 48 : index
      %350 = vector.load %arg18[%c0_236, %c48] : memref<8x128xbf16, #tpu.memory_space<vmem>>, vector<8x16xbf16>
      tpu.vector_store %arg18[%c0_236, %c48], %349 {strides = array<i32>} : memref<8x128xbf16, #tpu.memory_space<vmem>>, vector<8x16xbf16>,
      %c4_237 = arith.constant 4 : index
      %c0_238 = arith.constant 0 : index
      %c0_239 = arith.constant 0 : index
      %351 = vector.load %arg16[%c4_237, %c0_238, %c0_239] : memref<8x8x1xf32, #tpu.memory_space<vmem>>, vector<1x8x1xf32>
      %352 = vector.shape_cast %351 : vector<1x8x1xf32> to vector<8x1xf32>
      %353 = tpu.reciprocal %352 {approx = true} : vector<8x1xf32> -> vector<8x1xf32>
      %c4_240 = arith.constant 4 : index
      %c0_241 = arith.constant 0 : index
      %c0_242 = arith.constant 0 : index
      %354 = vector.load %arg17[%c4_240, %c0_241, %c0_242] : memref<8x8x16xf32, #tpu.memory_space<vmem>>, vector<1x8x16xf32>
      %355 = vector.shape_cast %354 : vector<1x8x16xf32> to vector<8x16xf32>
      %356 = vector.broadcast %353 : vector<8x1xf32> to vector<8x16xf32>
      %357 = arith.mulf %355, %356 : vector<8x16xf32>
      %358 = arith.truncf %357 : vector<8x16xf32> to vector<8x16xbf16>
      %c0_243 = arith.constant 0 : index
      %c64 = arith.constant 64 : index
      %359 = vector.load %arg18[%c0_243, %c64] : memref<8x128xbf16, #tpu.memory_space<vmem>>, vector<8x16xbf16>
      tpu.vector_store %arg18[%c0_243, %c64], %358 {strides = array<i32>} : memref<8x128xbf16, #tpu.memory_space<vmem>>, vector<8x16xbf16>,
      %c5_244 = arith.constant 5 : index
      %c0_245 = arith.constant 0 : index
      %c0_246 = arith.constant 0 : index
      %360 = vector.load %arg16[%c5_244, %c0_245, %c0_246] : memref<8x8x1xf32, #tpu.memory_space<vmem>>, vector<1x8x1xf32>
      %361 = vector.shape_cast %360 : vector<1x8x1xf32> to vector<8x1xf32>
      %362 = tpu.reciprocal %361 {approx = true} : vector<8x1xf32> -> vector<8x1xf32>
      %c5_247 = arith.constant 5 : index
      %c0_248 = arith.constant 0 : index
      %c0_249 = arith.constant 0 : index
      %363 = vector.load %arg17[%c5_247, %c0_248, %c0_249] : memref<8x8x16xf32, #tpu.memory_space<vmem>>, vector<1x8x16xf32>
      %364 = vector.shape_cast %363 : vector<1x8x16xf32> to vector<8x16xf32>
      %365 = vector.broadcast %362 : vector<8x1xf32> to vector<8x16xf32>
      %366 = arith.mulf %364, %365 : vector<8x16xf32>
      %367 = arith.truncf %366 : vector<8x16xf32> to vector<8x16xbf16>
      %c0_250 = arith.constant 0 : index
      %c80 = arith.constant 80 : index
      %368 = vector.load %arg18[%c0_250, %c80] : memref<8x128xbf16, #tpu.memory_space<vmem>>, vector<8x16xbf16>
      tpu.vector_store %arg18[%c0_250, %c80], %367 {strides = array<i32>} : memref<8x128xbf16, #tpu.memory_space<vmem>>, vector<8x16xbf16>,
      %c6_251 = arith.constant 6 : index
      %c0_252 = arith.constant 0 : index
      %c0_253 = arith.constant 0 : index
      %369 = vector.load %arg16[%c6_251, %c0_252, %c0_253] : memref<8x8x1xf32, #tpu.memory_space<vmem>>, vector<1x8x1xf32>
      %370 = vector.shape_cast %369 : vector<1x8x1xf32> to vector<8x1xf32>
      %371 = tpu.reciprocal %370 {approx = true} : vector<8x1xf32> -> vector<8x1xf32>
      %c6_254 = arith.constant 6 : index
      %c0_255 = arith.constant 0 : index
      %c0_256 = arith.constant 0 : index
      %372 = vector.load %arg17[%c6_254, %c0_255, %c0_256] : memref<8x8x16xf32, #tpu.memory_space<vmem>>, vector<1x8x16xf32>
      %373 = vector.shape_cast %372 : vector<1x8x16xf32> to vector<8x16xf32>
      %374 = vector.broadcast %371 : vector<8x1xf32> to vector<8x16xf32>
      %375 = arith.mulf %373, %374 : vector<8x16xf32>
      %376 = arith.truncf %375 : vector<8x16xf32> to vector<8x16xbf16>
      %c0_257 = arith.constant 0 : index
      %c96 = arith.constant 96 : index
      %377 = vector.load %arg18[%c0_257, %c96] : memref<8x128xbf16, #tpu.memory_space<vmem>>, vector<8x16xbf16>
      tpu.vector_store %arg18[%c0_257, %c96], %376 {strides = array<i32>} : memref<8x128xbf16, #tpu.memory_space<vmem>>, vector<8x16xbf16>,
      %c7_258 = arith.constant 7 : index
      %c0_259 = arith.constant 0 : index
      %c0_260 = arith.constant 0 : index
      %378 = vector.load %arg16[%c7_258, %c0_259, %c0_260] : memref<8x8x1xf32, #tpu.memory_space<vmem>>, vector<1x8x1xf32>
      %379 = vector.shape_cast %378 : vector<1x8x1xf32> to vector<8x1xf32>
      %380 = tpu.reciprocal %379 {approx = true} : vector<8x1xf32> -> vector<8x1xf32>
      %c7_261 = arith.constant 7 : index
      %c0_262 = arith.constant 0 : index
      %c0_263 = arith.constant 0 : index
      %381 = vector.load %arg17[%c7_261, %c0_262, %c0_263] : memref<8x8x16xf32, #tpu.memory_space<vmem>>, vector<1x8x16xf32>
      %382 = vector.shape_cast %381 : vector<1x8x16xf32> to vector<8x16xf32>
      %383 = vector.broadcast %380 : vector<8x1xf32> to vector<8x16xf32>
      %384 = arith.mulf %382, %383 : vector<8x16xf32>
      %385 = arith.truncf %384 : vector<8x16xf32> to vector<8x16xbf16>
      %c0_264 = arith.constant 0 : index
      %c112 = arith.constant 112 : index
      %386 = vector.load %arg18[%c0_264, %c112] : memref<8x128xbf16, #tpu.memory_space<vmem>>, vector<8x16xbf16>
      tpu.vector_store %arg18[%c0_264, %c112], %385 {strides = array<i32>} : memref<8x128xbf16, #tpu.memory_space<vmem>>, vector<8x16xbf16>,
      %c0_265 = arith.constant 0 : index
      %c0_266 = arith.constant 0 : index
      %387 = vector.load %arg18[%c0_265, %c0_266] : memref<8x128xbf16, #tpu.memory_space<vmem>>, vector<8x128xbf16>
      %c0_267 = arith.constant 0 : index
      %c0_268 = arith.constant 0 : index
      %388 = vector.load %arg11[%c0_267, %c0_268] : memref<128x128xbf16, #tpu.memory_space<vmem>>, vector<128x128xbf16>
      %cst_269 = arith.constant dense<0.000000e+00> : vector<8x128xf32>
      %389 = tpu.matmul %387, %388, %cst_269 {dimension_numbers = #tpu.dot_dimension_numbers<[1], [0], [0], [1], [0, 0, 1, 1], [], []>} : vector<8x128xbf16>, vector<128x128xbf16>, vector<8x128xf32> -> vector<8x128xf32>
      %c0_270 = arith.constant 0 : index
      %c0_271 = arith.constant 0 : index
      %390 = vector.load %arg12[%c0_270, %c0_271] : memref<1x128xf32, #tpu.memory_space<vmem>>, vector<1x128xf32>
      %391 = vector.broadcast %390 : vector<1x128xf32> to vector<8x128xf32>
      %392 = arith.addf %389, %391 : vector<8x128xf32>
      %c0_272 = arith.constant 0 : index
      %c0_273 = arith.constant 0 : index
      %c0_274 = arith.constant 0 : index
      %393 = vector.load %arg13[%c0_272, %c0_273, %c0_274] : memref<1x8x128xf32, #tpu.memory_space<vmem>>, vector<1x8x128xf32>
      %394 = vector.shape_cast %393 : vector<1x8x128xf32> to vector<8x128xf32>
      %395 = vector.shape_cast %392 : vector<8x128xf32> to vector<1x8x128xf32>
      tpu.vector_store %arg13[%c0_272, %c0_273, %c0_274], %395 {strides = array<i32>} : memref<1x8x128xf32, #tpu.memory_space<vmem>>, vector<1x8x128xf32>,
    } else {
    }
    return
  }
  func.func @transform_0(%arg0: i32, %arg1: i32, %arg2: i32) -> (i32, i32, i32) {
    %c0_i32 = arith.constant 0 : i32
    %c0_i32_0 = arith.constant 0 : i32
    return %arg0, %arg1, %c0_i32 : i32, i32, i32
  }
  func.func @transform_1(%arg0: i32, %arg1: i32, %arg2: i32) -> (i32, i32, i32) {
    %c0_i32 = arith.constant 0 : i32
    %c0_i32_0 = arith.constant 0 : i32
    return %arg0, %arg2, %c0_i32 : i32, i32, i32
  }
  func.func @transform_2(%arg0: i32, %arg1: i32, %arg2: i32) -> (i32, i32, i32) {
    %c0_i32 = arith.constant 0 : i32
    %c0_i32_0 = arith.constant 0 : i32
    return %arg0, %arg2, %c0_i32 : i32, i32, i32
  }
  func.func @transform_3(%arg0: i32, %arg1: i32, %arg2: i32) -> (i32, i32) {
    %c0_i32 = arith.constant 0 : i32
    %c0_i32_0 = arith.constant 0 : i32
    %c0_i32_1 = arith.constant 0 : i32
    return %c0_i32, %c0_i32_0 : i32, i32
  }
  func.func @transform_4(%arg0: i32, %arg1: i32, %arg2: i32) -> (i32, i32) {
    %c0_i32 = arith.constant 0 : i32
    %c0_i32_0 = arith.constant 0 : i32
    %c0_i32_1 = arith.constant 0 : i32
    return %c0_i32, %c0_i32_0 : i32, i32
  }
  func.func @transform_5(%arg0: i32, %arg1: i32, %arg2: i32) -> (i32, i32) {
    %c0_i32 = arith.constant 0 : i32
    %c0_i32_0 = arith.constant 0 : i32
    %c0_i32_1 = arith.constant 0 : i32
    return %c0_i32, %c0_i32_0 : i32, i32
  }
  func.func @transform_6(%arg0: i32, %arg1: i32, %arg2: i32) -> (i32, i32) {
    %c0_i32 = arith.constant 0 : i32
    %c0_i32_0 = arith.constant 0 : i32
    %c0_i32_1 = arith.constant 0 : i32
    return %c0_i32, %c0_i32_0 : i32, i32
  }
  func.func @transform_7(%arg0: i32, %arg1: i32, %arg2: i32) -> (i32, i32) {
    %c0_i32 = arith.constant 0 : i32
    %c0_i32_0 = arith.constant 0 : i32
    %c0_i32_1 = arith.constant 0 : i32
    return %c0_i32, %c0_i32_0 : i32, i32
  }
  func.func @transform_8(%arg0: i32, %arg1: i32, %arg2: i32) -> (i32, i32) {
    %c0_i32 = arith.constant 0 : i32
    %c0_i32_0 = arith.constant 0 : i32
    %c0_i32_1 = arith.constant 0 : i32
    return %c0_i32, %c0_i32_0 : i32, i32
  }
  func.func @transform_9(%arg0: i32, %arg1: i32, %arg2: i32) -> (i32, i32) {
    %c0_i32 = arith.constant 0 : i32
    %c0_i32_0 = arith.constant 0 : i32
    %c0_i32_1 = arith.constant 0 : i32
    return %c0_i32, %c0_i32_0 : i32, i32
  }
  func.func @transform_10(%arg0: i32, %arg1: i32, %arg2: i32) -> (i32, i32, i32) {
    %c0_i32 = arith.constant 0 : i32
    %c0_i32_0 = arith.constant 0 : i32
    return %arg0, %arg1, %c0_i32 : i32, i32, i32
  }
}

</mosaic_0001>

<llo_original>
// kernel: tpu_custom_call.1
$region0: #{tpu_custom_call.1}
  #allocation0 [shape = 'u32[]', space=smem, size = 0x4, offset = 0x4, fixed_abs, tag = 'smem constant byte address 0x4 - core index']
  #allocation1 [shape = 'u32[144,128]{1,0:T(1,128)}', space=vmem, size = 0x12000, scoped, tag = 'internal scratch']
  #allocation2 [shape = 'bf16[8,8,16]{2,1,0:T(8,128)(2,1)}', space=vmem, size = 0x4000, scoped, tag = 'scratch operand']
  #allocation3 [shape = 'f32[8,8,1]{2,1,0:T(8,128)}', space=vmem, size = 0x8000, scoped, tag = 'scratch operand']
  #allocation4 [shape = 'f32[8,8,1]{2,1,0:T(8,128)}', space=vmem, size = 0x8000, scoped, tag = 'scratch operand']
  #allocation5 [shape = 'f32[8,8,16]{2,1,0:T(8,128)}', space=vmem, size = 0x8000, scoped, tag = 'scratch operand']
  #allocation6 [shape = 'bf16[8,128]{1,0:T(8,128)(2,1)}', space=vmem, size = 0x800, scoped, tag = 'scratch operand']
  %s0 = inlined_call_operand.hbm [shape: bf16[2,8,128], index: 0, kind: input, shape index: {}]
  %s1 = inlined_call_operand.hbm [shape: bf16[2,8,128], index: 1, kind: input, shape index: {}]
  %s2 = inlined_call_operand.hbm [shape: bf16[2,8,128], index: 2, kind: input, shape index: {}]
  %s3 = inlined_call_operand.hbm [shape: bf16[128,128], index: 3, kind: input, shape index: {}]
  %s4 = inlined_call_operand.vmem [shape: f32[1,128], index: 4, kind: input, shape index: {}]
  %s5 = inlined_call_operand.hbm [shape: bf16[128,128], index: 5, kind: input, shape index: {}]
  %s6 = inlined_call_operand.hbm [shape: bf16[128,128], index: 6, kind: input, shape index: {}]
  %s7 = inlined_call_operand.vmem [shape: f32[1,128], index: 7, kind: input, shape index: {}]
  %s8 = inlined_call_operand.hbm [shape: bf16[128,128], index: 8, kind: input, shape index: {}]
  %s9 = inlined_call_operand.vmem [shape: f32[1,128], index: 9, kind: input, shape index: {}]
  %s10 = inlined_call_operand.hbm [shape: f32[2,8,128], index: 10, kind: output, shape index: {}]
  %s11 = sld [smem:[#allocation0]]
  $region109: #{tpu_custom_call.1} parent=0
    _
  %s13 = ssub.s32 1, %s11
  %s14 = scalar_select 0, %s13, %s11
  $region1: #{tpu_custom_call.1} parent=0
    #allocation7 [shape = 'u8[4096]{0}', space=vmem, size = 0x1000, scoped, tag = 'input window, operand 0']
    #allocation8 [shape = 's32[2]{0}', space=sflag, size = 0x8, scoped, tag = 'scoped memory for tpu_custom_call.1']
    #allocation9 [shape = 's32[2]{0}', space=sflag, size = 0x8, scoped, tag = 'scoped memory for tpu_custom_call.1']
    #allocation10 [shape = 'u8[4096]{0}', space=vmem, size = 0x1000, scoped, tag = 'input window, operand 1']
    #allocation11 [shape = 's32[2]{0}', space=sflag, size = 0x8, scoped, tag = 'scoped memory for tpu_custom_call.1']
    #allocation12 [shape = 'u8[4096]{0}', space=vmem, size = 0x1000, scoped, tag = 'input window, operand 2']
    #allocation13 [shape = 'u8[32768]{0}', space=vmem, size = 0x8000, scoped, tag = 'input window, operand 3, single buffered']
    #allocation14 [shape = 's32[1]{0}', space=sflag, size = 0x4, scoped, tag = 'scoped memory for tpu_custom_call.1']
    #allocation15 [shape = 'u8[32768]{0}', space=vmem, size = 0x8000, scoped, tag = 'input window, operand 5, single buffered']
    #allocation16 [shape = 'u8[32768]{0}', space=vmem, size = 0x8000, scoped, tag = 'input window, operand 6, single buffered']
    #allocation17 [shape = 's32[1]{0}', space=sflag, size = 0x4, scoped, tag = 'scoped memory for tpu_custom_call.1']
    #allocation18 [shape = 'u8[32768]{0}', space=vmem, size = 0x8000, scoped, tag = 'input window, operand 8, single buffered']
    #allocation19 [shape = 'u8[8192]{0}', space=vmem, size = 0x2000, scoped, tag = 'output window, operand 0']
    %15 = vsyncpa [#allocation8], 0
    %s16 = scalar_lea.sflag [#allocation8], 1
    %17 = vsyncpa %s16, 0
    %18 = vsyncpa [#allocation11], 0
    %s19 = scalar_lea.sflag [#allocation11], 1
    %20 = vsyncpa %s19, 0
    %21 = vsyncpa [#allocation14], 0
    %22 = vsyncpa [#allocation17], 0
    %23 = vsyncpa [#allocation9], 0
    %s24 = scalar_lea.sflag [#allocation9], 1
    %25 = vsyncpa %s24, 0
    loop: start=0, step=1, limit=4
    $region2: #{tpu_custom_call.1} parent=1 // loop_pre_header
      _
    $region3: #{tpu_custom_call.1} parent=1 // loop_header
      %s27 = sphi 0, %s31
      %p28 = scmp.ge.s32.totalorder %s27, 4
      %s34 = sphi 0, %s53
      %s35 = sphi 0, %s49
      %s36 = sphi 0, %s45
      %s37 = sphi 0, %s34
      %s38 = sphi 0, %s35
      %s39 = sphi 0, %s36
      %s40 = sphi 0, %s37
      %s41 = sphi 0, %s38
      %s42 = sphi 0, %s39
      %s58 = sphi 0, %s60
      %s61 = sphi 0, %s58
      %s62 = sphi 0, %s61
      %s78 = sphi 0, %s62
      %s86 = sphi 0, %s88
      %s89 = sphi 0, %s86
      %s90 = sphi 0, %s89
      %s106 = sphi 0, %s90
      %s114 = sphi 0, %s116
      %s117 = sphi 0, %s114
      %s118 = sphi 0, %s117
      %s134 = sphi 0, %s118
      %s138 = sphi 0, %s138
      %s140 = sphi 0, %s138
      %s141 = sphi 0, %s140
      %s155 = sphi 0, %s141
      %s159 = sphi 0, %s159
      %s161 = sphi 0, %s159
      %s162 = sphi 0, %s161
      %s176 = sphi 0, %s162
      %s180 = sphi 0, %s180
      %s182 = sphi 0, %s180
      %s183 = sphi 0, %s182
      %s197 = sphi 0, %s183
      %s201 = sphi 0, %s201
      %s203 = sphi 0, %s201
      %s204 = sphi 0, %s203
      %s218 = sphi 0, %s204
      %s222 = sphi 0, %s222
      %s224 = sphi 0, %s222
      %s225 = sphi 0, %s224
      %s239 = sphi 0, %s225
      %s243 = sphi 0, %s243
      %s245 = sphi 0, %s243
      %s246 = sphi 0, %s245
      %s260 = sphi 0, %s246
      %s264 = sphi 0, %s264
      %s266 = sphi 0, %s264
      %s267 = sphi 0, %s266
      %s281 = sphi 0, %s267
      %s289 = sphi 0, %s291
      %s292 = sphi 0, %s289
      %s293 = sphi 0, %s292
      %s309 = sphi 0, %s293
    $region4: #{tpu_custom_call.1} parent=1 // loop_header_branch
      %30 = sbr.rel (%p28) target = $region8
    $region5: #{tpu_custom_call.1} parent=1 // loop_body
      %s32 = ssub.s32 %s27, 1
      %s33 = ssub.s32 %s27, 2
      %s43 = sadd.s32 1, %s36
      %p44 = scmp.ge.s32.totalorder %s43, 1
      %s45 = scalar_select %p44, 0, %s43
      %s46 = sadd.s32 1, %s35
      %s47 = scalar_select %p44, %s46, %s35
      %p48 = scmp.ge.s32.totalorder %s47, 1
      %s49 = scalar_select %p48, 0, %s47
      %s50 = sadd.s32 1, %s34
      %s51 = scalar_select %p48, %s50, %s34
      %p52 = scmp.ge.s32.totalorder %s51, 2
      %s53 = scalar_select %p52, 0, %s51
      %s54 = ssub.s32 %s34, %s53
      %s55 = ssub.s32 %s35, %s49
      %s56 = sor.u32 %s54, %s55
      %p57 = scmp.eq.s32.totalorder %s56, 0
      %s59 = sadd.s32 %s58, 1
      %s60 = scalar_select %p57, %s58, %s59
      %p63 = pneg %p57
      %p64 = scmp.eq.s32.totalorder %s27, 1
      %p65 = por %p63, %p64
      %p66 = scmp.ne.s32.totalorder %s58, %s61
      %p67 = scmp.eq.s32.totalorder %s27, 0
      %p68 = por %p66, %p67
      %p69 = scmp.ne.s32.totalorder %s58, %s61
      %p70 = scmp.eq.s32.totalorder %s32, 1
      %p71 = por %p69, %p70
      %p72 = scmp.ne.s32.totalorder %s61, %s62
      %p73 = scmp.eq.s32.totalorder %s32, 0
      %p74 = por %p72, %p73
      %p75 = scmp.ne.s32.totalorder %s61, %s62
      %p76 = scmp.eq.s32.totalorder %s33, 1
      %p77 = por %p75, %p76
      %p79 = scmp.ne.s32.totalorder %s62, %s78
      %p80 = scmp.eq.s32.totalorder %s33, 0
      %p81 = por %p79, %p80
      %s82 = ssub.s32 %s34, %s53
      %s83 = ssub.s32 %s36, %s45
      %s84 = sor.u32 %s82, %s83
      %p85 = scmp.eq.s32.totalorder %s84, 0
      %s87 = sadd.s32 %s86, 1
      %s88 = scalar_select %p85, %s86, %s87
      %p91 = pneg %p85
      %p92 = scmp.eq.s32.totalorder %s27, 1
      %p93 = por %p91, %p92
      %p94 = scmp.ne.s32.totalorder %s86, %s89
      %p95 = scmp.eq.s32.totalorder %s27, 0
      %p96 = por %p94, %p95
      %p97 = scmp.ne.s32.totalorder %s86, %s89
      %p98 = scmp.eq.s32.totalorder %s32, 1
      %p99 = por %p97, %p98
      %p100 = scmp.ne.s32.totalorder %s89, %s90
      %p101 = scmp.eq.s32.totalorder %s32, 0
      %p102 = por %p100, %p101
      %p103 = scmp.ne.s32.totalorder %s89, %s90
      %p104 = scmp.eq.s32.totalorder %s33, 1
      %p105 = por %p103, %p104
      %p107 = scmp.ne.s32.totalorder %s90, %s106
      %p108 = scmp.eq.s32.totalorder %s33, 0
      %p109 = por %p107, %p108
      %s110 = ssub.s32 %s34, %s53
      %s111 = ssub.s32 %s36, %s45
      %s112 = sor.u32 %s110, %s111
      %p113 = scmp.eq.s32.totalorder %s112, 0
      %s115 = sadd.s32 %s114, 1
      %s116 = scalar_select %p113, %s114, %s115
      %p119 = pneg %p113
      %p120 = scmp.eq.s32.totalorder %s27, 1
      %p121 = por %p119, %p120
      %p122 = scmp.ne.s32.totalorder %s114, %s117
      %p123 = scmp.eq.s32.totalorder %s27, 0
      %p124 = por %p122, %p123
      %p125 = scmp.ne.s32.totalorder %s114, %s117
      %p126 = scmp.eq.s32.totalorder %s32, 1
      %p127 = por %p125, %p126
      %p128 = scmp.ne.s32.totalorder %s117, %s118
      %p129 = scmp.eq.s32.totalorder %s32, 0
      %p130 = por %p128, %p129
      %p131 = scmp.ne.s32.totalorder %s117, %s118
      %p132 = scmp.eq.s32.totalorder %s33, 1
      %p133 = por %p131, %p132
      %p135 = scmp.ne.s32.totalorder %s118, %s134
      %p136 = scmp.eq.s32.totalorder %s33, 0
      %p137 = por %p135, %p136
      %s139 = sadd.s32 %s138, 1
      %p142 = scmp.eq.s32.totalorder %s27, 1
      %p143 = scmp.ne.s32.totalorder %s138, %s140
      %p144 = scmp.eq.s32.totalorder %s27, 0
      %p145 = por %p143, %p144
      %p146 = scmp.ne.s32.totalorder %s138, %s140
      %p147 = scmp.eq.s32.totalorder %s32, 1
      %p148 = por %p146, %p147
      %p149 = scmp.ne.s32.totalorder %s140, %s141
      %p150 = scmp.eq.s32.totalorder %s32, 0
      %p151 = por %p149, %p150
      %p152 = scmp.ne.s32.totalorder %s140, %s141
      %p153 = scmp.eq.s32.totalorder %s33, 1
      %p154 = por %p152, %p153
      %p156 = scmp.ne.s32.totalorder %s141, %s155
      %p157 = scmp.eq.s32.totalorder %s33, 0
      %p158 = por %p156, %p157
      %s160 = sadd.s32 %s159, 1
      %p163 = scmp.eq.s32.totalorder %s27, 1
      %p164 = scmp.ne.s32.totalorder %s159, %s161
      %p165 = scmp.eq.s32.totalorder %s27, 0
      %p166 = por %p164, %p165
      %p167 = scmp.ne.s32.totalorder %s159, %s161
      %p168 = scmp.eq.s32.totalorder %s32, 1
      %p169 = por %p167, %p168
      %p170 = scmp.ne.s32.totalorder %s161, %s162
      %p171 = scmp.eq.s32.totalorder %s32, 0
      %p172 = por %p170, %p171
      %p173 = scmp.ne.s32.totalorder %s161, %s162
      %p174 = scmp.eq.s32.totalorder %s33, 1
      %p175 = por %p173, %p174
      %p177 = scmp.ne.s32.totalorder %s162, %s176
      %p178 = scmp.eq.s32.totalorder %s33, 0
      %p179 = por %p177, %p178
      %s181 = sadd.s32 %s180, 1
      %p184 = scmp.eq.s32.totalorder %s27, 1
      %p185 = scmp.ne.s32.totalorder %s180, %s182
      %p186 = scmp.eq.s32.totalorder %s27, 0
      %p187 = por %p185, %p186
      %p188 = scmp.ne.s32.totalorder %s180, %s182
      %p189 = scmp.eq.s32.totalorder %s32, 1
      %p190 = por %p188, %p189
      %p191 = scmp.ne.s32.totalorder %s182, %s183
      %p192 = scmp.eq.s32.totalorder %s32, 0
      %p193 = por %p191, %p192
      %p194 = scmp.ne.s32.totalorder %s182, %s183
      %p195 = scmp.eq.s32.totalorder %s33, 1
      %p196 = por %p194, %p195
      %p198 = scmp.ne.s32.totalorder %s183, %s197
      %p199 = scmp.eq.s32.totalorder %s33, 0
      %p200 = por %p198, %p199
      %s202 = sadd.s32 %s201, 1
      %p205 = scmp.eq.s32.totalorder %s27, 1
      %p206 = scmp.ne.s32.totalorder %s201, %s203
      %p207 = scmp.eq.s32.totalorder %s27, 0
      %p208 = por %p206, %p207
      %p209 = scmp.ne.s32.totalorder %s201, %s203
      %p210 = scmp.eq.s32.totalorder %s32, 1
      %p211 = por %p209, %p210
      %p212 = scmp.ne.s32.totalorder %s203, %s204
      %p213 = scmp.eq.s32.totalorder %s32, 0
      %p214 = por %p212, %p213
      %p215 = scmp.ne.s32.totalorder %s203, %s204
      %p216 = scmp.eq.s32.totalorder %s33, 1
      %p217 = por %p215, %p216
      %p219 = scmp.ne.s32.totalorder %s204, %s218
      %p220 = scmp.eq.s32.totalorder %s33, 0
      %p221 = por %p219, %p220
      %s223 = sadd.s32 %s222, 1
      %p226 = scmp.eq.s32.totalorder %s27, 1
      %p227 = scmp.ne.s32.totalorder %s222, %s224
      %p228 = scmp.eq.s32.totalorder %s27, 0
      %p229 = por %p227, %p228
      %p230 = scmp.ne.s32.totalorder %s222, %s224
      %p231 = scmp.eq.s32.totalorder %s32, 1
      %p232 = por %p230, %p231
      %p233 = scmp.ne.s32.totalorder %s224, %s225
      %p234 = scmp.eq.s32.totalorder %s32, 0
      %p235 = por %p233, %p234
      %p236 = scmp.ne.s32.totalorder %s224, %s225
      %p237 = scmp.eq.s32.totalorder %s33, 1
      %p238 = por %p236, %p237
      %p240 = scmp.ne.s32.totalorder %s225, %s239
      %p241 = scmp.eq.s32.totalorder %s33, 0
      %p242 = por %p240, %p241
      %s244 = sadd.s32 %s243, 1
      %p247 = scmp.eq.s32.totalorder %s27, 1
      %p248 = scmp.ne.s32.totalorder %s243, %s245
      %p249 = scmp.eq.s32.totalorder %s27, 0
      %p250 = por %p248, %p249
      %p251 = scmp.ne.s32.totalorder %s243, %s245
      %p252 = scmp.eq.s32.totalorder %s32, 1
      %p253 = por %p251, %p252
      %p254 = scmp.ne.s32.totalorder %s245, %s246
      %p255 = scmp.eq.s32.totalorder %s32, 0
      %p256 = por %p254, %p255
      %p257 = scmp.ne.s32.totalorder %s245, %s246
      %p258 = scmp.eq.s32.totalorder %s33, 1
      %p259 = por %p257, %p258
      %p261 = scmp.ne.s32.totalorder %s246, %s260
      %p262 = scmp.eq.s32.totalorder %s33, 0
      %p263 = por %p261, %p262
      %s265 = sadd.s32 %s264, 1
      %p268 = scmp.eq.s32.totalorder %s27, 1
      %p269 = scmp.ne.s32.totalorder %s264, %s266
      %p270 = scmp.eq.s32.totalorder %s27, 0
      %p271 = por %p269, %p270
      %p272 = scmp.ne.s32.totalorder %s264, %s266
      %p273 = scmp.eq.s32.totalorder %s32, 1
      %p274 = por %p272, %p273
      %p275 = scmp.ne.s32.totalorder %s266, %s267
      %p276 = scmp.eq.s32.totalorder %s32, 0
      %p277 = por %p275, %p276
      %p278 = scmp.ne.s32.totalorder %s266, %s267
      %p279 = scmp.eq.s32.totalorder %s33, 1
      %p280 = por %p278, %p279
      %p282 = scmp.ne.s32.totalorder %s267, %s281
      %p283 = scmp.eq.s32.totalorder %s33, 0
      %p284 = por %p282, %p283
      %s285 = ssub.s32 %s34, %s53
      %s286 = ssub.s32 %s35, %s49
      %s287 = sor.u32 %s285, %s286
      %p288 = scmp.eq.s32.totalorder %s287, 0
      %s290 = sadd.s32 %s289, 1
      %s291 = scalar_select %p288, %s289, %s290
      %p294 = pneg %p288
      %p295 = scmp.eq.s32.totalorder %s27, 1
      %p296 = por %p294, %p295
      %p297 = scmp.ne.s32.totalorder %s289, %s292
      %p298 = scmp.eq.s32.totalorder %s27, 0
      %p299 = por %p297, %p298
      %p300 = scmp.ne.s32.totalorder %s289, %s292
      %p301 = scmp.eq.s32.totalorder %s32, 1
      %p302 = por %p300, %p301
      %p303 = scmp.ne.s32.totalorder %s292, %s293
      %p304 = scmp.eq.s32.totalorder %s32, 0
      %p305 = por %p303, %p304
      %p306 = scmp.ne.s32.totalorder %s292, %s293
      %p307 = scmp.eq.s32.totalorder %s33, 1
      %p308 = por %p306, %p307
      %p310 = scmp.ne.s32.totalorder %s293, %s309
      %p311 = scmp.eq.s32.totalorder %s33, 0
      %p312 = por %p310, %p311
      %p313 = scmp.le.s32.totalorder 1, %s27
      %p314 = scmp.lt.s32.totalorder %s27, 3
      %p315 = pnand %p313, %p314
      %p316 = pneg %p315
      // Predicated region
      $region9: #{tpu_custom_call.1} parent=5 // pred_check
        _
      $region10: #{tpu_custom_call.1} parent=5 // pred_check_branch
        %318 = sbr.rel (%p315) target = $region12
      $region11: #{tpu_custom_call.1} parent=5 // pred_region
        %s319 = ssub.s32 %s27, 1
        // Predicated region
        $region13: #{tpu_custom_call.1} parent=11 // pred_check
          %p320 = pneg %p151
        $region14: #{tpu_custom_call.1} parent=11 // pred_check_branch
          %322 = sbr.rel (%p320) target = $region16
        $region15: #{tpu_custom_call.1} parent=11 // pred_region
          %s324 = ssub.s32 1024, 1024
          %325 = vsyncadd [#allocation14], %s324
          %s326 = sshll.u32 [#allocation13], 4
          %s327 = int_to_ptr.vmem [resolvable:$true] %s326
          %332 = dma.hbm_to_vmem [thread:$0]  %s3, 1024, %s327, [#allocation14], 64, 64, 4
        $region16: #{tpu_custom_call.1} parent=11 // pred_fallthru
          _
        // Predicated region
        $region17: #{tpu_custom_call.1} parent=11 // pred_check
          %p333 = pneg %p172
        $region18: #{tpu_custom_call.1} parent=11 // pred_check_branch
          %335 = sbr.rel (%p333) target = $region20
        $region19: #{tpu_custom_call.1} parent=11 // pred_region
          _
        $region20: #{tpu_custom_call.1} parent=11 // pred_fallthru
          _
        // Predicated region
        $region21: #{tpu_custom_call.1} parent=11 // pred_check
          %p336 = pneg %p193
        $region22: #{tpu_custom_call.1} parent=11 // pred_check_branch
          %338 = sbr.rel (%p336) target = $region24
        $region23: #{tpu_custom_call.1} parent=11 // pred_region
          %s340 = ssub.s32 1024, 1024
          %341 = vsyncadd [#allocation14], %s340
          %s342 = sshll.u32 [#allocation15], 4
          %s343 = int_to_ptr.vmem [resolvable:$true] %s342
          %348 = dma.hbm_to_vmem [thread:$0]  %s5, 1024, %s343, [#allocation14], 64, 64, 4
        $region24: #{tpu_custom_call.1} parent=11 // pred_fallthru
          _
        // Predicated region
        $region25: #{tpu_custom_call.1} parent=11 // pred_check
          %p349 = pneg %p214
        $region26: #{tpu_custom_call.1} parent=11 // pred_check_branch
          %351 = sbr.rel (%p349) target = $region28
        $region27: #{tpu_custom_call.1} parent=11 // pred_region
          %s353 = ssub.s32 1024, 1024
          %354 = vsyncadd [#allocation17], %s353
          %s355 = sshll.u32 [#allocation16], 4
          %s356 = int_to_ptr.vmem [resolvable:$true] %s355
          %361 = dma.hbm_to_vmem [thread:$0]  %s6, 1024, %s356, [#allocation17], 64, 64, 4
        $region28: #{tpu_custom_call.1} parent=11 // pred_fallthru
          _
        // Predicated region
        $region29: #{tpu_custom_call.1} parent=11 // pred_check
          %p362 = pneg %p235
        $region30: #{tpu_custom_call.1} parent=11 // pred_check_branch
          %364 = sbr.rel (%p362) target = $region32
        $region31: #{tpu_custom_call.1} parent=11 // pred_region
          _
        $region32: #{tpu_custom_call.1} parent=11 // pred_fallthru
          _
        // Predicated region
        $region33: #{tpu_custom_call.1} parent=11 // pred_check
          %p365 = pneg %p256
        $region34: #{tpu_custom_call.1} parent=11 // pred_check_branch
          %367 = sbr.rel (%p365) target = $region36
        $region35: #{tpu_custom_call.1} parent=11 // pred_region
          %s369 = ssub.s32 1024, 1024
          %370 = vsyncadd [#allocation17], %s369
          %s371 = sshll.u32 [#allocation18], 4
          %s372 = int_to_ptr.vmem [resolvable:$true] %s371
          %377 = dma.hbm_to_vmem [thread:$0]  %s8, 1024, %s372, [#allocation17], 64, 64, 4
        $region36: #{tpu_custom_call.1} parent=11 // pred_fallthru
          _
        // Predicated region
        $region37: #{tpu_custom_call.1} parent=11 // pred_check
          %p378 = pneg %p277
        $region38: #{tpu_custom_call.1} parent=11 // pred_check_branch
          %380 = sbr.rel (%p378) target = $region40
        $region39: #{tpu_custom_call.1} parent=11 // pred_region
          _
        $region40: #{tpu_custom_call.1} parent=11 // pred_fallthru
          _
      $region12: #{tpu_custom_call.1} parent=5 // pred_fallthru
        _
      %p381 = scmp.lt.s32.totalorder %s27, 2
      // Predicated region
      $region41: #{tpu_custom_call.1} parent=5 // pred_check
        %p382 = pneg %p381
      $region42: #{tpu_custom_call.1} parent=5 // pred_check_branch
        %384 = sbr.rel (%p382) target = $region44
      $region43: #{tpu_custom_call.1} parent=5 // pred_region
        // Predicated region
        $region45: #{tpu_custom_call.1} parent=43 // pred_check
          %p385 = pneg %p68
        $region46: #{tpu_custom_call.1} parent=43 // pred_check_branch
          %387 = sbr.rel (%p385) target = $region48
        $region47: #{tpu_custom_call.1} parent=43 // pred_region
          %s388 = sand.u32 %s58, 1
          %s389 = scalar_lea.sflag [#allocation8], %s388
          %s390 = sand.u32 %s58, 1
          %s391 = smul.addr %s390, 4
          %s392 = scalar_lea.vmem [#allocation7], %s391
          %s394 = ssub.s32 64, 64
          %395 = vsyncadd %s389, %s394
          %s396 = sadd.s32 %s35, %s34
          %s397 = smul.addr %s396, 64
          %s398 = scalar_lea.hbm %s0, %s397
          %s400 = sshll.u32 %s392, 4
          %s401 = int_to_ptr.vmem [resolvable:$true] %s400
          %403 = dma.hbm_to_vmem [thread:$0]  %s398, 64, %s401, %s389
        $region48: #{tpu_custom_call.1} parent=43 // pred_fallthru
          _
        // Predicated region
        $region49: #{tpu_custom_call.1} parent=43 // pred_check
          %p404 = pneg %p96
        $region50: #{tpu_custom_call.1} parent=43 // pred_check_branch
          %406 = sbr.rel (%p404) target = $region52
        $region51: #{tpu_custom_call.1} parent=43 // pred_region
          %s407 = sand.u32 %s27, 1
          %s408 = scalar_lea.sflag [#allocation11], %s407
          %s409 = sand.u32 %s86, 1
          %s410 = smul.addr %s409, 4
          %s411 = scalar_lea.vmem [#allocation10], %s410
          %s413 = ssub.s32 64, 64
          %414 = vsyncadd %s408, %s413
          %s415 = sadd.s32 %s36, %s34
          %s416 = smul.addr %s415, 64
          %s417 = scalar_lea.hbm %s1, %s416
          %s419 = sshll.u32 %s411, 4
          %s420 = int_to_ptr.vmem [resolvable:$true] %s419
          %422 = dma.hbm_to_vmem [thread:$0]  %s417, 64, %s420, %s408
        $region52: #{tpu_custom_call.1} parent=43 // pred_fallthru
          _
        // Predicated region
        $region53: #{tpu_custom_call.1} parent=43 // pred_check
          %p423 = pneg %p124
        $region54: #{tpu_custom_call.1} parent=43 // pred_check_branch
          %425 = sbr.rel (%p423) target = $region56
        $region55: #{tpu_custom_call.1} parent=43 // pred_region
          %s426 = sand.u32 %s27, 1
          %s427 = scalar_lea.sflag [#allocation11], %s426
          %s428 = sand.u32 %s114, 1
          %s429 = smul.addr %s428, 4
          %s430 = scalar_lea.vmem [#allocation12], %s429
          %s432 = ssub.s32 64, 64
          %433 = vsyncadd %s427, %s432
          %s434 = sadd.s32 %s36, %s34
          %s435 = smul.addr %s434, 64
          %s436 = scalar_lea.hbm %s2, %s435
          %s438 = sshll.u32 %s430, 4
          %s439 = int_to_ptr.vmem [resolvable:$true] %s438
          %441 = dma.hbm_to_vmem [thread:$0]  %s436, 64, %s439, %s427
        $region56: #{tpu_custom_call.1} parent=43 // pred_fallthru
          _
      $region44: #{tpu_custom_call.1} parent=5 // pred_fallthru
        _
      %p442 = scmp.le.s32.totalorder 1, %s27
      %p443 = scmp.lt.s32.totalorder %s27, 3
      %p444 = pnand %p442, %p443
      %p445 = pneg %p444
      // Predicated region
      $region57: #{tpu_custom_call.1} parent=5 // pred_check
        _
      $region58: #{tpu_custom_call.1} parent=5 // pred_check_branch
        %447 = sbr.rel (%p444) target = $region60
      $region59: #{tpu_custom_call.1} parent=5 // pred_region
        %s448 = ssub.s32 %s27, 1
        %s449 = sand.u32 %s61, 1
        %s450 = scalar_lea.sflag [#allocation8], %s449
        %s451 = sand.u32 %s61, 1
        %s452 = smul.addr %s451, 4
        %s453 = scalar_lea.vmem [#allocation7], %s452
        // Predicated region
        $region61: #{tpu_custom_call.1} parent=59 // pred_check
          %p454 = pneg %p74
        $region62: #{tpu_custom_call.1} parent=59 // pred_check_branch
          %456 = sbr.rel (%p454) target = $region64
        $region63: #{tpu_custom_call.1} parent=59 // pred_region
          %457 = dma.done %s450, 64
        $region64: #{tpu_custom_call.1} parent=59 // pred_fallthru
          _
        %s458 = sand.u32 %s32, 1
        %s459 = scalar_lea.sflag [#allocation11], %s458
        %s460 = sand.u32 %s89, 1
        %s461 = smul.addr %s460, 4
        %s462 = scalar_lea.vmem [#allocation10], %s461
        // Predicated region
        $region65: #{tpu_custom_call.1} parent=59 // pred_check
          %p463 = pneg %p102
        $region66: #{tpu_custom_call.1} parent=59 // pred_check_branch
          %465 = sbr.rel (%p463) target = $region68
        $region67: #{tpu_custom_call.1} parent=59 // pred_region
          %466 = dma.done %s459, 64
        $region68: #{tpu_custom_call.1} parent=59 // pred_fallthru
          _
        %s467 = sand.u32 %s32, 1
        %s468 = scalar_lea.sflag [#allocation11], %s467
        %s469 = sand.u32 %s117, 1
        %s470 = smul.addr %s469, 4
        %s471 = scalar_lea.vmem [#allocation12], %s470
        // Predicated region
        $region69: #{tpu_custom_call.1} parent=59 // pred_check
          %p472 = pneg %p130
        $region70: #{tpu_custom_call.1} parent=59 // pred_check_branch
          %474 = sbr.rel (%p472) target = $region72
        $region71: #{tpu_custom_call.1} parent=59 // pred_region
          %475 = dma.done %s468, 64
        $region72: #{tpu_custom_call.1} parent=59 // pred_fallthru
          _
        // Predicated region
        $region73: #{tpu_custom_call.1} parent=59 // pred_check
          %p476 = pneg %p151
        $region74: #{tpu_custom_call.1} parent=59 // pred_check_branch
          %478 = sbr.rel (%p476) target = $region76
        $region75: #{tpu_custom_call.1} parent=59 // pred_region
          %479 = dma.done [#allocation14], 1024
        $region76: #{tpu_custom_call.1} parent=59 // pred_fallthru
          _
        // Predicated region
        $region77: #{tpu_custom_call.1} parent=59 // pred_check
          %p480 = pneg %p193
        $region78: #{tpu_custom_call.1} parent=59 // pred_check_branch
          %482 = sbr.rel (%p480) target = $region80
        $region79: #{tpu_custom_call.1} parent=59 // pred_region
          %483 = dma.done [#allocation14], 1024
        $region80: #{tpu_custom_call.1} parent=59 // pred_fallthru
          _
        // Predicated region
        $region81: #{tpu_custom_call.1} parent=59 // pred_check
          %p484 = pneg %p214
        $region82: #{tpu_custom_call.1} parent=59 // pred_check_branch
          %486 = sbr.rel (%p484) target = $region84
        $region83: #{tpu_custom_call.1} parent=59 // pred_region
          %487 = dma.done [#allocation17], 1024
        $region84: #{tpu_custom_call.1} parent=59 // pred_fallthru
          _
        // Predicated region
        $region85: #{tpu_custom_call.1} parent=59 // pred_check
          %p488 = pneg %p256
        $region86: #{tpu_custom_call.1} parent=59 // pred_check_branch
          %490 = sbr.rel (%p488) target = $region88
        $region87: #{tpu_custom_call.1} parent=59 // pred_region
          %491 = dma.done [#allocation17], 1024
        $region88: #{tpu_custom_call.1} parent=59 // pred_fallthru
          _
        %s492 = sand.u32 %s61, 1
        %s493 = scalar_lea.sflag [#allocation8], %s492
        %s494 = sand.u32 %s61, 1
        %s495 = smul.addr %s494, 4
        %s496 = scalar_lea.vmem [#allocation7], %s495
        %p497 = pneg %p74
        %p498 = pneg %p71
        %s499 = sand.u32 %s32, 1
        %s500 = scalar_lea.sflag [#allocation11], %s499
        %s501 = sand.u32 %s89, 1
        %s502 = smul.addr %s501, 4
        %s503 = scalar_lea.vmem [#allocation10], %s502
        %p504 = pneg %p102
        %p505 = pneg %p99
        %s506 = sand.u32 %s32, 1
        %s507 = scalar_lea.sflag [#allocation11], %s506
        %s508 = sand.u32 %s117, 1
        %s509 = smul.addr %s508, 4
        %s510 = scalar_lea.vmem [#allocation12], %s509
        %p511 = pneg %p130
        %p512 = pneg %p127
        %p513 = pneg %p151
        %p514 = pneg %p148
        %p515 = pneg %p172
        %p516 = pneg %p169
        %p517 = pneg %p193
        %p518 = pneg %p190
        %p519 = pneg %p214
        %p520 = pneg %p211
        %p521 = pneg %p235
        %p522 = pneg %p232
        %p523 = pneg %p256
        %p524 = pneg %p253
        %p525 = pneg %p277
        %p526 = pneg %p274
        %p527 = pneg %p305
        %p528 = pneg %p302
        %s529 = sand.u32 %s292, 1
        %s530 = scalar_lea.sflag [#allocation9], %s529
        %s531 = sand.u32 %s292, 1
        %s532 = smul.addr %s531, 8
        %s533 = scalar_lea.vmem [#allocation19], %s532
        %p535 = scmp.eq.s32.totalorder %s39, 0
        // Predicated region
        $region89: #{tpu_custom_call.1} parent=59 // pred_check
          %p536 = pneg %p535
        $region90: #{tpu_custom_call.1} parent=59 // pred_check_branch
          %538 = sbr.rel (%p536) target = $region92
        $region91: #{tpu_custom_call.1} parent=59 // pred_region
          %v539 = vld [vmem:[%s453] sm:$0xf]
          %v540 = vld [vmem:[#allocation13] sm:$0xf]
          %v541 = vld [vmem:[#allocation13 + $0x4] sm:$0xf]
          %v542 = vld [vmem:[#allocation13 + $0x8] sm:$0xf]
          %v543 = vld [vmem:[#allocation13 + $0xc] sm:$0xf]
          %v544 = vld [vmem:[#allocation13 + $0x10] sm:$0xf]
          %v545 = vld [vmem:[#allocation13 + $0x14] sm:$0xf]
          %v546 = vld [vmem:[#allocation13 + $0x18] sm:$0xf]
          %v547 = vld [vmem:[#allocation13 + $0x1c] sm:$0xf]
          %v548 = vld [vmem:[#allocation13 + $0x20] sm:$0xf]
          %v549 = vld [vmem:[#allocation13 + $0x24] sm:$0xf]
          %v550 = vld [vmem:[#allocation13 + $0x28] sm:$0xf]
          %v551 = vld [vmem:[#allocation13 + $0x2c] sm:$0xf]
          %v552 = vld [vmem:[#allocation13 + $0x30] sm:$0xf]
          %v553 = vld [vmem:[#allocation13 + $0x34] sm:$0xf]
          %v554 = vld [vmem:[#allocation13 + $0x38] sm:$0xf]
          %v555 = vld [vmem:[#allocation13 + $0x3c] sm:$0xf]
          %v556 = vld [vmem:[%s4] sm:$0x1]
          %v558 = vlaneseq
          %v559 = vshrl.u32 %v558, 7
          %v560 = vsub.s32 0, %v559
          %v561 = vrot.slane %v556, %v560
          %v579 = vunpack.c.l.b16 %v540
          %v580 = vunpack.c.l.b16 %v541
          %v581 = vunpack.c.l.b16 %v542
          %v582 = vunpack.c.l.b16 %v543
          %v583 = vunpack.c.l.b16 %v544
          %v584 = vunpack.c.l.b16 %v545
          %v585 = vunpack.c.l.b16 %v546
          %v586 = vunpack.c.l.b16 %v547
          %v587 = vunpack.c.l.b16 %v548
          %v588 = vunpack.c.l.b16 %v549
          %v589 = vunpack.c.l.b16 %v550
          %v590 = vunpack.c.l.b16 %v551
          %v591 = vunpack.c.l.b16 %v552
          %v592 = vunpack.c.l.b16 %v553
          %v593 = vunpack.c.l.b16 %v554
          %v594 = vunpack.c.l.b16 %v555
          %v595 = vpack.c.b16 %v580, %v579
          %v596 = vpack.c.b16 %v582, %v581
          %v597 = vpack.c.b16 %v584, %v583
          %v598 = vpack.c.b16 %v586, %v585
          %v599 = vpack.c.b16 %v588, %v587
          %v600 = vpack.c.b16 %v590, %v589
          %v601 = vpack.c.b16 %v592, %v591
          %v602 = vpack.c.b16 %v594, %v593
          %611 = vmatprep.subr.bf16.mxu0 0
          %612 = vmatpush1.bf16.msra.mxu0 %v595
          %613 = vmatprep.subr.bf16.mxu0 0
          %614 = vmatpush1.bf16.msra.mxu0 %v596
          %615 = vmatprep.subr.bf16.mxu0 0
          %616 = vmatpush1.bf16.msra.mxu0 %v597
          %617 = vmatprep.subr.bf16.mxu0 0
          %618 = vmatpush1.bf16.msra.mxu0 %v598
          %619 = vmatprep.subr.bf16.mxu0 0
          %620 = vmatpush1.bf16.msra.mxu0 %v599
          %621 = vmatprep.subr.bf16.mxu0 0
          %622 = vmatpush1.bf16.msra.mxu0 %v600
          %623 = vmatprep.subr.bf16.mxu0 0
          %624 = vmatpush1.bf16.msra.mxu0 %v601
          %625 = vmatprep.subr.bf16.mxu0 0
          %626 = vmatpush1.bf16.msra.mxu0 %v602
          %627 = vmatprep.subr.bf16.mxu0 0
          %628 = vmatpush1.bf16.msra.mxu0 0
          %629 = vmatprep.subr.bf16.mxu0 0
          %630 = vmatpush1.bf16.msra.mxu0 0
          %631 = vmatprep.subr.bf16.mxu0 0
          %632 = vmatpush1.bf16.msra.mxu0 0
          %633 = vmatprep.subr.bf16.mxu0 0
          %634 = vmatpush1.bf16.msra.mxu0 0
          %635 = vmatprep.subr.bf16.mxu0 0
          %636 = vmatpush1.bf16.msra.mxu0 0
          %637 = vmatprep.subr.bf16.mxu0 0
          %638 = vmatpush1.bf16.msra.mxu0 0
          %639 = vmatprep.subr.bf16.mxu0 0
          %640 = vmatpush1.bf16.msra.mxu0 0
          %641 = vmatprep.subr.bf16.mxu0 0
          %642 = vmatpush1.bf16.msra.mxu0 0
          %643 = vmatprep.mubr.bf16.mxu0 0
          %644 = vmatmul.mubr.bf16.gmra.mrb[0].mxu0 %v539
          %v645 = vpop.f32.mrb[0].mxu0
          %v646 = vadd.f32 %v561, %v645
          %v647 = vpop.f32.mrb[0].mxu0
          %v648 = vpop.f32.mrb[0].mxu0
          %v649 = vpop.f32.mrb[0].mxu0
          %650 = vdwg.mxu0
          %v651 = vpack.c.bf16 %v646, %v646
          %vm652 = vcmask 125952
          %653 = vst.msk [vmem:[#allocation2] sm:$0xf] %vm652, %v651
          %v655 = vunpack.c.l.b16 %v651
          %v656 = vpack.c.b16 %v655, %v655
          %657 = vrot.lane.b32.xlu0 %v656, 112
          %v658 = vpop.permute.xlu0 %657
          %s660 = scalar_lea.vmem [#allocation2], 4
          %661 = vst.msk [vmem:[%s660] sm:$0xf] %vm652, %v658
          %662 = vrot.lane.b32.xlu0 %v656, 96
          %v663 = vpop.permute.xlu0 %662
          %s665 = scalar_lea.vmem [#allocation2], 8
          %666 = vst.msk [vmem:[%s665] sm:$0xf] %vm652, %v663
          %667 = vrot.lane.b32.xlu0 %v656, 80
          %v668 = vpop.permute.xlu0 %667
          %s670 = scalar_lea.vmem [#allocation2], 12
          %671 = vst.msk [vmem:[%s670] sm:$0xf] %vm652, %v668
          %672 = vrot.lane.b32.xlu0 %v656, 64
          %v673 = vpop.permute.xlu0 %672
          %s675 = scalar_lea.vmem [#allocation2], 16
          %676 = vst.msk [vmem:[%s675] sm:$0xf] %vm652, %v673
          %677 = vrot.lane.b32.xlu0 %v656, 48
          %v678 = vpop.permute.xlu0 %677
          %s680 = scalar_lea.vmem [#allocation2], 20
          %681 = vst.msk [vmem:[%s680] sm:$0xf] %vm652, %v678
          %682 = vrot.lane.b32.xlu0 %v656, 32
          %v683 = vpop.permute.xlu0 %682
          %s685 = scalar_lea.vmem [#allocation2], 24
          %686 = vst.msk [vmem:[%s685] sm:$0xf] %vm652, %v683
          %687 = vrot.lane.b32.xlu0 %v656, 16
          %v688 = vpop.permute.xlu0 %687
          %s690 = scalar_lea.vmem [#allocation2], 28
          %691 = vst.msk [vmem:[%s690] sm:$0xf] %vm652, %v688
          %vm692 = vcmask 7168
          %693 = vst.msk [vmem:[#allocation3] sm:$0xff] %vm692, -inf
          %694 = vst.msk [vmem:[#allocation3 + $0x8] sm:$0xff] %vm692, -inf
          %695 = vst.msk [vmem:[#allocation3 + $0x10] sm:$0xff] %vm692, -inf
          %696 = vst.msk [vmem:[#allocation3 + $0x18] sm:$0xff] %vm692, -inf
          %697 = vst.msk [vmem:[#allocation3 + $0x20] sm:$0xff] %vm692, -inf
          %698 = vst.msk [vmem:[#allocation3 + $0x28] sm:$0xff] %vm692, -inf
          %699 = vst.msk [vmem:[#allocation3 + $0x30] sm:$0xff] %vm692, -inf
          %700 = vst.msk [vmem:[#allocation3 + $0x38] sm:$0xff] %vm692, -inf
          %701 = vst.msk [vmem:[#allocation4] sm:$0xff] %vm692, 0.0
          %702 = vst.msk [vmem:[#allocation4 + $0x8] sm:$0xff] %vm692, 0.0
          %703 = vst.msk [vmem:[#allocation4 + $0x10] sm:$0xff] %vm692, 0.0
          %704 = vst.msk [vmem:[#allocation4 + $0x18] sm:$0xff] %vm692, 0.0
          %705 = vst.msk [vmem:[#allocation4 + $0x20] sm:$0xff] %vm692, 0.0
          %706 = vst.msk [vmem:[#allocation4 + $0x28] sm:$0xff] %vm692, 0.0
          %707 = vst.msk [vmem:[#allocation4 + $0x30] sm:$0xff] %vm692, 0.0
          %708 = vst.msk [vmem:[#allocation4 + $0x38] sm:$0xff] %vm692, 0.0
          %vm709 = vcmask 130048
          %710 = vst.msk [vmem:[#allocation5] sm:$0xff] %vm709, 0.0
          %711 = vst.msk [vmem:[#allocation5 + $0x8] sm:$0xff] %vm709, 0.0
          %712 = vst.msk [vmem:[#allocation5 + $0x10] sm:$0xff] %vm709, 0.0
          %713 = vst.msk [vmem:[#allocation5 + $0x18] sm:$0xff] %vm709, 0.0
          %714 = vst.msk [vmem:[#allocation5 + $0x20] sm:$0xff] %vm709, 0.0
          %715 = vst.msk [vmem:[#allocation5 + $0x28] sm:$0xff] %vm709, 0.0
          %716 = vst.msk [vmem:[#allocation5 + $0x30] sm:$0xff] %vm709, 0.0
          %717 = vst.msk [vmem:[#allocation5 + $0x38] sm:$0xff] %vm709, 0.0
        $region92: #{tpu_custom_call.1} parent=59 // pred_fallthru
          _
        %v718 = vld [vmem:[%s462] sm:$0xf]
        %v719 = vld [vmem:[#allocation15] sm:$0xf]
        %v720 = vld [vmem:[#allocation15 + $0x4] sm:$0xf]
        %v721 = vld [vmem:[#allocation15 + $0x8] sm:$0xf]
        %v722 = vld [vmem:[#allocation15 + $0xc] sm:$0xf]
        %v723 = vld [vmem:[#allocation15 + $0x10] sm:$0xf]
        %v724 = vld [vmem:[#allocation15 + $0x14] sm:$0xf]
        %v725 = vld [vmem:[#allocation15 + $0x18] sm:$0xf]
        %v726 = vld [vmem:[#allocation15 + $0x1c] sm:$0xf]
        %v727 = vld [vmem:[#allocation15 + $0x20] sm:$0xf]
        %v728 = vld [vmem:[#allocation15 + $0x24] sm:$0xf]
        %v729 = vld [vmem:[#allocation15 + $0x28] sm:$0xf]
        %v730 = vld [vmem:[#allocation15 + $0x2c] sm:$0xf]
        %v731 = vld [vmem:[#allocation15 + $0x30] sm:$0xf]
        %v732 = vld [vmem:[#allocation15 + $0x34] sm:$0xf]
        %v733 = vld [vmem:[#allocation15 + $0x38] sm:$0xf]
        %v734 = vld [vmem:[#allocation15 + $0x3c] sm:$0xf]
        %v751 = vunpack.c.l.b16 %v719
        %v752 = vunpack.c.l.b16 %v720
        %v753 = vunpack.c.l.b16 %v721
        %v754 = vunpack.c.l.b16 %v722
        %v755 = vunpack.c.l.b16 %v723
        %v756 = vunpack.c.l.b16 %v724
        %v757 = vunpack.c.l.b16 %v725
        %v758 = vunpack.c.l.b16 %v726
        %v759 = vunpack.c.l.b16 %v727
        %v760 = vunpack.c.l.b16 %v728
        %v761 = vunpack.c.l.b16 %v729
        %v762 = vunpack.c.l.b16 %v730
        %v763 = vunpack.c.l.b16 %v731
        %v764 = vunpack.c.l.b16 %v732
        %v765 = vunpack.c.l.b16 %v733
        %v766 = vunpack.c.l.b16 %v734
        %v767 = vpack.c.b16 %v752, %v751
        %v768 = vpack.c.b16 %v754, %v753
        %v769 = vpack.c.b16 %v756, %v755
        %v770 = vpack.c.b16 %v758, %v757
        %v771 = vpack.c.b16 %v760, %v759
        %v772 = vpack.c.b16 %v762, %v761
        %v773 = vpack.c.b16 %v764, %v763
        %v774 = vpack.c.b16 %v766, %v765
        %783 = vmatprep.subr.bf16.mxu0 0
        %784 = vmatpush1.bf16.msra.mxu0 %v767
        %785 = vmatprep.subr.bf16.mxu0 0
        %786 = vmatpush1.bf16.msra.mxu0 %v768
        %787 = vmatprep.subr.bf16.mxu0 0
        %788 = vmatpush1.bf16.msra.mxu0 %v769
        %789 = vmatprep.subr.bf16.mxu0 0
        %790 = vmatpush1.bf16.msra.mxu0 %v770
        %791 = vmatprep.subr.bf16.mxu0 0
        %792 = vmatpush1.bf16.msra.mxu0 %v771
        %793 = vmatprep.subr.bf16.mxu0 0
        %794 = vmatpush1.bf16.msra.mxu0 %v772
        %795 = vmatprep.subr.bf16.mxu0 0
        %796 = vmatpush1.bf16.msra.mxu0 %v773
        %797 = vmatprep.subr.bf16.mxu0 0
        %798 = vmatpush1.bf16.msra.mxu0 %v774
        %799 = vmatprep.subr.bf16.mxu0 0
        %800 = vmatpush1.bf16.msra.mxu0 0
        %801 = vmatprep.subr.bf16.mxu0 0
        %802 = vmatpush1.bf16.msra.mxu0 0
        %803 = vmatprep.subr.bf16.mxu0 0
        %804 = vmatpush1.bf16.msra.mxu0 0
        %805 = vmatprep.subr.bf16.mxu0 0
        %806 = vmatpush1.bf16.msra.mxu0 0
        %807 = vmatprep.subr.bf16.mxu0 0
        %808 = vmatpush1.bf16.msra.mxu0 0
        %809 = vmatprep.subr.bf16.mxu0 0
        %810 = vmatpush1.bf16.msra.mxu0 0
        %811 = vmatprep.subr.bf16.mxu0 0
        %812 = vmatpush1.bf16.msra.mxu0 0
        %813 = vmatprep.subr.bf16.mxu0 0
        %814 = vmatpush1.bf16.msra.mxu0 0
        %815 = vmatprep.mubr.bf16.mxu0 0
        %816 = vmatmul.mubr.bf16.gmra.mrb[0].mxu0 %v718
        %v817 = vpop.f32.mrb[0].mxu0
        %v818 = vadd.f32 0.0, %v817
        %v819 = vpop.f32.mrb[0].mxu0
        %v820 = vpop.f32.mrb[0].mxu0
        %v821 = vpop.f32.mrb[0].mxu0
        %822 = vdwg.mxu0
        %v823 = vpack.c.bf16 %v818, %v818
        %v824 = vld [vmem:[%s471] sm:$0xf]
        %v825 = vld [vmem:[#allocation16] sm:$0xf]
        %v826 = vld [vmem:[#allocation16 + $0x4] sm:$0xf]
        %v827 = vld [vmem:[#allocation16 + $0x8] sm:$0xf]
        %v828 = vld [vmem:[#allocation16 + $0xc] sm:$0xf]
        %v829 = vld [vmem:[#allocation16 + $0x10] sm:$0xf]
        %v830 = vld [vmem:[#allocation16 + $0x14] sm:$0xf]
        %v831 = vld [vmem:[#allocation16 + $0x18] sm:$0xf]
        %v832 = vld [vmem:[#allocation16 + $0x1c] sm:$0xf]
        %v833 = vld [vmem:[#allocation16 + $0x20] sm:$0xf]
        %v834 = vld [vmem:[#allocation16 + $0x24] sm:$0xf]
        %v835 = vld [vmem:[#allocation16 + $0x28] sm:$0xf]
        %v836 = vld [vmem:[#allocation16 + $0x2c] sm:$0xf]
        %v837 = vld [vmem:[#allocation16 + $0x30] sm:$0xf]
        %v838 = vld [vmem:[#allocation16 + $0x34] sm:$0xf]
        %v839 = vld [vmem:[#allocation16 + $0x38] sm:$0xf]
        %v840 = vld [vmem:[#allocation16 + $0x3c] sm:$0xf]
        %v841 = vld [vmem:[%s7] sm:$0x1]
        %v843 = vlaneseq
        %v844 = vshrl.u32 %v843, 7
        %v845 = vsub.s32 0, %v844
        %v846 = vrot.slane %v841, %v845
        %v864 = vunpack.c.l.b16 %v825
        %v865 = vunpack.c.l.b16 %v826
        %v866 = vunpack.c.l.b16 %v827
        %v867 = vunpack.c.l.b16 %v828
        %v868 = vunpack.c.l.b16 %v829
        %v869 = vunpack.c.l.b16 %v830
        %v870 = vunpack.c.l.b16 %v831
        %v871 = vunpack.c.l.b16 %v832
        %v872 = vunpack.c.l.b16 %v833
        %v873 = vunpack.c.l.b16 %v834
        %v874 = vunpack.c.l.b16 %v835
        %v875 = vunpack.c.l.b16 %v836
        %v876 = vunpack.c.l.b16 %v837
        %v877 = vunpack.c.l.b16 %v838
        %v878 = vunpack.c.l.b16 %v839
        %v879 = vunpack.c.l.b16 %v840
        %v880 = vpack.c.b16 %v865, %v864
        %v881 = vpack.c.b16 %v867, %v866
        %v882 = vpack.c.b16 %v869, %v868
        %v883 = vpack.c.b16 %v871, %v870
        %v884 = vpack.c.b16 %v873, %v872
        %v885 = vpack.c.b16 %v875, %v874
        %v886 = vpack.c.b16 %v877, %v876
        %v887 = vpack.c.b16 %v879, %v878
        %896 = vmatprep.subr.bf16.mxu0 0
        %897 = vmatpush1.bf16.msra.mxu0 %v880
        %898 = vmatprep.subr.bf16.mxu0 0
        %899 = vmatpush1.bf16.msra.mxu0 %v881
        %900 = vmatprep.subr.bf16.mxu0 0
        %901 = vmatpush1.bf16.msra.mxu0 %v882
        %902 = vmatprep.subr.bf16.mxu0 0
        %903 = vmatpush1.bf16.msra.mxu0 %v883
        %904 = vmatprep.subr.bf16.mxu0 0
        %905 = vmatpush1.bf16.msra.mxu0 %v884
        %906 = vmatprep.subr.bf16.mxu0 0
        %907 = vmatpush1.bf16.msra.mxu0 %v885
        %908 = vmatprep.subr.bf16.mxu0 0
        %909 = vmatpush1.bf16.msra.mxu0 %v886
        %910 = vmatprep.subr.bf16.mxu0 0
        %911 = vmatpush1.bf16.msra.mxu0 %v887
        %912 = vmatprep.subr.bf16.mxu0 0
        %913 = vmatpush1.bf16.msra.mxu0 0
        %914 = vmatprep.subr.bf16.mxu0 0
        %915 = vmatpush1.bf16.msra.mxu0 0
        %916 = vmatprep.subr.bf16.mxu0 0
        %917 = vmatpush1.bf16.msra.mxu0 0
        %918 = vmatprep.subr.bf16.mxu0 0
        %919 = vmatpush1.bf16.msra.mxu0 0
        %920 = vmatprep.subr.bf16.mxu0 0
        %921 = vmatpush1.bf16.msra.mxu0 0
        %922 = vmatprep.subr.bf16.mxu0 0
        %923 = vmatpush1.bf16.msra.mxu0 0
        %924 = vmatprep.subr.bf16.mxu0 0
        %925 = vmatpush1.bf16.msra.mxu0 0
        %926 = vmatprep.subr.bf16.mxu0 0
        %927 = vmatpush1.bf16.msra.mxu0 0
        %928 = vmatprep.mubr.bf16.mxu0 0
        %929 = vmatmul.mubr.bf16.gmra.mrb[0].mxu0 %v824
        %v930 = vpop.f32.mrb[0].mxu0
        %v931 = vadd.f32 %v846, %v930
        %v932 = vpop.f32.mrb[0].mxu0
        %v933 = vpop.f32.mrb[0].mxu0
        %v934 = vpop.f32.mrb[0].mxu0
        %935 = vdwg.mxu0
        %v936 = vpack.c.bf16 %v931, %v931
        %v937 = vld [vmem:[#allocation2] sm:$0xf]
        %vm938 = vcmask 130048
        %v940 = vsel %vm938, %v937, 0
        %v943 = vsel %vm938, %v823, 0
        %945 = vmatprep.subr.bf16.mxu0 0
        %946 = vmatpush1.bf16.xpose.msra.mxu0 %v943
        %947 = vmatprep.subr.bf16.mxu0 0
        %948 = vmatpush1.bf16.xpose.msra.mxu0 0
        %949 = vmatprep.subr.bf16.mxu0 0
        %950 = vmatpush1.bf16.xpose.msra.mxu0 0
        %951 = vmatprep.subr.bf16.mxu0 0
        %952 = vmatpush1.bf16.xpose.msra.mxu0 0
        %953 = vmatprep.subr.bf16.mxu0 0
        %954 = vmatpush1.bf16.xpose.msra.mxu0 0
        %955 = vmatprep.subr.bf16.mxu0 0
        %956 = vmatpush1.bf16.xpose.msra.mxu0 0
        %957 = vmatprep.subr.bf16.mxu0 0
        %958 = vmatpush1.bf16.xpose.msra.mxu0 0
        %959 = vmatprep.subr.bf16.mxu0 0
        %960 = vmatpush1.bf16.xpose.msra.mxu0 0
        %961 = vmatprep.subr.bf16.mxu0 0
        %962 = vmatpush1.bf16.xpose.msra.mxu0 0
        %963 = vmatprep.subr.bf16.mxu0 0
        %964 = vmatpush1.bf16.xpose.msra.mxu0 0
        %965 = vmatprep.subr.bf16.mxu0 0
        %966 = vmatpush1.bf16.xpose.msra.mxu0 0
        %967 = vmatprep.subr.bf16.mxu0 0
        %968 = vmatpush1.bf16.xpose.msra.mxu0 0
        %969 = vmatprep.subr.bf16.mxu0 0
        %970 = vmatpush1.bf16.xpose.msra.mxu0 0
        %971 = vmatprep.subr.bf16.mxu0 0
        %972 = vmatpush1.bf16.xpose.msra.mxu0 0
        %973 = vmatprep.subr.bf16.mxu0 0
        %974 = vmatpush1.bf16.xpose.msra.mxu0 0
        %975 = vmatprep.subr.bf16.mxu0 0
        %976 = vmatpush1.bf16.xpose.msra.mxu0 0
        %977 = vmatprep.mubr.bf16.mxu0 0
        %978 = vmatmul.mubr.bf16.gmra.mrb[0].mxu0 %v940
        %v979 = vpop.f32.mrb[0].mxu0
        %v980 = vadd.f32 0.0, %v979
        %v981 = vpop.f32.mrb[0].mxu0
        %v982 = vpop.f32.mrb[0].mxu0
        %v983 = vpop.f32.mrb[0].mxu0
        %984 = vdwg.mxu0
        %v985 = vld [vmem:[#allocation3] sm:$0xff]
        %vm986 = vcmask 64512
        %v987 = vsel %vm986, %v980, -inf
        %988 = vmax.xlane.f32.xlu0 %v987
        %v989 = vpop.xlane.xlu0 %988
        %v990 = vmax.f32 %v985, %v989
        %v991 = vsub.f32 %v985, %v990
        %v992 = vmul.f32 %v991, 1.442695
        %v993 = vpow.pop %v992
        %995 = vset.pattern.permute.xlu0 0
        %996 = vperm.xlu0 %995, %v990
        %v997 = vpop.permute.xlu0 %996
        %v999 = vsub.f32 %v980, %v997
        %v1000 = vmul.f32 %v999, 1.442695
        %v1001 = vpow.pop %v1000
        %v1002 = vld [vmem:[#allocation4] sm:$0xff]
        %v1003 = vmul.f32 %v993, %v1002
        %v1004 = vsel %vm986, %v1001, 0.0
        %1005 = vadd.xlane.f32.xlu0 %v1004
        %v1006 = vpop.xlane.xlu0 %1005
        %v1007 = vadd.f32 %v1003, %v1006
        %vm1008 = vcmask 7168
        %1009 = vst.msk [vmem:[#allocation4] sm:$0xff] %vm1008, %v1007
        %v1010 = vld [vmem:[#allocation5] sm:$0xff]
        %1012 = vset.pattern.permute.xlu0 0
        %1013 = vperm.xlu0 %1012, %v993
        %v1014 = vpop.permute.xlu0 %1013
        %v1016 = vmul.f32 %v1014, %v1010
        %v1017 = vpack.c.bf16 %v1001, %v1001
        %v1019 = vsel %vm986, %v1017, 0
        %vm1021 = vcmask 1043456
        %v1023 = vsel %vm1021, %v936, 0
        %1025 = vmatprep.subr.bf16.mxu0 0
        %1026 = vmatpush1.bf16.msra.mxu0 %v1023
        %1027 = vmatprep.subr.bf16.mxu0 0
        %1028 = vmatpush1.bf16.msra.mxu0 0
        %1029 = vmatprep.subr.bf16.mxu0 0
        %1030 = vmatpush1.bf16.msra.mxu0 0
        %1031 = vmatprep.subr.bf16.mxu0 0
        %1032 = vmatpush1.bf16.msra.mxu0 0
        %1033 = vmatprep.subr.bf16.mxu0 0
        %1034 = vmatpush1.bf16.msra.mxu0 0
        %1035 = vmatprep.subr.bf16.mxu0 0
        %1036 = vmatpush1.bf16.msra.mxu0 0
        %1037 = vmatprep.subr.bf16.mxu0 0
        %1038 = vmatpush1.bf16.msra.mxu0 0
        %1039 = vmatprep.subr.bf16.mxu0 0
        %1040 = vmatpush1.bf16.msra.mxu0 0
        %1041 = vmatprep.subr.bf16.mxu0 0
        %1042 = vmatpush1.bf16.msra.mxu0 0
        %1043 = vmatprep.subr.bf16.mxu0 0
        %1044 = vmatpush1.bf16.msra.mxu0 0
        %1045 = vmatprep.subr.bf16.mxu0 0
        %1046 = vmatpush1.bf16.msra.mxu0 0
        %1047 = vmatprep.subr.bf16.mxu0 0
        %1048 = vmatpush1.bf16.msra.mxu0 0
        %1049 = vmatprep.subr.bf16.mxu0 0
        %1050 = vmatpush1.bf16.msra.mxu0 0
        %1051 = vmatprep.subr.bf16.mxu0 0
        %1052 = vmatpush1.bf16.msra.mxu0 0
        %1053 = vmatprep.subr.bf16.mxu0 0
        %1054 = vmatpush1.bf16.msra.mxu0 0
        %1055 = vmatprep.subr.bf16.mxu0 0
        %1056 = vmatpush1.bf16.msra.mxu0 0
        %1057 = vmatprep.mubr.bf16.mxu0 0
        %1058 = vmatmul.mubr.bf16.gmra.mrb[0].mxu0 %v1019
        %v1059 = vpop.f32.mrb[0].mxu0
        %v1060 = vadd.f32 0.0, %v1059
        %v1061 = vpop.f32.mrb[0].mxu0
        %v1062 = vpop.f32.mrb[0].mxu0
        %v1063 = vpop.f32.mrb[0].mxu0
        %1064 = vdwg.mxu0
        %v1065 = vadd.f32 %v1016, %v1060
        %1066 = vst.msk [vmem:[#allocation5] sm:$0xff] %vm938, %v1065
        %1067 = vst.msk [vmem:[#allocation3] sm:$0xff] %vm1008, %v990
        %s1068 = scalar_lea.vmem [#allocation2], 4
        %v1069 = vld [vmem:[%s1068] sm:$0xf]
        %1071 = vrot.lane.b32.xlu0 %v823, 112
        %v1072 = vpop.permute.xlu0 %1071
        %v1074 = vsel %vm938, %v1069, 0
        %v1077 = vsel %vm938, %v1072, 0
        %1079 = vmatprep.subr.bf16.mxu0 0
        %1080 = vmatpush1.bf16.xpose.msra.mxu0 %v1077
        %1081 = vmatprep.subr.bf16.mxu0 0
        %1082 = vmatpush1.bf16.xpose.msra.mxu0 0
        %1083 = vmatprep.subr.bf16.mxu0 0
        %1084 = vmatpush1.bf16.xpose.msra.mxu0 0
        %1085 = vmatprep.subr.bf16.mxu0 0
        %1086 = vmatpush1.bf16.xpose.msra.mxu0 0
        %1087 = vmatprep.subr.bf16.mxu0 0
        %1088 = vmatpush1.bf16.xpose.msra.mxu0 0
        %1089 = vmatprep.subr.bf16.mxu0 0
        %1090 = vmatpush1.bf16.xpose.msra.mxu0 0
        %1091 = vmatprep.subr.bf16.mxu0 0
        %1092 = vmatpush1.bf16.xpose.msra.mxu0 0
        %1093 = vmatprep.subr.bf16.mxu0 0
        %1094 = vmatpush1.bf16.xpose.msra.mxu0 0
        %1095 = vmatprep.subr.bf16.mxu0 0
        %1096 = vmatpush1.bf16.xpose.msra.mxu0 0
        %1097 = vmatprep.subr.bf16.mxu0 0
        %1098 = vmatpush1.bf16.xpose.msra.mxu0 0
        %1099 = vmatprep.subr.bf16.mxu0 0
        %1100 = vmatpush1.bf16.xpose.msra.mxu0 0
        %1101 = vmatprep.subr.bf16.mxu0 0
        %1102 = vmatpush1.bf16.xpose.msra.mxu0 0
        %1103 = vmatprep.subr.bf16.mxu0 0
        %1104 = vmatpush1.bf16.xpose.msra.mxu0 0
        %1105 = vmatprep.subr.bf16.mxu0 0
        %1106 = vmatpush1.bf16.xpose.msra.mxu0 0
        %1107 = vmatprep.subr.bf16.mxu0 0
        %1108 = vmatpush1.bf16.xpose.msra.mxu0 0
        %1109 = vmatprep.subr.bf16.mxu0 0
        %1110 = vmatpush1.bf16.xpose.msra.mxu0 0
        %1111 = vmatprep.mubr.bf16.mxu0 0
        %1112 = vmatmul.mubr.bf16.gmra.mrb[0].mxu0 %v1074
        %v1113 = vpop.f32.mrb[0].mxu0
        %v1114 = vadd.f32 0.0, %v1113
        %v1115 = vpop.f32.mrb[0].mxu0
        %v1116 = vpop.f32.mrb[0].mxu0
        %v1117 = vpop.f32.mrb[0].mxu0
        %1118 = vdwg.mxu0
        %s1119 = scalar_lea.vmem [#allocation3], 8
        %v1120 = vld [vmem:[%s1119] sm:$0xff]
        %v1121 = vsel %vm986, %v1114, -inf
        %1122 = vmax.xlane.f32.xlu0 %v1121
        %v1123 = vpop.xlane.xlu0 %1122
        %v1124 = vmax.f32 %v1120, %v1123
        %v1125 = vsub.f32 %v1120, %v1124
        %v1126 = vmul.f32 %v1125, 1.442695
        %v1127 = vpow.pop %v1126
        %1129 = vset.pattern.permute.xlu0 0
        %1130 = vperm.xlu0 %1129, %v1124
        %v1131 = vpop.permute.xlu0 %1130
        %v1133 = vsub.f32 %v1114, %v1131
        %v1134 = vmul.f32 %v1133, 1.442695
        %v1135 = vpow.pop %v1134
        %s1136 = scalar_lea.vmem [#allocation4], 8
        %v1137 = vld [vmem:[%s1136] sm:$0xff]
        %v1138 = vmul.f32 %v1127, %v1137
        %v1139 = vsel %vm986, %v1135, 0.0
        %1140 = vadd.xlane.f32.xlu0 %v1139
        %v1141 = vpop.xlane.xlu0 %1140
        %v1142 = vadd.f32 %v1138, %v1141
        %1143 = vst.msk [vmem:[%s1136] sm:$0xff] %vm1008, %v1142
        %s1144 = scalar_lea.vmem [#allocation5], 8
        %v1145 = vld [vmem:[%s1144] sm:$0xff]
        %1147 = vset.pattern.permute.xlu0 0
        %1148 = vperm.xlu0 %1147, %v1127
        %v1149 = vpop.permute.xlu0 %1148
        %v1151 = vmul.f32 %v1149, %v1145
        %v1152 = vpack.c.bf16 %v1135, %v1135
        %1154 = vrot.lane.b32.xlu0 %v936, 112
        %v1155 = vpop.permute.xlu0 %1154
        %v1157 = vsel %vm986, %v1152, 0
        %v1160 = vsel %vm1021, %v1155, 0
        %1162 = vmatprep.subr.bf16.mxu0 0
        %1163 = vmatpush1.bf16.msra.mxu0 %v1160
        %1164 = vmatprep.subr.bf16.mxu0 0
        %1165 = vmatpush1.bf16.msra.mxu0 0
        %1166 = vmatprep.subr.bf16.mxu0 0
        %1167 = vmatpush1.bf16.msra.mxu0 0
        %1168 = vmatprep.subr.bf16.mxu0 0
        %1169 = vmatpush1.bf16.msra.mxu0 0
        %1170 = vmatprep.subr.bf16.mxu0 0
        %1171 = vmatpush1.bf16.msra.mxu0 0
        %1172 = vmatprep.subr.bf16.mxu0 0
        %1173 = vmatpush1.bf16.msra.mxu0 0
        %1174 = vmatprep.subr.bf16.mxu0 0
        %1175 = vmatpush1.bf16.msra.mxu0 0
        %1176 = vmatprep.subr.bf16.mxu0 0
        %1177 = vmatpush1.bf16.msra.mxu0 0
        %1178 = vmatprep.subr.bf16.mxu0 0
        %1179 = vmatpush1.bf16.msra.mxu0 0
        %1180 = vmatprep.subr.bf16.mxu0 0
        %1181 = vmatpush1.bf16.msra.mxu0 0
        %1182 = vmatprep.subr.bf16.mxu0 0
        %1183 = vmatpush1.bf16.msra.mxu0 0
        %1184 = vmatprep.subr.bf16.mxu0 0
        %1185 = vmatpush1.bf16.msra.mxu0 0
        %1186 = vmatprep.subr.bf16.mxu0 0
        %1187 = vmatpush1.bf16.msra.mxu0 0
        %1188 = vmatprep.subr.bf16.mxu0 0
        %1189 = vmatpush1.bf16.msra.mxu0 0
        %1190 = vmatprep.subr.bf16.mxu0 0
        %1191 = vmatpush1.bf16.msra.mxu0 0
        %1192 = vmatprep.subr.bf16.mxu0 0
        %1193 = vmatpush1.bf16.msra.mxu0 0
        %1194 = vmatprep.mubr.bf16.mxu0 0
        %1195 = vmatmul.mubr.bf16.gmra.mrb[0].mxu0 %v1157
        %v1196 = vpop.f32.mrb[0].mxu0
        %v1197 = vadd.f32 0.0, %v1196
        %v1198 = vpop.f32.mrb[0].mxu0
        %v1199 = vpop.f32.mrb[0].mxu0
        %v1200 = vpop.f32.mrb[0].mxu0
        %1201 = vdwg.mxu0
        %v1202 = vadd.f32 %v1151, %v1197
        %1203 = vst.msk [vmem:[%s1144] sm:$0xff] %vm938, %v1202
        %1204 = vst.msk [vmem:[%s1119] sm:$0xff] %vm1008, %v1124
        %s1205 = scalar_lea.vmem [#allocation2], 8
        %v1206 = vld [vmem:[%s1205] sm:$0xf]
        %1207 = vrot.lane.b32.xlu0 %v823, 96
        %v1208 = vpop.permute.xlu0 %1207
        %v1210 = vsel %vm938, %v1206, 0
        %v1213 = vsel %vm938, %v1208, 0
        %1215 = vmatprep.subr.bf16.mxu0 0
        %1216 = vmatpush1.bf16.xpose.msra.mxu0 %v1213
        %1217 = vmatprep.subr.bf16.mxu0 0
        %1218 = vmatpush1.bf16.xpose.msra.mxu0 0
        %1219 = vmatprep.subr.bf16.mxu0 0
        %1220 = vmatpush1.bf16.xpose.msra.mxu0 0
        %1221 = vmatprep.subr.bf16.mxu0 0
        %1222 = vmatpush1.bf16.xpose.msra.mxu0 0
        %1223 = vmatprep.subr.bf16.mxu0 0
        %1224 = vmatpush1.bf16.xpose.msra.mxu0 0
        %1225 = vmatprep.subr.bf16.mxu0 0
        %1226 = vmatpush1.bf16.xpose.msra.mxu0 0
        %1227 = vmatprep.subr.bf16.mxu0 0
        %1228 = vmatpush1.bf16.xpose.msra.mxu0 0
        %1229 = vmatprep.subr.bf16.mxu0 0
        %1230 = vmatpush1.bf16.xpose.msra.mxu0 0
        %1231 = vmatprep.subr.bf16.mxu0 0
        %1232 = vmatpush1.bf16.xpose.msra.mxu0 0
        %1233 = vmatprep.subr.bf16.mxu0 0
        %1234 = vmatpush1.bf16.xpose.msra.mxu0 0
        %1235 = vmatprep.subr.bf16.mxu0 0
        %1236 = vmatpush1.bf16.xpose.msra.mxu0 0
        %1237 = vmatprep.subr.bf16.mxu0 0
        %1238 = vmatpush1.bf16.xpose.msra.mxu0 0
        %1239 = vmatprep.subr.bf16.mxu0 0
        %1240 = vmatpush1.bf16.xpose.msra.mxu0 0
        %1241 = vmatprep.subr.bf16.mxu0 0
        %1242 = vmatpush1.bf16.xpose.msra.mxu0 0
        %1243 = vmatprep.subr.bf16.mxu0 0
        %1244 = vmatpush1.bf16.xpose.msra.mxu0 0
        %1245 = vmatprep.subr.bf16.mxu0 0
        %1246 = vmatpush1.bf16.xpose.msra.mxu0 0
        %1247 = vmatprep.mubr.bf16.mxu0 0
        %1248 = vmatmul.mubr.bf16.gmra.mrb[0].mxu0 %v1210
        %v1249 = vpop.f32.mrb[0].mxu0
        %v1250 = vadd.f32 0.0, %v1249
        %v1251 = vpop.f32.mrb[0].mxu0
        %v1252 = vpop.f32.mrb[0].mxu0
        %v1253 = vpop.f32.mrb[0].mxu0
        %1254 = vdwg.mxu0
        %s1255 = scalar_lea.vmem [#allocation3], 16
        %v1256 = vld [vmem:[%s1255] sm:$0xff]
        %v1257 = vsel %vm986, %v1250, -inf
        %1258 = vmax.xlane.f32.xlu0 %v1257
        %v1259 = vpop.xlane.xlu0 %1258
        %v1260 = vmax.f32 %v1256, %v1259
        %v1261 = vsub.f32 %v1256, %v1260
        %v1262 = vmul.f32 %v1261, 1.442695
        %v1263 = vpow.pop %v1262
        %1265 = vset.pattern.permute.xlu0 0
        %1266 = vperm.xlu0 %1265, %v1260
        %v1267 = vpop.permute.xlu0 %1266
        %v1269 = vsub.f32 %v1250, %v1267
        %v1270 = vmul.f32 %v1269, 1.442695
        %v1271 = vpow.pop %v1270
        %s1272 = scalar_lea.vmem [#allocation4], 16
        %v1273 = vld [vmem:[%s1272] sm:$0xff]
        %v1274 = vmul.f32 %v1263, %v1273
        %v1275 = vsel %vm986, %v1271, 0.0
        %1276 = vadd.xlane.f32.xlu0 %v1275
        %v1277 = vpop.xlane.xlu0 %1276
        %v1278 = vadd.f32 %v1274, %v1277
        %1279 = vst.msk [vmem:[%s1272] sm:$0xff] %vm1008, %v1278
        %s1280 = scalar_lea.vmem [#allocation5], 16
        %v1281 = vld [vmem:[%s1280] sm:$0xff]
        %1283 = vset.pattern.permute.xlu0 0
        %1284 = vperm.xlu0 %1283, %v1263
        %v1285 = vpop.permute.xlu0 %1284
        %v1287 = vmul.f32 %v1285, %v1281
        %v1288 = vpack.c.bf16 %v1271, %v1271
        %1289 = vrot.lane.b32.xlu0 %v936, 96
        %v1290 = vpop.permute.xlu0 %1289
        %v1292 = vsel %vm986, %v1288, 0
        %v1295 = vsel %vm1021, %v1290, 0
        %1297 = vmatprep.subr.bf16.mxu0 0
        %1298 = vmatpush1.bf16.msra.mxu0 %v1295
        %1299 = vmatprep.subr.bf16.mxu0 0
        %1300 = vmatpush1.bf16.msra.mxu0 0
        %1301 = vmatprep.subr.bf16.mxu0 0
        %1302 = vmatpush1.bf16.msra.mxu0 0
        %1303 = vmatprep.subr.bf16.mxu0 0
        %1304 = vmatpush1.bf16.msra.mxu0 0
        %1305 = vmatprep.subr.bf16.mxu0 0
        %1306 = vmatpush1.bf16.msra.mxu0 0
        %1307 = vmatprep.subr.bf16.mxu0 0
        %1308 = vmatpush1.bf16.msra.mxu0 0
        %1309 = vmatprep.subr.bf16.mxu0 0
        %1310 = vmatpush1.bf16.msra.mxu0 0
        %1311 = vmatprep.subr.bf16.mxu0 0
        %1312 = vmatpush1.bf16.msra.mxu0 0
        %1313 = vmatprep.subr.bf16.mxu0 0
        %1314 = vmatpush1.bf16.msra.mxu0 0
        %1315 = vmatprep.subr.bf16.mxu0 0
        %1316 = vmatpush1.bf16.msra.mxu0 0
        %1317 = vmatprep.subr.bf16.mxu0 0
        %1318 = vmatpush1.bf16.msra.mxu0 0
        %1319 = vmatprep.subr.bf16.mxu0 0
        %1320 = vmatpush1.bf16.msra.mxu0 0
        %1321 = vmatprep.subr.bf16.mxu0 0
        %1322 = vmatpush1.bf16.msra.mxu0 0
        %1323 = vmatprep.subr.bf16.mxu0 0
        %1324 = vmatpush1.bf16.msra.mxu0 0
        %1325 = vmatprep.subr.bf16.mxu0 0
        %1326 = vmatpush1.bf16.msra.mxu0 0
        %1327 = vmatprep.subr.bf16.mxu0 0
        %1328 = vmatpush1.bf16.msra.mxu0 0
        %1329 = vmatprep.mubr.bf16.mxu0 0
        %1330 = vmatmul.mubr.bf16.gmra.mrb[0].mxu0 %v1292
        %v1331 = vpop.f32.mrb[0].mxu0
        %v1332 = vadd.f32 0.0, %v1331
        %v1333 = vpop.f32.mrb[0].mxu0
        %v1334 = vpop.f32.mrb[0].mxu0
        %v1335 = vpop.f32.mrb[0].mxu0
        %1336 = vdwg.mxu0
        %v1337 = vadd.f32 %v1287, %v1332
        %1338 = vst.msk [vmem:[%s1280] sm:$0xff] %vm938, %v1337
        %1339 = vst.msk [vmem:[%s1255] sm:$0xff] %vm1008, %v1260
        %s1340 = scalar_lea.vmem [#allocation2], 12
        %v1341 = vld [vmem:[%s1340] sm:$0xf]
        %1342 = vrot.lane.b32.xlu0 %v823, 80
        %v1343 = vpop.permute.xlu0 %1342
        %v1345 = vsel %vm938, %v1341, 0
        %v1348 = vsel %vm938, %v1343, 0
        %1350 = vmatprep.subr.bf16.mxu0 0
        %1351 = vmatpush1.bf16.xpose.msra.mxu0 %v1348
        %1352 = vmatprep.subr.bf16.mxu0 0
        %1353 = vmatpush1.bf16.xpose.msra.mxu0 0
        %1354 = vmatprep.subr.bf16.mxu0 0
        %1355 = vmatpush1.bf16.xpose.msra.mxu0 0
        %1356 = vmatprep.subr.bf16.mxu0 0
        %1357 = vmatpush1.bf16.xpose.msra.mxu0 0
        %1358 = vmatprep.subr.bf16.mxu0 0
        %1359 = vmatpush1.bf16.xpose.msra.mxu0 0
        %1360 = vmatprep.subr.bf16.mxu0 0
        %1361 = vmatpush1.bf16.xpose.msra.mxu0 0
        %1362 = vmatprep.subr.bf16.mxu0 0
        %1363 = vmatpush1.bf16.xpose.msra.mxu0 0
        %1364 = vmatprep.subr.bf16.mxu0 0
        %1365 = vmatpush1.bf16.xpose.msra.mxu0 0
        %1366 = vmatprep.subr.bf16.mxu0 0
        %1367 = vmatpush1.bf16.xpose.msra.mxu0 0
        %1368 = vmatprep.subr.bf16.mxu0 0
        %1369 = vmatpush1.bf16.xpose.msra.mxu0 0
        %1370 = vmatprep.subr.bf16.mxu0 0
        %1371 = vmatpush1.bf16.xpose.msra.mxu0 0
        %1372 = vmatprep.subr.bf16.mxu0 0
        %1373 = vmatpush1.bf16.xpose.msra.mxu0 0
        %1374 = vmatprep.subr.bf16.mxu0 0
        %1375 = vmatpush1.bf16.xpose.msra.mxu0 0
        %1376 = vmatprep.subr.bf16.mxu0 0
        %1377 = vmatpush1.bf16.xpose.msra.mxu0 0
        %1378 = vmatprep.subr.bf16.mxu0 0
        %1379 = vmatpush1.bf16.xpose.msra.mxu0 0
        %1380 = vmatprep.subr.bf16.mxu0 0
        %1381 = vmatpush1.bf16.xpose.msra.mxu0 0
        %1382 = vmatprep.mubr.bf16.mxu0 0
        %1383 = vmatmul.mubr.bf16.gmra.mrb[0].mxu0 %v1345
        %v1384 = vpop.f32.mrb[0].mxu0
        %v1385 = vadd.f32 0.0, %v1384
        %v1386 = vpop.f32.mrb[0].mxu0
        %v1387 = vpop.f32.mrb[0].mxu0
        %v1388 = vpop.f32.mrb[0].mxu0
        %1389 = vdwg.mxu0
        %s1390 = scalar_lea.vmem [#allocation3], 24
        %v1391 = vld [vmem:[%s1390] sm:$0xff]
        %v1392 = vsel %vm986, %v1385, -inf
        %1393 = vmax.xlane.f32.xlu0 %v1392
        %v1394 = vpop.xlane.xlu0 %1393
        %v1395 = vmax.f32 %v1391, %v1394
        %v1396 = vsub.f32 %v1391, %v1395
        %v1397 = vmul.f32 %v1396, 1.442695
        %v1398 = vpow.pop %v1397
        %1400 = vset.pattern.permute.xlu0 0
        %1401 = vperm.xlu0 %1400, %v1395
        %v1402 = vpop.permute.xlu0 %1401
        %v1404 = vsub.f32 %v1385, %v1402
        %v1405 = vmul.f32 %v1404, 1.442695
        %v1406 = vpow.pop %v1405
        %s1407 = scalar_lea.vmem [#allocation4], 24
        %v1408 = vld [vmem:[%s1407] sm:$0xff]
        %v1409 = vmul.f32 %v1398, %v1408
        %v1410 = vsel %vm986, %v1406, 0.0
        %1411 = vadd.xlane.f32.xlu0 %v1410
        %v1412 = vpop.xlane.xlu0 %1411
        %v1413 = vadd.f32 %v1409, %v1412
        %1414 = vst.msk [vmem:[%s1407] sm:$0xff] %vm1008, %v1413
        %s1415 = scalar_lea.vmem [#allocation5], 24
        %v1416 = vld [vmem:[%s1415] sm:$0xff]
        %1418 = vset.pattern.permute.xlu0 0
        %1419 = vperm.xlu0 %1418, %v1398
        %v1420 = vpop.permute.xlu0 %1419
        %v1422 = vmul.f32 %v1420, %v1416
        %v1423 = vpack.c.bf16 %v1406, %v1406
        %1424 = vrot.lane.b32.xlu0 %v936, 80
        %v1425 = vpop.permute.xlu0 %1424
        %v1427 = vsel %vm986, %v1423, 0
        %v1430 = vsel %vm1021, %v1425, 0
        %1432 = vmatprep.subr.bf16.mxu0 0
        %1433 = vmatpush1.bf16.msra.mxu0 %v1430
        %1434 = vmatprep.subr.bf16.mxu0 0
        %1435 = vmatpush1.bf16.msra.mxu0 0
        %1436 = vmatprep.subr.bf16.mxu0 0
        %1437 = vmatpush1.bf16.msra.mxu0 0
        %1438 = vmatprep.subr.bf16.mxu0 0
        %1439 = vmatpush1.bf16.msra.mxu0 0
        %1440 = vmatprep.subr.bf16.mxu0 0
        %1441 = vmatpush1.bf16.msra.mxu0 0
        %1442 = vmatprep.subr.bf16.mxu0 0
        %1443 = vmatpush1.bf16.msra.mxu0 0
        %1444 = vmatprep.subr.bf16.mxu0 0
        %1445 = vmatpush1.bf16.msra.mxu0 0
        %1446 = vmatprep.subr.bf16.mxu0 0
        %1447 = vmatpush1.bf16.msra.mxu0 0
        %1448 = vmatprep.subr.bf16.mxu0 0
        %1449 = vmatpush1.bf16.msra.mxu0 0
        %1450 = vmatprep.subr.bf16.mxu0 0
        %1451 = vmatpush1.bf16.msra.mxu0 0
        %1452 = vmatprep.subr.bf16.mxu0 0
        %1453 = vmatpush1.bf16.msra.mxu0 0
        %1454 = vmatprep.subr.bf16.mxu0 0
        %1455 = vmatpush1.bf16.msra.mxu0 0
        %1456 = vmatprep.subr.bf16.mxu0 0
        %1457 = vmatpush1.bf16.msra.mxu0 0
        %1458 = vmatprep.subr.bf16.mxu0 0
        %1459 = vmatpush1.bf16.msra.mxu0 0
        %1460 = vmatprep.subr.bf16.mxu0 0
        %1461 = vmatpush1.bf16.msra.mxu0 0
        %1462 = vmatprep.subr.bf16.mxu0 0
        %1463 = vmatpush1.bf16.msra.mxu0 0
        %1464 = vmatprep.mubr.bf16.mxu0 0
        %1465 = vmatmul.mubr.bf16.gmra.mrb[0].mxu0 %v1427
        %v1466 = vpop.f32.mrb[0].mxu0
        %v1467 = vadd.f32 0.0, %v1466
        %v1468 = vpop.f32.mrb[0].mxu0
        %v1469 = vpop.f32.mrb[0].mxu0
        %v1470 = vpop.f32.mrb[0].mxu0
        %1471 = vdwg.mxu0
        %v1472 = vadd.f32 %v1422, %v1467
        %1473 = vst.msk [vmem:[%s1415] sm:$0xff] %vm938, %v1472
        %1474 = vst.msk [vmem:[%s1390] sm:$0xff] %vm1008, %v1395
        %s1475 = scalar_lea.vmem [#allocation2], 16
        %v1476 = vld [vmem:[%s1475] sm:$0xf]
        %1477 = vrot.lane.b32.xlu0 %v823, 64
        %v1478 = vpop.permute.xlu0 %1477
        %v1480 = vsel %vm938, %v1476, 0
        %v1483 = vsel %vm938, %v1478, 0
        %1485 = vmatprep.subr.bf16.mxu0 0
        %1486 = vmatpush1.bf16.xpose.msra.mxu0 %v1483
        %1487 = vmatprep.subr.bf16.mxu0 0
        %1488 = vmatpush1.bf16.xpose.msra.mxu0 0
        %1489 = vmatprep.subr.bf16.mxu0 0
        %1490 = vmatpush1.bf16.xpose.msra.mxu0 0
        %1491 = vmatprep.subr.bf16.mxu0 0
        %1492 = vmatpush1.bf16.xpose.msra.mxu0 0
        %1493 = vmatprep.subr.bf16.mxu0 0
        %1494 = vmatpush1.bf16.xpose.msra.mxu0 0
        %1495 = vmatprep.subr.bf16.mxu0 0
        %1496 = vmatpush1.bf16.xpose.msra.mxu0 0
        %1497 = vmatprep.subr.bf16.mxu0 0
        %1498 = vmatpush1.bf16.xpose.msra.mxu0 0
        %1499 = vmatprep.subr.bf16.mxu0 0
        %1500 = vmatpush1.bf16.xpose.msra.mxu0 0
        %1501 = vmatprep.subr.bf16.mxu0 0
        %1502 = vmatpush1.bf16.xpose.msra.mxu0 0
        %1503 = vmatprep.subr.bf16.mxu0 0
        %1504 = vmatpush1.bf16.xpose.msra.mxu0 0
        %1505 = vmatprep.subr.bf16.mxu0 0
        %1506 = vmatpush1.bf16.xpose.msra.mxu0 0
        %1507 = vmatprep.subr.bf16.mxu0 0
        %1508 = vmatpush1.bf16.xpose.msra.mxu0 0
        %1509 = vmatprep.subr.bf16.mxu0 0
        %1510 = vmatpush1.bf16.xpose.msra.mxu0 0
        %1511 = vmatprep.subr.bf16.mxu0 0
        %1512 = vmatpush1.bf16.xpose.msra.mxu0 0
        %1513 = vmatprep.subr.bf16.mxu0 0
        %1514 = vmatpush1.bf16.xpose.msra.mxu0 0
        %1515 = vmatprep.subr.bf16.mxu0 0
        %1516 = vmatpush1.bf16.xpose.msra.mxu0 0
        %1517 = vmatprep.mubr.bf16.mxu0 0
        %1518 = vmatmul.mubr.bf16.gmra.mrb[0].mxu0 %v1480
        %v1519 = vpop.f32.mrb[0].mxu0
        %v1520 = vadd.f32 0.0, %v1519
        %v1521 = vpop.f32.mrb[0].mxu0
        %v1522 = vpop.f32.mrb[0].mxu0
        %v1523 = vpop.f32.mrb[0].mxu0
        %1524 = vdwg.mxu0
        %s1525 = scalar_lea.vmem [#allocation3], 32
        %v1526 = vld [vmem:[%s1525] sm:$0xff]
        %v1527 = vsel %vm986, %v1520, -inf
        %1528 = vmax.xlane.f32.xlu0 %v1527
        %v1529 = vpop.xlane.xlu0 %1528
        %v1530 = vmax.f32 %v1526, %v1529
        %v1531 = vsub.f32 %v1526, %v1530
        %v1532 = vmul.f32 %v1531, 1.442695
        %v1533 = vpow.pop %v1532
        %1535 = vset.pattern.permute.xlu0 0
        %1536 = vperm.xlu0 %1535, %v1530
        %v1537 = vpop.permute.xlu0 %1536
        %v1539 = vsub.f32 %v1520, %v1537
        %v1540 = vmul.f32 %v1539, 1.442695
        %v1541 = vpow.pop %v1540
        %s1542 = scalar_lea.vmem [#allocation4], 32
        %v1543 = vld [vmem:[%s1542] sm:$0xff]
        %v1544 = vmul.f32 %v1533, %v1543
        %v1545 = vsel %vm986, %v1541, 0.0
        %1546 = vadd.xlane.f32.xlu0 %v1545
        %v1547 = vpop.xlane.xlu0 %1546
        %v1548 = vadd.f32 %v1544, %v1547
        %1549 = vst.msk [vmem:[%s1542] sm:$0xff] %vm1008, %v1548
        %s1550 = scalar_lea.vmem [#allocation5], 32
        %v1551 = vld [vmem:[%s1550] sm:$0xff]
        %1553 = vset.pattern.permute.xlu0 0
        %1554 = vperm.xlu0 %1553, %v1533
        %v1555 = vpop.permute.xlu0 %1554
        %v1557 = vmul.f32 %v1555, %v1551
        %v1558 = vpack.c.bf16 %v1541, %v1541
        %1559 = vrot.lane.b32.xlu0 %v936, 64
        %v1560 = vpop.permute.xlu0 %1559
        %v1562 = vsel %vm986, %v1558, 0
        %v1565 = vsel %vm1021, %v1560, 0
        %1567 = vmatprep.subr.bf16.mxu0 0
        %1568 = vmatpush1.bf16.msra.mxu0 %v1565
        %1569 = vmatprep.subr.bf16.mxu0 0
        %1570 = vmatpush1.bf16.msra.mxu0 0
        %1571 = vmatprep.subr.bf16.mxu0 0
        %1572 = vmatpush1.bf16.msra.mxu0 0
        %1573 = vmatprep.subr.bf16.mxu0 0
        %1574 = vmatpush1.bf16.msra.mxu0 0
        %1575 = vmatprep.subr.bf16.mxu0 0
        %1576 = vmatpush1.bf16.msra.mxu0 0
        %1577 = vmatprep.subr.bf16.mxu0 0
        %1578 = vmatpush1.bf16.msra.mxu0 0
        %1579 = vmatprep.subr.bf16.mxu0 0
        %1580 = vmatpush1.bf16.msra.mxu0 0
        %1581 = vmatprep.subr.bf16.mxu0 0
        %1582 = vmatpush1.bf16.msra.mxu0 0
        %1583 = vmatprep.subr.bf16.mxu0 0
        %1584 = vmatpush1.bf16.msra.mxu0 0
        %1585 = vmatprep.subr.bf16.mxu0 0
        %1586 = vmatpush1.bf16.msra.mxu0 0
        %1587 = vmatprep.subr.bf16.mxu0 0
        %1588 = vmatpush1.bf16.msra.mxu0 0
        %1589 = vmatprep.subr.bf16.mxu0 0
        %1590 = vmatpush1.bf16.msra.mxu0 0
        %1591 = vmatprep.subr.bf16.mxu0 0
        %1592 = vmatpush1.bf16.msra.mxu0 0
        %1593 = vmatprep.subr.bf16.mxu0 0
        %1594 = vmatpush1.bf16.msra.mxu0 0
        %1595 = vmatprep.subr.bf16.mxu0 0
        %1596 = vmatpush1.bf16.msra.mxu0 0
        %1597 = vmatprep.subr.bf16.mxu0 0
        %1598 = vmatpush1.bf16.msra.mxu0 0
        %1599 = vmatprep.mubr.bf16.mxu0 0
        %1600 = vmatmul.mubr.bf16.gmra.mrb[0].mxu0 %v1562
        %v1601 = vpop.f32.mrb[0].mxu0
        %v1602 = vadd.f32 0.0, %v1601
        %v1603 = vpop.f32.mrb[0].mxu0
        %v1604 = vpop.f32.mrb[0].mxu0
        %v1605 = vpop.f32.mrb[0].mxu0
        %1606 = vdwg.mxu0
        %v1607 = vadd.f32 %v1557, %v1602
        %1608 = vst.msk [vmem:[%s1550] sm:$0xff] %vm938, %v1607
        %1609 = vst.msk [vmem:[%s1525] sm:$0xff] %vm1008, %v1530
        %s1610 = scalar_lea.vmem [#allocation2], 20
        %v1611 = vld [vmem:[%s1610] sm:$0xf]
        %1612 = vrot.lane.b32.xlu0 %v823, 48
        %v1613 = vpop.permute.xlu0 %1612
        %v1615 = vsel %vm938, %v1611, 0
        %v1618 = vsel %vm938, %v1613, 0
        %1620 = vmatprep.subr.bf16.mxu0 0
        %1621 = vmatpush1.bf16.xpose.msra.mxu0 %v1618
        %1622 = vmatprep.subr.bf16.mxu0 0
        %1623 = vmatpush1.bf16.xpose.msra.mxu0 0
        %1624 = vmatprep.subr.bf16.mxu0 0
        %1625 = vmatpush1.bf16.xpose.msra.mxu0 0
        %1626 = vmatprep.subr.bf16.mxu0 0
        %1627 = vmatpush1.bf16.xpose.msra.mxu0 0
        %1628 = vmatprep.subr.bf16.mxu0 0
        %1629 = vmatpush1.bf16.xpose.msra.mxu0 0
        %1630 = vmatprep.subr.bf16.mxu0 0
        %1631 = vmatpush1.bf16.xpose.msra.mxu0 0
        %1632 = vmatprep.subr.bf16.mxu0 0
        %1633 = vmatpush1.bf16.xpose.msra.mxu0 0
        %1634 = vmatprep.subr.bf16.mxu0 0
        %1635 = vmatpush1.bf16.xpose.msra.mxu0 0
        %1636 = vmatprep.subr.bf16.mxu0 0
        %1637 = vmatpush1.bf16.xpose.msra.mxu0 0
        %1638 = vmatprep.subr.bf16.mxu0 0
        %1639 = vmatpush1.bf16.xpose.msra.mxu0 0
        %1640 = vmatprep.subr.bf16.mxu0 0
        %1641 = vmatpush1.bf16.xpose.msra.mxu0 0
        %1642 = vmatprep.subr.bf16.mxu0 0
        %1643 = vmatpush1.bf16.xpose.msra.mxu0 0
        %1644 = vmatprep.subr.bf16.mxu0 0
        %1645 = vmatpush1.bf16.xpose.msra.mxu0 0
        %1646 = vmatprep.subr.bf16.mxu0 0
        %1647 = vmatpush1.bf16.xpose.msra.mxu0 0
        %1648 = vmatprep.subr.bf16.mxu0 0
        %1649 = vmatpush1.bf16.xpose.msra.mxu0 0
        %1650 = vmatprep.subr.bf16.mxu0 0
        %1651 = vmatpush1.bf16.xpose.msra.mxu0 0
        %1652 = vmatprep.mubr.bf16.mxu0 0
        %1653 = vmatmul.mubr.bf16.gmra.mrb[0].mxu0 %v1615
        %v1654 = vpop.f32.mrb[0].mxu0
        %v1655 = vadd.f32 0.0, %v1654
        %v1656 = vpop.f32.mrb[0].mxu0
        %v1657 = vpop.f32.mrb[0].mxu0
        %v1658 = vpop.f32.mrb[0].mxu0
        %1659 = vdwg.mxu0
        %s1660 = scalar_lea.vmem [#allocation3], 40
        %v1661 = vld [vmem:[%s1660] sm:$0xff]
        %v1662 = vsel %vm986, %v1655, -inf
        %1663 = vmax.xlane.f32.xlu0 %v1662
        %v1664 = vpop.xlane.xlu0 %1663
        %v1665 = vmax.f32 %v1661, %v1664
        %v1666 = vsub.f32 %v1661, %v1665
        %v1667 = vmul.f32 %v1666, 1.442695
        %v1668 = vpow.pop %v1667
        %1670 = vset.pattern.permute.xlu0 0
        %1671 = vperm.xlu0 %1670, %v1665
        %v1672 = vpop.permute.xlu0 %1671
        %v1674 = vsub.f32 %v1655, %v1672
        %v1675 = vmul.f32 %v1674, 1.442695
        %v1676 = vpow.pop %v1675
        %s1677 = scalar_lea.vmem [#allocation4], 40
        %v1678 = vld [vmem:[%s1677] sm:$0xff]
        %v1679 = vmul.f32 %v1668, %v1678
        %v1680 = vsel %vm986, %v1676, 0.0
        %1681 = vadd.xlane.f32.xlu0 %v1680
        %v1682 = vpop.xlane.xlu0 %1681
        %v1683 = vadd.f32 %v1679, %v1682
        %1684 = vst.msk [vmem:[%s1677] sm:$0xff] %vm1008, %v1683
        %s1685 = scalar_lea.vmem [#allocation5], 40
        %v1686 = vld [vmem:[%s1685] sm:$0xff]
        %1688 = vset.pattern.permute.xlu0 0
        %1689 = vperm.xlu0 %1688, %v1668
        %v1690 = vpop.permute.xlu0 %1689
        %v1692 = vmul.f32 %v1690, %v1686
        %v1693 = vpack.c.bf16 %v1676, %v1676
        %1694 = vrot.lane.b32.xlu0 %v936, 48
        %v1695 = vpop.permute.xlu0 %1694
        %v1697 = vsel %vm986, %v1693, 0
        %v1700 = vsel %vm1021, %v1695, 0
        %1702 = vmatprep.subr.bf16.mxu0 0
        %1703 = vmatpush1.bf16.msra.mxu0 %v1700
        %1704 = vmatprep.subr.bf16.mxu0 0
        %1705 = vmatpush1.bf16.msra.mxu0 0
        %1706 = vmatprep.subr.bf16.mxu0 0
        %1707 = vmatpush1.bf16.msra.mxu0 0
        %1708 = vmatprep.subr.bf16.mxu0 0
        %1709 = vmatpush1.bf16.msra.mxu0 0
        %1710 = vmatprep.subr.bf16.mxu0 0
        %1711 = vmatpush1.bf16.msra.mxu0 0
        %1712 = vmatprep.subr.bf16.mxu0 0
        %1713 = vmatpush1.bf16.msra.mxu0 0
        %1714 = vmatprep.subr.bf16.mxu0 0
        %1715 = vmatpush1.bf16.msra.mxu0 0
        %1716 = vmatprep.subr.bf16.mxu0 0
        %1717 = vmatpush1.bf16.msra.mxu0 0
        %1718 = vmatprep.subr.bf16.mxu0 0
        %1719 = vmatpush1.bf16.msra.mxu0 0
        %1720 = vmatprep.subr.bf16.mxu0 0
        %1721 = vmatpush1.bf16.msra.mxu0 0
        %1722 = vmatprep.subr.bf16.mxu0 0
        %1723 = vmatpush1.bf16.msra.mxu0 0
        %1724 = vmatprep.subr.bf16.mxu0 0
        %1725 = vmatpush1.bf16.msra.mxu0 0
        %1726 = vmatprep.subr.bf16.mxu0 0
        %1727 = vmatpush1.bf16.msra.mxu0 0
        %1728 = vmatprep.subr.bf16.mxu0 0
        %1729 = vmatpush1.bf16.msra.mxu0 0
        %1730 = vmatprep.subr.bf16.mxu0 0
        %1731 = vmatpush1.bf16.msra.mxu0 0
        %1732 = vmatprep.subr.bf16.mxu0 0
        %1733 = vmatpush1.bf16.msra.mxu0 0
        %1734 = vmatprep.mubr.bf16.mxu0 0
        %1735 = vmatmul.mubr.bf16.gmra.mrb[0].mxu0 %v1697
        %v1736 = vpop.f32.mrb[0].mxu0
        %v1737 = vadd.f32 0.0, %v1736
        %v1738 = vpop.f32.mrb[0].mxu0
        %v1739 = vpop.f32.mrb[0].mxu0
        %v1740 = vpop.f32.mrb[0].mxu0
        %1741 = vdwg.mxu0
        %v1742 = vadd.f32 %v1692, %v1737
        %1743 = vst.msk [vmem:[%s1685] sm:$0xff] %vm938, %v1742
        %1744 = vst.msk [vmem:[%s1660] sm:$0xff] %vm1008, %v1665
        %s1745 = scalar_lea.vmem [#allocation2], 24
        %v1746 = vld [vmem:[%s1745] sm:$0xf]
        %1747 = vrot.lane.b32.xlu0 %v823, 32
        %v1748 = vpop.permute.xlu0 %1747
        %v1750 = vsel %vm938, %v1746, 0
        %v1753 = vsel %vm938, %v1748, 0
        %1755 = vmatprep.subr.bf16.mxu0 0
        %1756 = vmatpush1.bf16.xpose.msra.mxu0 %v1753
        %1757 = vmatprep.subr.bf16.mxu0 0
        %1758 = vmatpush1.bf16.xpose.msra.mxu0 0
        %1759 = vmatprep.subr.bf16.mxu0 0
        %1760 = vmatpush1.bf16.xpose.msra.mxu0 0
        %1761 = vmatprep.subr.bf16.mxu0 0
        %1762 = vmatpush1.bf16.xpose.msra.mxu0 0
        %1763 = vmatprep.subr.bf16.mxu0 0
        %1764 = vmatpush1.bf16.xpose.msra.mxu0 0
        %1765 = vmatprep.subr.bf16.mxu0 0
        %1766 = vmatpush1.bf16.xpose.msra.mxu0 0
        %1767 = vmatprep.subr.bf16.mxu0 0
        %1768 = vmatpush1.bf16.xpose.msra.mxu0 0
        %1769 = vmatprep.subr.bf16.mxu0 0
        %1770 = vmatpush1.bf16.xpose.msra.mxu0 0
        %1771 = vmatprep.subr.bf16.mxu0 0
        %1772 = vmatpush1.bf16.xpose.msra.mxu0 0
        %1773 = vmatprep.subr.bf16.mxu0 0
        %1774 = vmatpush1.bf16.xpose.msra.mxu0 0
        %1775 = vmatprep.subr.bf16.mxu0 0
        %1776 = vmatpush1.bf16.xpose.msra.mxu0 0
        %1777 = vmatprep.subr.bf16.mxu0 0
        %1778 = vmatpush1.bf16.xpose.msra.mxu0 0
        %1779 = vmatprep.subr.bf16.mxu0 0
        %1780 = vmatpush1.bf16.xpose.msra.mxu0 0
        %1781 = vmatprep.subr.bf16.mxu0 0
        %1782 = vmatpush1.bf16.xpose.msra.mxu0 0
        %1783 = vmatprep.subr.bf16.mxu0 0
        %1784 = vmatpush1.bf16.xpose.msra.mxu0 0
        %1785 = vmatprep.subr.bf16.mxu0 0
        %1786 = vmatpush1.bf16.xpose.msra.mxu0 0
        %1787 = vmatprep.mubr.bf16.mxu0 0
        %1788 = vmatmul.mubr.bf16.gmra.mrb[0].mxu0 %v1750
        %v1789 = vpop.f32.mrb[0].mxu0
        %v1790 = vadd.f32 0.0, %v1789
        %v1791 = vpop.f32.mrb[0].mxu0
        %v1792 = vpop.f32.mrb[0].mxu0
        %v1793 = vpop.f32.mrb[0].mxu0
        %1794 = vdwg.mxu0
        %s1795 = scalar_lea.vmem [#allocation3], 48
        %v1796 = vld [vmem:[%s1795] sm:$0xff]
        %v1797 = vsel %vm986, %v1790, -inf
        %1798 = vmax.xlane.f32.xlu0 %v1797
        %v1799 = vpop.xlane.xlu0 %1798
        %v1800 = vmax.f32 %v1796, %v1799
        %v1801 = vsub.f32 %v1796, %v1800
        %v1802 = vmul.f32 %v1801, 1.442695
        %v1803 = vpow.pop %v1802
        %1805 = vset.pattern.permute.xlu0 0
        %1806 = vperm.xlu0 %1805, %v1800
        %v1807 = vpop.permute.xlu0 %1806
        %v1809 = vsub.f32 %v1790, %v1807
        %v1810 = vmul.f32 %v1809, 1.442695
        %v1811 = vpow.pop %v1810
        %s1812 = scalar_lea.vmem [#allocation4], 48
        %v1813 = vld [vmem:[%s1812] sm:$0xff]
        %v1814 = vmul.f32 %v1803, %v1813
        %v1815 = vsel %vm986, %v1811, 0.0
        %1816 = vadd.xlane.f32.xlu0 %v1815
        %v1817 = vpop.xlane.xlu0 %1816
        %v1818 = vadd.f32 %v1814, %v1817
        %1819 = vst.msk [vmem:[%s1812] sm:$0xff] %vm1008, %v1818
        %s1820 = scalar_lea.vmem [#allocation5], 48
        %v1821 = vld [vmem:[%s1820] sm:$0xff]
        %1823 = vset.pattern.permute.xlu0 0
        %1824 = vperm.xlu0 %1823, %v1803
        %v1825 = vpop.permute.xlu0 %1824
        %v1827 = vmul.f32 %v1825, %v1821
        %v1828 = vpack.c.bf16 %v1811, %v1811
        %1829 = vrot.lane.b32.xlu0 %v936, 32
        %v1830 = vpop.permute.xlu0 %1829
        %v1832 = vsel %vm986, %v1828, 0
        %v1835 = vsel %vm1021, %v1830, 0
        %1837 = vmatprep.subr.bf16.mxu0 0
        %1838 = vmatpush1.bf16.msra.mxu0 %v1835
        %1839 = vmatprep.subr.bf16.mxu0 0
        %1840 = vmatpush1.bf16.msra.mxu0 0
        %1841 = vmatprep.subr.bf16.mxu0 0
        %1842 = vmatpush1.bf16.msra.mxu0 0
        %1843 = vmatprep.subr.bf16.mxu0 0
        %1844 = vmatpush1.bf16.msra.mxu0 0
        %1845 = vmatprep.subr.bf16.mxu0 0
        %1846 = vmatpush1.bf16.msra.mxu0 0
        %1847 = vmatprep.subr.bf16.mxu0 0
        %1848 = vmatpush1.bf16.msra.mxu0 0
        %1849 = vmatprep.subr.bf16.mxu0 0
        %1850 = vmatpush1.bf16.msra.mxu0 0
        %1851 = vmatprep.subr.bf16.mxu0 0
        %1852 = vmatpush1.bf16.msra.mxu0 0
        %1853 = vmatprep.subr.bf16.mxu0 0
        %1854 = vmatpush1.bf16.msra.mxu0 0
        %1855 = vmatprep.subr.bf16.mxu0 0
        %1856 = vmatpush1.bf16.msra.mxu0 0
        %1857 = vmatprep.subr.bf16.mxu0 0
        %1858 = vmatpush1.bf16.msra.mxu0 0
        %1859 = vmatprep.subr.bf16.mxu0 0
        %1860 = vmatpush1.bf16.msra.mxu0 0
        %1861 = vmatprep.subr.bf16.mxu0 0
        %1862 = vmatpush1.bf16.msra.mxu0 0
        %1863 = vmatprep.subr.bf16.mxu0 0
        %1864 = vmatpush1.bf16.msra.mxu0 0
        %1865 = vmatprep.subr.bf16.mxu0 0
        %1866 = vmatpush1.bf16.msra.mxu0 0
        %1867 = vmatprep.subr.bf16.mxu0 0
        %1868 = vmatpush1.bf16.msra.mxu0 0
        %1869 = vmatprep.mubr.bf16.mxu0 0
        %1870 = vmatmul.mubr.bf16.gmra.mrb[0].mxu0 %v1832
        %v1871 = vpop.f32.mrb[0].mxu0
        %v1872 = vadd.f32 0.0, %v1871
        %v1873 = vpop.f32.mrb[0].mxu0
        %v1874 = vpop.f32.mrb[0].mxu0
        %v1875 = vpop.f32.mrb[0].mxu0
        %1876 = vdwg.mxu0
        %v1877 = vadd.f32 %v1827, %v1872
        %1878 = vst.msk [vmem:[%s1820] sm:$0xff] %vm938, %v1877
        %1879 = vst.msk [vmem:[%s1795] sm:$0xff] %vm1008, %v1800
        %s1880 = scalar_lea.vmem [#allocation2], 28
        %v1881 = vld [vmem:[%s1880] sm:$0xf]
        %1882 = vrot.lane.b32.xlu0 %v823, 16
        %v1883 = vpop.permute.xlu0 %1882
        %v1885 = vsel %vm938, %v1881, 0
        %v1888 = vsel %vm938, %v1883, 0
        %1890 = vmatprep.subr.bf16.mxu0 0
        %1891 = vmatpush1.bf16.xpose.msra.mxu0 %v1888
        %1892 = vmatprep.subr.bf16.mxu0 0
        %1893 = vmatpush1.bf16.xpose.msra.mxu0 0
        %1894 = vmatprep.subr.bf16.mxu0 0
        %1895 = vmatpush1.bf16.xpose.msra.mxu0 0
        %1896 = vmatprep.subr.bf16.mxu0 0
        %1897 = vmatpush1.bf16.xpose.msra.mxu0 0
        %1898 = vmatprep.subr.bf16.mxu0 0
        %1899 = vmatpush1.bf16.xpose.msra.mxu0 0
        %1900 = vmatprep.subr.bf16.mxu0 0
        %1901 = vmatpush1.bf16.xpose.msra.mxu0 0
        %1902 = vmatprep.subr.bf16.mxu0 0
        %1903 = vmatpush1.bf16.xpose.msra.mxu0 0
        %1904 = vmatprep.subr.bf16.mxu0 0
        %1905 = vmatpush1.bf16.xpose.msra.mxu0 0
        %1906 = vmatprep.subr.bf16.mxu0 0
        %1907 = vmatpush1.bf16.xpose.msra.mxu0 0
        %1908 = vmatprep.subr.bf16.mxu0 0
        %1909 = vmatpush1.bf16.xpose.msra.mxu0 0
        %1910 = vmatprep.subr.bf16.mxu0 0
        %1911 = vmatpush1.bf16.xpose.msra.mxu0 0
        %1912 = vmatprep.subr.bf16.mxu0 0
        %1913 = vmatpush1.bf16.xpose.msra.mxu0 0
        %1914 = vmatprep.subr.bf16.mxu0 0
        %1915 = vmatpush1.bf16.xpose.msra.mxu0 0
        %1916 = vmatprep.subr.bf16.mxu0 0
        %1917 = vmatpush1.bf16.xpose.msra.mxu0 0
        %1918 = vmatprep.subr.bf16.mxu0 0
        %1919 = vmatpush1.bf16.xpose.msra.mxu0 0
        %1920 = vmatprep.subr.bf16.mxu0 0
        %1921 = vmatpush1.bf16.xpose.msra.mxu0 0
        %1922 = vmatprep.mubr.bf16.mxu0 0
        %1923 = vmatmul.mubr.bf16.gmra.mrb[0].mxu0 %v1885
        %v1924 = vpop.f32.mrb[0].mxu0
        %v1925 = vadd.f32 0.0, %v1924
        %v1926 = vpop.f32.mrb[0].mxu0
        %v1927 = vpop.f32.mrb[0].mxu0
        %v1928 = vpop.f32.mrb[0].mxu0
        %1929 = vdwg.mxu0
        %s1930 = scalar_lea.vmem [#allocation3], 56
        %v1931 = vld [vmem:[%s1930] sm:$0xff]
        %v1932 = vsel %vm986, %v1925, -inf
        %1933 = vmax.xlane.f32.xlu0 %v1932
        %v1934 = vpop.xlane.xlu0 %1933
        %v1935 = vmax.f32 %v1931, %v1934
        %v1936 = vsub.f32 %v1931, %v1935
        %v1937 = vmul.f32 %v1936, 1.442695
        %v1938 = vpow.pop %v1937
        %1940 = vset.pattern.permute.xlu0 0
        %1941 = vperm.xlu0 %1940, %v1935
        %v1942 = vpop.permute.xlu0 %1941
        %v1944 = vsub.f32 %v1925, %v1942
        %v1945 = vmul.f32 %v1944, 1.442695
        %v1946 = vpow.pop %v1945
        %s1947 = scalar_lea.vmem [#allocation4], 56
        %v1948 = vld [vmem:[%s1947] sm:$0xff]
        %v1949 = vmul.f32 %v1938, %v1948
        %v1950 = vsel %vm986, %v1946, 0.0
        %1951 = vadd.xlane.f32.xlu0 %v1950
        %v1952 = vpop.xlane.xlu0 %1951
        %v1953 = vadd.f32 %v1949, %v1952
        %1954 = vst.msk [vmem:[%s1947] sm:$0xff] %vm1008, %v1953
        %s1955 = scalar_lea.vmem [#allocation5], 56
        %v1956 = vld [vmem:[%s1955] sm:$0xff]
        %1958 = vset.pattern.permute.xlu0 0
        %1959 = vperm.xlu0 %1958, %v1938
        %v1960 = vpop.permute.xlu0 %1959
        %v1962 = vmul.f32 %v1960, %v1956
        %v1963 = vpack.c.bf16 %v1946, %v1946
        %1964 = vrot.lane.b32.xlu0 %v936, 16
        %v1965 = vpop.permute.xlu0 %1964
        %v1967 = vsel %vm986, %v1963, 0
        %v1970 = vsel %vm1021, %v1965, 0
        %1972 = vmatprep.subr.bf16.mxu0 0
        %1973 = vmatpush1.bf16.msra.mxu0 %v1970
        %1974 = vmatprep.subr.bf16.mxu0 0
        %1975 = vmatpush1.bf16.msra.mxu0 0
        %1976 = vmatprep.subr.bf16.mxu0 0
        %1977 = vmatpush1.bf16.msra.mxu0 0
        %1978 = vmatprep.subr.bf16.mxu0 0
        %1979 = vmatpush1.bf16.msra.mxu0 0
        %1980 = vmatprep.subr.bf16.mxu0 0
        %1981 = vmatpush1.bf16.msra.mxu0 0
        %1982 = vmatprep.subr.bf16.mxu0 0
        %1983 = vmatpush1.bf16.msra.mxu0 0
        %1984 = vmatprep.subr.bf16.mxu0 0
        %1985 = vmatpush1.bf16.msra.mxu0 0
        %1986 = vmatprep.subr.bf16.mxu0 0
        %1987 = vmatpush1.bf16.msra.mxu0 0
        %1988 = vmatprep.subr.bf16.mxu0 0
        %1989 = vmatpush1.bf16.msra.mxu0 0
        %1990 = vmatprep.subr.bf16.mxu0 0
        %1991 = vmatpush1.bf16.msra.mxu0 0
        %1992 = vmatprep.subr.bf16.mxu0 0
        %1993 = vmatpush1.bf16.msra.mxu0 0
        %1994 = vmatprep.subr.bf16.mxu0 0
        %1995 = vmatpush1.bf16.msra.mxu0 0
        %1996 = vmatprep.subr.bf16.mxu0 0
        %1997 = vmatpush1.bf16.msra.mxu0 0
        %1998 = vmatprep.subr.bf16.mxu0 0
        %1999 = vmatpush1.bf16.msra.mxu0 0
        %2000 = vmatprep.subr.bf16.mxu0 0
        %2001 = vmatpush1.bf16.msra.mxu0 0
        %2002 = vmatprep.subr.bf16.mxu0 0
        %2003 = vmatpush1.bf16.msra.mxu0 0
        %2004 = vmatprep.mubr.bf16.mxu0 0
        %2005 = vmatmul.mubr.bf16.gmra.mrb[0].mxu0 %v1967
        %v2006 = vpop.f32.mrb[0].mxu0
        %v2007 = vadd.f32 0.0, %v2006
        %v2008 = vpop.f32.mrb[0].mxu0
        %v2009 = vpop.f32.mrb[0].mxu0
        %v2010 = vpop.f32.mrb[0].mxu0
        %2011 = vdwg.mxu0
        %v2012 = vadd.f32 %v1962, %v2007
        %2013 = vst.msk [vmem:[%s1955] sm:$0xff] %vm938, %v2012
        %2014 = vst.msk [vmem:[%s1930] sm:$0xff] %vm1008, %v1935
        // Predicated region
        $region93: #{tpu_custom_call.1} parent=59 // pred_check
          %p2015 = pneg %p535
        $region94: #{tpu_custom_call.1} parent=59 // pred_check_branch
          %2017 = sbr.rel (%p2015) target = $region96
        $region95: #{tpu_custom_call.1} parent=59 // pred_region
          %v2018 = vld [vmem:[#allocation4] sm:$0xff]
          %v2019 = vrcp.pop %v2018
          %v2020 = vld [vmem:[#allocation5] sm:$0xff]
          %2022 = vset.pattern.permute.xlu0 0
          %2023 = vperm.xlu0 %2022, %v2019
          %v2024 = vpop.permute.xlu0 %2023
          %v2026 = vmul.f32 %v2020, %v2024
          %v2027 = vpack.c.bf16 %v2026, %v2026
          %vm2028 = vcmask 125952
          %2029 = vst.msk [vmem:[#allocation6] sm:$0xf] %vm2028, %v2027
          %v2030 = vld [vmem:[%s1136] sm:$0xff]
          %v2031 = vrcp.pop %v2030
          %v2032 = vld [vmem:[%s1144] sm:$0xff]
          %2034 = vset.pattern.permute.xlu0 0
          %2035 = vperm.xlu0 %2034, %v2031
          %v2036 = vpop.permute.xlu0 %2035
          %v2038 = vmul.f32 %v2032, %v2036
          %v2039 = vpack.c.bf16 %v2038, %v2038
          %v2041 = vunpack.c.l.b16 %v2039
          %v2042 = vpack.c.b16 %v2041, %v2041
          %2043 = vrot.lane.b32.xlu0 %v2042, 16
          %v2044 = vpop.permute.xlu0 %2043
          %vm2046 = vcmask 257152
          %2047 = vst.msk [vmem:[#allocation6] sm:$0xf] %vm2046, %v2044
          %v2048 = vld [vmem:[%s1272] sm:$0xff]
          %v2049 = vrcp.pop %v2048
          %v2050 = vld [vmem:[%s1280] sm:$0xff]
          %2052 = vset.pattern.permute.xlu0 0
          %2053 = vperm.xlu0 %2052, %v2049
          %v2054 = vpop.permute.xlu0 %2053
          %v2056 = vmul.f32 %v2050, %v2054
          %v2057 = vpack.c.bf16 %v2056, %v2056
          %v2059 = vunpack.c.l.b16 %v2057
          %v2060 = vpack.c.b16 %v2059, %v2059
          %2061 = vrot.lane.b32.xlu0 %v2060, 32
          %v2062 = vpop.permute.xlu0 %2061
          %vm2064 = vcmask 388352
          %2065 = vst.msk [vmem:[#allocation6] sm:$0xf] %vm2064, %v2062
          %v2066 = vld [vmem:[%s1407] sm:$0xff]
          %v2067 = vrcp.pop %v2066
          %v2068 = vld [vmem:[%s1415] sm:$0xff]
          %2070 = vset.pattern.permute.xlu0 0
          %2071 = vperm.xlu0 %2070, %v2067
          %v2072 = vpop.permute.xlu0 %2071
          %v2074 = vmul.f32 %v2068, %v2072
          %v2075 = vpack.c.bf16 %v2074, %v2074
          %v2077 = vunpack.c.l.b16 %v2075
          %v2078 = vpack.c.b16 %v2077, %v2077
          %2079 = vrot.lane.b32.xlu0 %v2078, 48
          %v2080 = vpop.permute.xlu0 %2079
          %vm2082 = vcmask 519552
          %2083 = vst.msk [vmem:[#allocation6] sm:$0xf] %vm2082, %v2080
          %v2084 = vld [vmem:[%s1542] sm:$0xff]
          %v2085 = vrcp.pop %v2084
          %v2086 = vld [vmem:[%s1550] sm:$0xff]
          %2088 = vset.pattern.permute.xlu0 0
          %2089 = vperm.xlu0 %2088, %v2085
          %v2090 = vpop.permute.xlu0 %2089
          %v2092 = vmul.f32 %v2086, %v2090
          %v2093 = vpack.c.bf16 %v2092, %v2092
          %v2095 = vunpack.c.l.b16 %v2093
          %v2096 = vpack.c.b16 %v2095, %v2095
          %2097 = vrot.lane.b32.xlu0 %v2096, 64
          %v2098 = vpop.permute.xlu0 %2097
          %vm2100 = vcmask 650752
          %2101 = vst.msk [vmem:[#allocation6] sm:$0xf] %vm2100, %v2098
          %v2102 = vld [vmem:[%s1677] sm:$0xff]
          %v2103 = vrcp.pop %v2102
          %v2104 = vld [vmem:[%s1685] sm:$0xff]
          %2106 = vset.pattern.permute.xlu0 0
          %2107 = vperm.xlu0 %2106, %v2103
          %v2108 = vpop.permute.xlu0 %2107
          %v2110 = vmul.f32 %v2104, %v2108
          %v2111 = vpack.c.bf16 %v2110, %v2110
          %v2113 = vunpack.c.l.b16 %v2111
          %v2114 = vpack.c.b16 %v2113, %v2113
          %2115 = vrot.lane.b32.xlu0 %v2114, 80
          %v2116 = vpop.permute.xlu0 %2115
          %vm2118 = vcmask 781952
          %2119 = vst.msk [vmem:[#allocation6] sm:$0xf] %vm2118, %v2116
          %v2120 = vld [vmem:[%s1812] sm:$0xff]
          %v2121 = vrcp.pop %v2120
          %v2122 = vld [vmem:[%s1820] sm:$0xff]
          %2124 = vset.pattern.permute.xlu0 0
          %2125 = vperm.xlu0 %2124, %v2121
          %v2126 = vpop.permute.xlu0 %2125
          %v2128 = vmul.f32 %v2122, %v2126
          %v2129 = vpack.c.bf16 %v2128, %v2128
          %v2131 = vunpack.c.l.b16 %v2129
          %v2132 = vpack.c.b16 %v2131, %v2131
          %2133 = vrot.lane.b32.xlu0 %v2132, 96
          %v2134 = vpop.permute.xlu0 %2133
          %vm2136 = vcmask 913152
          %2137 = vst.msk [vmem:[#allocation6] sm:$0xf] %vm2136, %v2134
          %v2138 = vld [vmem:[%s1947] sm:$0xff]
          %v2139 = vrcp.pop %v2138
          %v2140 = vld [vmem:[%s1955] sm:$0xff]
          %2142 = vset.pattern.permute.xlu0 0
          %2143 = vperm.xlu0 %2142, %v2139
          %v2144 = vpop.permute.xlu0 %2143
          %v2146 = vmul.f32 %v2140, %v2144
          %v2147 = vpack.c.bf16 %v2146, %v2146
          %v2149 = vunpack.c.l.b16 %v2147
          %v2150 = vpack.c.b16 %v2149, %v2149
          %2151 = vrot.lane.b32.xlu0 %v2150, 112
          %v2152 = vpop.permute.xlu0 %2151
          %vm2154 = vcmask 1044352
          %2155 = vst.msk [vmem:[#allocation6] sm:$0xf] %vm2154, %v2152
          %v2156 = vld [vmem:[#allocation6] sm:$0xf]
          %v2157 = vld [vmem:[#allocation18] sm:$0xf]
          %v2158 = vld [vmem:[#allocation18 + $0x4] sm:$0xf]
          %v2159 = vld [vmem:[#allocation18 + $0x8] sm:$0xf]
          %v2160 = vld [vmem:[#allocation18 + $0xc] sm:$0xf]
          %v2161 = vld [vmem:[#allocation18 + $0x10] sm:$0xf]
          %v2162 = vld [vmem:[#allocation18 + $0x14] sm:$0xf]
          %v2163 = vld [vmem:[#allocation18 + $0x18] sm:$0xf]
          %v2164 = vld [vmem:[#allocation18 + $0x1c] sm:$0xf]
          %v2165 = vld [vmem:[#allocation18 + $0x20] sm:$0xf]
          %v2166 = vld [vmem:[#allocation18 + $0x24] sm:$0xf]
          %v2167 = vld [vmem:[#allocation18 + $0x28] sm:$0xf]
          %v2168 = vld [vmem:[#allocation18 + $0x2c] sm:$0xf]
          %v2169 = vld [vmem:[#allocation18 + $0x30] sm:$0xf]
          %v2170 = vld [vmem:[#allocation18 + $0x34] sm:$0xf]
          %v2171 = vld [vmem:[#allocation18 + $0x38] sm:$0xf]
          %v2172 = vld [vmem:[#allocation18 + $0x3c] sm:$0xf]
          %v2173 = vld [vmem:[%s9] sm:$0x1]
          %v2175 = vlaneseq
          %v2176 = vshrl.u32 %v2175, 7
          %v2177 = vsub.s32 0, %v2176
          %v2178 = vrot.slane %v2173, %v2177
          %v2196 = vunpack.c.l.b16 %v2157
          %v2197 = vunpack.c.l.b16 %v2158
          %v2198 = vunpack.c.l.b16 %v2159
          %v2199 = vunpack.c.l.b16 %v2160
          %v2200 = vunpack.c.l.b16 %v2161
          %v2201 = vunpack.c.l.b16 %v2162
          %v2202 = vunpack.c.l.b16 %v2163
          %v2203 = vunpack.c.l.b16 %v2164
          %v2204 = vunpack.c.l.b16 %v2165
          %v2205 = vunpack.c.l.b16 %v2166
          %v2206 = vunpack.c.l.b16 %v2167
          %v2207 = vunpack.c.l.b16 %v2168
          %v2208 = vunpack.c.l.b16 %v2169
          %v2209 = vunpack.c.l.b16 %v2170
          %v2210 = vunpack.c.l.b16 %v2171
          %v2211 = vunpack.c.l.b16 %v2172
          %v2212 = vpack.c.b16 %v2197, %v2196
          %v2213 = vpack.c.b16 %v2199, %v2198
          %v2214 = vpack.c.b16 %v2201, %v2200
          %v2215 = vpack.c.b16 %v2203, %v2202
          %v2216 = vpack.c.b16 %v2205, %v2204
          %v2217 = vpack.c.b16 %v2207, %v2206
          %v2218 = vpack.c.b16 %v2209, %v2208
          %v2219 = vpack.c.b16 %v2211, %v2210
          %2228 = vmatprep.subr.bf16.mxu0 0
          %2229 = vmatpush1.bf16.msra.mxu0 %v2212
          %2230 = vmatprep.subr.bf16.mxu0 0
          %2231 = vmatpush1.bf16.msra.mxu0 %v2213
          %2232 = vmatprep.subr.bf16.mxu0 0
          %2233 = vmatpush1.bf16.msra.mxu0 %v2214
          %2234 = vmatprep.subr.bf16.mxu0 0
          %2235 = vmatpush1.bf16.msra.mxu0 %v2215
          %2236 = vmatprep.subr.bf16.mxu0 0
          %2237 = vmatpush1.bf16.msra.mxu0 %v2216
          %2238 = vmatprep.subr.bf16.mxu0 0
          %2239 = vmatpush1.bf16.msra.mxu0 %v2217
          %2240 = vmatprep.subr.bf16.mxu0 0
          %2241 = vmatpush1.bf16.msra.mxu0 %v2218
          %2242 = vmatprep.subr.bf16.mxu0 0
          %2243 = vmatpush1.bf16.msra.mxu0 %v2219
          %2244 = vmatprep.subr.bf16.mxu0 0
          %2245 = vmatpush1.bf16.msra.mxu0 0
          %2246 = vmatprep.subr.bf16.mxu0 0
          %2247 = vmatpush1.bf16.msra.mxu0 0
          %2248 = vmatprep.subr.bf16.mxu0 0
          %2249 = vmatpush1.bf16.msra.mxu0 0
          %2250 = vmatprep.subr.bf16.mxu0 0
          %2251 = vmatpush1.bf16.msra.mxu0 0
          %2252 = vmatprep.subr.bf16.mxu0 0
          %2253 = vmatpush1.bf16.msra.mxu0 0
          %2254 = vmatprep.subr.bf16.mxu0 0
          %2255 = vmatpush1.bf16.msra.mxu0 0
          %2256 = vmatprep.subr.bf16.mxu0 0
          %2257 = vmatpush1.bf16.msra.mxu0 0
          %2258 = vmatprep.subr.bf16.mxu0 0
          %2259 = vmatpush1.bf16.msra.mxu0 0
          %2260 = vmatprep.mubr.bf16.mxu0 0
          %2261 = vmatmul.mubr.bf16.gmra.mrb[0].mxu0 %v2156
          %v2262 = vpop.f32.mrb[0].mxu0
          %v2263 = vadd.f32 %v2178, %v2262
          %v2264 = vpop.f32.mrb[0].mxu0
          %v2265 = vpop.f32.mrb[0].mxu0
          %v2266 = vpop.f32.mrb[0].mxu0
          %2267 = vdwg.mxu0
          %2268 = vst [vmem:[%s533] sm:$0xff] %v2263
        $region96: #{tpu_custom_call.1} parent=59 // pred_fallthru
          _
        %s2269 = sand.u32 %s292, 1
        %s2270 = scalar_lea.sflag [#allocation9], %s2269
        %s2271 = sand.u32 %s292, 1
        %s2272 = smul.addr %s2271, 8
        %s2273 = scalar_lea.vmem [#allocation19], %s2272
        // Predicated region
        $region97: #{tpu_custom_call.1} parent=59 // pred_check
          %p2274 = pneg %p302
        $region98: #{tpu_custom_call.1} parent=59 // pred_check_branch
          %2276 = sbr.rel (%p2274) target = $region100
        $region99: #{tpu_custom_call.1} parent=59 // pred_region
          %s2278 = ssub.s32 128, 128
          %2279 = vsyncadd %s2270, %s2278
          %s2280 = sadd.s32 %s38, %s37
          %s2281 = smul.addr %s2280, 128
          %s2282 = scalar_lea.hbm %s10, %s2281
          %s2284 = sshll.u32 %s2273, 4
          %s2285 = int_to_ptr.vmem [resolvable:$true] %s2284
          %2287 = dma.vmem_to_hbm [thread:$0]  %s2285, 128, %s2282, %s2270
        $region100: #{tpu_custom_call.1} parent=59 // pred_fallthru
          _
      $region60: #{tpu_custom_call.1} parent=5 // pred_fallthru
        _
      %p2288 = scmp.le.s32.totalorder 2, %s27
      // Predicated region
      $region101: #{tpu_custom_call.1} parent=5 // pred_check
        %p2289 = pneg %p2288
      $region102: #{tpu_custom_call.1} parent=5 // pred_check_branch
        %2291 = sbr.rel (%p2289) target = $region104
      $region103: #{tpu_custom_call.1} parent=5 // pred_region
        %s2292 = ssub.s32 %s27, 2
        // Predicated region
        $region105: #{tpu_custom_call.1} parent=103 // pred_check
          %p2293 = pneg %p308
        $region106: #{tpu_custom_call.1} parent=103 // pred_check_branch
          %2295 = sbr.rel (%p2293) target = $region108
        $region107: #{tpu_custom_call.1} parent=103 // pred_region
          %s2296 = sand.u32 %s293, 1
          %s2297 = scalar_lea.sflag [#allocation9], %s2296
          %s2298 = sand.u32 %s293, 1
          %s2299 = smul.addr %s2298, 8
          %s2300 = scalar_lea.vmem [#allocation19], %s2299
          %2301 = dma.done %s2297, 128
        $region108: #{tpu_custom_call.1} parent=103 // pred_fallthru
          _
      $region104: #{tpu_custom_call.1} parent=5 // pred_fallthru
        _
    $region6: #{tpu_custom_call.1} parent=1 // loop_footer
      %s31 = sadd.s32 1, %s27
    $region7: #{tpu_custom_call.1} parent=1 // loop_footer_branch
      %26 = sbr.rel target = $region3
    $region8: #{tpu_custom_call.1} parent=1 // loop_exit
      _
    %2302 = vsyncpa [#allocation8], 1
    %s2303 = scalar_lea.sflag [#allocation8], 1
    %2304 = vsyncpa %s2303, 1
    %2305 = vsyncpa [#allocation11], 1
    %s2306 = scalar_lea.sflag [#allocation11], 1
    %2307 = vsyncpa %s2306, 1
    %2308 = vsyncpa [#allocation14], 1
    %2309 = vsyncpa [#allocation17], 1
    %2310 = vsyncpa [#allocation9], 1
    %s2311 = scalar_lea.sflag [#allocation9], 1
    %2312 = vsyncpa %s2311, 1

</llo_original>
